<compile_context>
chip_gen: v5e
topology: v5e:2x2
jax: 0.10.0
libtpu: 0.0.40
codegen_flags: <defaults>
</compile_context>

<pallas_src>
import jax
import jax.numpy as jnp
from jax.experimental import pallas as pl
from jax.experimental.pallas import tpu as pltpu

# ----- model dimensions (small, consistent with the forward's asserts) -----
B = 8            # batch
T = 8            # sequence length rolled inside the kernel
INPUT_DIM = 32   # config.input_dim   (obs feature size)
HIDDEN_DIM = 64  # config.hidden_dim  (deterministic recurrent state)
ACTION_DIM = 8   # config.action_dim
LATENT_DIM = 32  # stochastic latent size
MLP_DIM = 128    # hidden width of the encoder / decoder / predictor MLPs
MIN_STD = 0.1

# packed-output column layout (lane-dense slab, split in the wrapper)
O_Z = 0
O_PM = O_Z + LATENT_DIM          # 32
O_PS = O_PM + LATENT_DIM         # 64
O_RC = O_PS + LATENT_DIM         # 96
O_H = O_RC + INPUT_DIM           # 128
O_QM = O_H + HIDDEN_DIM          # 192
O_QS = O_QM + LATENT_DIM         # 224
O_QZ = O_QS + LATENT_DIM         # 256
OUT_W = O_QZ + LATENT_DIM        # 288


def _softplus(x):
    # numerically-stable softplus (VPU/EUP)
    return jnp.maximum(x, 0.0) + jnp.log1p(jnp.exp(-jnp.abs(x)))


def rssm_kernel(
    # data
    h0_ref, obs_ref, act_ref, epo_ref, epr_ref,
    # encoder params
    we1o, we1h, be1, we2m, be2m, we2s, be2s,
    # decoder params
    wd1z, wd1h, bd1, wd2, bd2,
    # recurrent-model params (pre-GRU MLP + per-gate GRUCell blocks)
    wr1z, wr1a, br1,
    wih_r, wih_u, wih_n, bih_r, bih_u, bih_n,
    whh_r, whh_u, whh_n, bhh_r, bhh_u, bhh_n,
    # dynamic-predictor params
    wp1, bp1, wp2m, bp2m, wp2s, bp2s,
    # packed output
    out_ref,
    # scratch: recurrent hidden state carried across grid steps
    h_scr,
):
    f32 = jnp.float32
    bf16 = jnp.bfloat16
    t = pl.program_id(0)

    @pl.when(t == 0)
    def _():
        h_scr[...] = h0_ref[...]

    hid = h_scr[...]                       # f32 carry
    hid_b = hid.astype(bf16)
    obs = obs_ref[0].astype(bf16)
    act = act_ref[0].astype(bf16)
    eps_post = epo_ref[0]
    eps_prior = epr_ref[0]

    def dot(a, w_ref):
        return jnp.dot(a, w_ref[...], preferred_element_type=f32)

    # ---------------- Encoder: posterior over latent ----------------
    e_h = jnp.tanh(dot(obs, we1o) + dot(hid_b, we1h) + be1[...])
    e_h_b = e_h.astype(bf16)
    post_mean = dot(e_h_b, we2m) + be2m[...]
    post_std = _softplus(dot(e_h_b, we2s) + be2s[...]) + MIN_STD
    z = post_mean + post_std * eps_post            # reparameterized sample
    z_b = z.astype(bf16)

    # ---------------- Decoder: reconstruct obs from (latent, hidden) --------
    d_h = jnp.tanh(dot(z_b, wd1z) + dot(hid_b, wd1h) + bd1[...])
    recon = dot(d_h.astype(bf16), wd2) + bd2[...]

    # ---------------- RecurrentModel: MLP(cat(latent, action)) -> GRUCell ---
    r_x = jnp.tanh(dot(z_b, wr1z) + dot(act, wr1a) + br1[...])
    r_x_b = r_x.astype(bf16)
    r_gate = jax.nn.sigmoid(dot(r_x_b, wih_r) + bih_r[...]
                            + dot(hid_b, whh_r) + bhh_r[...])
    u_gate = jax.nn.sigmoid(dot(r_x_b, wih_u) + bih_u[...]
                            + dot(hid_b, whh_u) + bhh_u[...])
    n_gate = jnp.tanh(dot(r_x_b, wih_n) + bih_n[...]
                      + r_gate * (dot(hid_b, whh_n) + bhh_n[...]))
    h_new = (1.0 - u_gate) * n_gate + u_gate * hid
    h_scr[...] = h_new

    # ---------------- DynamicPredictor: prior over latent from h ------------
    p_h = jnp.tanh(dot(h_new.astype(bf16), wp1) + bp1[...])
    p_h_b = p_h.astype(bf16)
    prior_mean = dot(p_h_b, wp2m) + bp2m[...]
    prior_std = _softplus(dot(p_h_b, wp2s) + bp2s[...]) + MIN_STD
    prior_z = prior_mean + prior_std * eps_prior

    # ---------------- lane-dense packed write (one store per step) ----------
    slab = jnp.concatenate(
        [z, post_mean, post_std, recon, h_new, prior_mean, prior_std, prior_z],
        axis=-1,
    )
    out_ref[0] = slab


PARAM_ORDER = [
    "we1o", "we1h", "be1", "we2m", "be2m", "we2s", "be2s",
    "wd1z", "wd1h", "bd1", "wd2", "bd2",
    "wr1z", "wr1a", "br1",
    "wih_r", "wih_u", "wih_n", "bih_r", "bih_u", "bih_n",
    "whh_r", "whh_u", "whh_n", "bhh_r", "bhh_u", "bhh_n",
    "wp1", "bp1", "wp2m", "bp2m", "wp2s", "bp2s",
]


def make_params(key):
    """Deterministic init. Weights stored bf16 (MXU operands), biases f32."""
    keys = jax.random.split(key, 64)
    it = iter(keys)

    def w(shape):
        return (jax.random.normal(next(it), shape, jnp.float32) * 0.1).astype(jnp.bfloat16)

    def b(shape):
        return jax.random.normal(next(it), shape, jnp.float32) * 0.01

    p = {}
    # encoder
    p["we1o"] = w((INPUT_DIM, MLP_DIM))
    p["we1h"] = w((HIDDEN_DIM, MLP_DIM))
    p["be1"] = b((1, MLP_DIM))
    p["we2m"] = w((MLP_DIM, LATENT_DIM))
    p["be2m"] = b((1, LATENT_DIM))
    p["we2s"] = w((MLP_DIM, LATENT_DIM))
    p["be2s"] = b((1, LATENT_DIM))
    # decoder
    p["wd1z"] = w((LATENT_DIM, MLP_DIM))
    p["wd1h"] = w((HIDDEN_DIM, MLP_DIM))
    p["bd1"] = b((1, MLP_DIM))
    p["wd2"] = w((MLP_DIM, INPUT_DIM))
    p["bd2"] = b((1, INPUT_DIM))
    # recurrent model (pre-GRU MLP + per-gate GRU blocks)
    p["wr1z"] = w((LATENT_DIM, HIDDEN_DIM))
    p["wr1a"] = w((ACTION_DIM, HIDDEN_DIM))
    p["br1"] = b((1, HIDDEN_DIM))
    for g in ("r", "u", "n"):
        p[f"wih_{g}"] = w((HIDDEN_DIM, HIDDEN_DIM))
        p[f"bih_{g}"] = b((1, HIDDEN_DIM))
        p[f"whh_{g}"] = w((HIDDEN_DIM, HIDDEN_DIM))
        p[f"bhh_{g}"] = b((1, HIDDEN_DIM))
    # dynamic predictor
    p["wp1"] = w((HIDDEN_DIM, MLP_DIM))
    p["bp1"] = b((1, MLP_DIM))
    p["wp2m"] = w((MLP_DIM, LATENT_DIM))
    p["bp2m"] = b((1, LATENT_DIM))
    p["wp2s"] = w((MLP_DIM, LATENT_DIM))
    p["bp2s"] = b((1, LATENT_DIM))
    return p


@jax.jit
def rssm_forward(h0, obs_seq, act_seq, eps_post_seq, eps_prior_seq, params):
    """Rolls the RSSM over T steps inside a single pallas_call."""
    t_steps = obs_seq.shape[0]

    def seq_spec(d):
        return pl.BlockSpec((1, B, d), lambda t: (t, 0, 0))

    def resident_spec(shape):
        # weights/biases stay VMEM-resident: block index constant over T
        return pl.BlockSpec(shape, lambda t: (0, 0))

    in_specs = [
        pl.BlockSpec((B, HIDDEN_DIM), lambda t: (0, 0)),   # h0
        seq_spec(INPUT_DIM),                               # obs_seq
        seq_spec(ACTION_DIM),                              # act_seq
        seq_spec(LATENT_DIM),                              # eps_post_seq
        seq_spec(LATENT_DIM),                              # eps_prior_seq
    ] + [resident_spec(params[k].shape) for k in PARAM_ORDER]

    packed = pl.pallas_call(
        rssm_kernel,
        out_shape=jax.ShapeDtypeStruct((t_steps, B, OUT_W), jnp.float32),
        grid=(t_steps,),
        in_specs=in_specs,
        out_specs=pl.BlockSpec((1, B, OUT_W), lambda t: (t, 0, 0)),
        scratch_shapes=[pltpu.VMEM((B, HIDDEN_DIM), jnp.float32)],
        compiler_params=pltpu.CompilerParams(
            dimension_semantics=("arbitrary",)),   # serial recurrence over T
    )(h0, obs_seq, act_seq, eps_post_seq, eps_prior_seq,
      *[params[k] for k in PARAM_ORDER])

    z = packed[..., O_Z:O_PM]
    pmean = packed[..., O_PM:O_PS]
    pstd = packed[..., O_PS:O_RC]
    recon = packed[..., O_RC:O_H]
    h_seq = packed[..., O_H:O_QM]
    prmean = packed[..., O_QM:O_QS]
    prstd = packed[..., O_QS:O_QZ]
    pz = packed[..., O_QZ:OUT_W]
    return z, pmean, pstd, recon, h_seq, prmean, prstd, pz


def rssm_reference(h0, obs_seq, act_seq, eps_post_seq, eps_prior_seq, p):
    """Pure-JAX reference (same bf16-operand / f32-accumulate math)."""
    bf16 = jnp.bfloat16
    f32 = jnp.float32
    softplus = lambda x: jnp.maximum(x, 0.0) + jnp.log1p(jnp.exp(-jnp.abs(x)))

    def bdot(a, w):
        return jnp.dot(a.astype(bf16), w, preferred_element_type=f32)

    def step(h, inp):
        obs, act, ep, epr = inp
        e_h = jnp.tanh(bdot(obs, p["we1o"]) + bdot(h, p["we1h"]) + p["be1"])
        pm = bdot(e_h, p["we2m"]) + p["be2m"]
        ps = softplus(bdot(e_h, p["we2s"]) + p["be2s"]) + MIN_STD
        z = pm + ps * ep
        d_h = jnp.tanh(bdot(z, p["wd1z"]) + bdot(h, p["wd1h"]) + p["bd1"])
        recon = bdot(d_h, p["wd2"]) + p["bd2"]
        r_x = jnp.tanh(bdot(z, p["wr1z"]) + bdot(act, p["wr1a"]) + p["br1"])
        r = jax.nn.sigmoid(bdot(r_x, p["wih_r"]) + p["bih_r"]
                           + bdot(h, p["whh_r"]) + p["bhh_r"])
        u = jax.nn.sigmoid(bdot(r_x, p["wih_u"]) + p["bih_u"]
                           + bdot(h, p["whh_u"]) + p["bhh_u"])
        n = jnp.tanh(bdot(r_x, p["wih_n"]) + p["bih_n"]
                     + r * (bdot(h, p["whh_n"]) + p["bhh_n"]))
        h_new = (1.0 - u) * n + u * h
        p_h = jnp.tanh(bdot(h_new, p["wp1"]) + p["bp1"])
        prm = bdot(p_h, p["wp2m"]) + p["bp2m"]
        prs = softplus(bdot(p_h, p["wp2s"]) + p["bp2s"]) + MIN_STD
        pz = prm + prs * epr
        return h_new, (z, pm, ps, recon, h_new, prm, prs, pz)

    _, outs = jax.lax.scan(step, h0,
                           (obs_seq, act_seq, eps_post_seq, eps_prior_seq))
    return outs


if __name__ == "__main__":
    key = jax.random.PRNGKey(0)
    k_obs, k_act, k_h0, k_ep, k_epr, k_par = jax.random.split(key, 6)

    obs_seq = jax.random.normal(k_obs, (T, B, INPUT_DIM), jnp.float32)
    act_seq = jax.random.normal(k_act, (T, B, ACTION_DIM), jnp.float32)
    h0 = jax.random.normal(k_h0, (B, HIDDEN_DIM), jnp.float32)
    eps_post = jax.random.normal(k_ep, (T, B, LATENT_DIM), jnp.float32)
    eps_prior = jax.random.normal(k_epr, (T, B, LATENT_DIM), jnp.float32)
    params = make_params(k_par)

    outs = rssm_forward(h0, obs_seq, act_seq, eps_post, eps_prior, params)
    outs = jax.block_until_ready(outs)

    refs = rssm_reference(h0, obs_seq, act_seq, eps_post, eps_prior, params)
    names = ["latent", "post_mean", "post_std", "recon",
             "hidden", "prior_mean", "prior_std", "prior_latent"]
    for name, o, r in zip(names, outs, refs):
        assert o.shape == r.shape and o.dtype == r.dtype, f"shape/dtype: {name}"
        # bf16 MXU operands -> tolerance loosened vs pure-f32 check
        assert jnp.allclose(o, r, atol=2e-2, rtol=2e-2), f"mismatch vs reference: {name}"

    print("KERNEL_OK")
</pallas_src>

<mosaic_0001>
module attributes {stable_mosaic.version = 11 : i64} {
  func.func @rssm_kernel(%arg0: i32, %arg1: memref<8x64xf32, #tpu.memory_space<vmem>>, %arg2: memref<1x8x32xf32, #tpu.memory_space<vmem>>, %arg3: memref<1x8x8xf32, #tpu.memory_space<vmem>>, %arg4: memref<1x8x32xf32, #tpu.memory_space<vmem>>, %arg5: memref<1x8x32xf32, #tpu.memory_space<vmem>>, %arg6: memref<32x128xbf16, #tpu.memory_space<vmem>>, %arg7: memref<64x128xbf16, #tpu.memory_space<vmem>>, %arg8: memref<1x128xf32, #tpu.memory_space<vmem>>, %arg9: memref<128x32xbf16, #tpu.memory_space<vmem>>, %arg10: memref<1x32xf32, #tpu.memory_space<vmem>>, %arg11: memref<128x32xbf16, #tpu.memory_space<vmem>>, %arg12: memref<1x32xf32, #tpu.memory_space<vmem>>, %arg13: memref<32x128xbf16, #tpu.memory_space<vmem>>, %arg14: memref<64x128xbf16, #tpu.memory_space<vmem>>, %arg15: memref<1x128xf32, #tpu.memory_space<vmem>>, %arg16: memref<128x32xbf16, #tpu.memory_space<vmem>>, %arg17: memref<1x32xf32, #tpu.memory_space<vmem>>, %arg18: memref<32x64xbf16, #tpu.memory_space<vmem>>, %arg19: memref<8x64xbf16, #tpu.memory_space<vmem>>, %arg20: memref<1x64xf32, #tpu.memory_space<vmem>>, %arg21: memref<64x64xbf16, #tpu.memory_space<vmem>>, %arg22: memref<64x64xbf16, #tpu.memory_space<vmem>>, %arg23: memref<64x64xbf16, #tpu.memory_space<vmem>>, %arg24: memref<1x64xf32, #tpu.memory_space<vmem>>, %arg25: memref<1x64xf32, #tpu.memory_space<vmem>>, %arg26: memref<1x64xf32, #tpu.memory_space<vmem>>, %arg27: memref<64x64xbf16, #tpu.memory_space<vmem>>, %arg28: memref<64x64xbf16, #tpu.memory_space<vmem>>, %arg29: memref<64x64xbf16, #tpu.memory_space<vmem>>, %arg30: memref<1x64xf32, #tpu.memory_space<vmem>>, %arg31: memref<1x64xf32, #tpu.memory_space<vmem>>, %arg32: memref<1x64xf32, #tpu.memory_space<vmem>>, %arg33: memref<64x128xbf16, #tpu.memory_space<vmem>>, %arg34: memref<1x128xf32, #tpu.memory_space<vmem>>, %arg35: memref<128x32xbf16, #tpu.memory_space<vmem>>, %arg36: memref<1x32xf32, #tpu.memory_space<vmem>>, %arg37: memref<128x32xbf16, #tpu.memory_space<vmem>>, %arg38: memref<1x32xf32, #tpu.memory_space<vmem>>, %arg39: memref<1x8x288xf32, #tpu.memory_space<vmem>>, %arg40: memref<8x64xf32, #tpu.memory_space<vmem>>) attributes {dimension_semantics = [#tpu.dimension_semantics<arbitrary>], iteration_bounds = array<i64: 8>, scalar_prefetch = 0 : i64, scratch_operands = 1 : i64, tpu.core_type = #tpu.core_type<tc>, window_params = [{pipeline_mode = #tpu.pipeline_mode<synchronous>, transform_indices = @transform_0, window_bounds = array<i64: 8, 64>}, {transform_indices = @transform_1, window_bounds = array<i64: 1, 8, 32>}, {transform_indices = @transform_2, window_bounds = array<i64: 1, 8, 8>}, {transform_indices = @transform_3, window_bounds = array<i64: 1, 8, 32>}, {transform_indices = @transform_4, window_bounds = array<i64: 1, 8, 32>}, {pipeline_mode = #tpu.pipeline_mode<synchronous>, transform_indices = @transform_5, window_bounds = array<i64: 32, 128>}, {pipeline_mode = #tpu.pipeline_mode<synchronous>, transform_indices = @transform_6, window_bounds = array<i64: 64, 128>}, {pipeline_mode = #tpu.pipeline_mode<synchronous>, transform_indices = @transform_7, window_bounds = array<i64: 1, 128>}, {pipeline_mode = #tpu.pipeline_mode<synchronous>, transform_indices = @transform_8, window_bounds = array<i64: 128, 32>}, {pipeline_mode = #tpu.pipeline_mode<synchronous>, transform_indices = @transform_9, window_bounds = array<i64: 1, 32>}, {pipeline_mode = #tpu.pipeline_mode<synchronous>, transform_indices = @transform_10, window_bounds = array<i64: 128, 32>}, {pipeline_mode = #tpu.pipeline_mode<synchronous>, transform_indices = @transform_11, window_bounds = array<i64: 1, 32>}, {pipeline_mode = #tpu.pipeline_mode<synchronous>, transform_indices = @transform_12, window_bounds = array<i64: 32, 128>}, {pipeline_mode = #tpu.pipeline_mode<synchronous>, transform_indices = @transform_13, window_bounds = array<i64: 64, 128>}, {pipeline_mode = #tpu.pipeline_mode<synchronous>, transform_indices = @transform_14, window_bounds = array<i64: 1, 128>}, {pipeline_mode = #tpu.pipeline_mode<synchronous>, transform_indices = @transform_15, window_bounds = array<i64: 128, 32>}, {pipeline_mode = #tpu.pipeline_mode<synchronous>, transform_indices = @transform_16, window_bounds = array<i64: 1, 32>}, {pipeline_mode = #tpu.pipeline_mode<synchronous>, transform_indices = @transform_17, window_bounds = array<i64: 32, 64>}, {pipeline_mode = #tpu.pipeline_mode<synchronous>, transform_indices = @transform_18, window_bounds = array<i64: 8, 64>}, {pipeline_mode = #tpu.pipeline_mode<synchronous>, transform_indices = @transform_19, window_bounds = array<i64: 1, 64>}, {pipeline_mode = #tpu.pipeline_mode<synchronous>, transform_indices = @transform_20, window_bounds = array<i64: 64, 64>}, {pipeline_mode = #tpu.pipeline_mode<synchronous>, transform_indices = @transform_21, window_bounds = array<i64: 64, 64>}, {pipeline_mode = #tpu.pipeline_mode<synchronous>, transform_indices = @transform_22, window_bounds = array<i64: 64, 64>}, {pipeline_mode = #tpu.pipeline_mode<synchronous>, transform_indices = @transform_23, window_bounds = array<i64: 1, 64>}, {pipeline_mode = #tpu.pipeline_mode<synchronous>, transform_indices = @transform_24, window_bounds = array<i64: 1, 64>}, {pipeline_mode = #tpu.pipeline_mode<synchronous>, transform_indices = @transform_25, window_bounds = array<i64: 1, 64>}, {pipeline_mode = #tpu.pipeline_mode<synchronous>, transform_indices = @transform_26, window_bounds = array<i64: 64, 64>}, {pipeline_mode = #tpu.pipeline_mode<synchronous>, transform_indices = @transform_27, window_bounds = array<i64: 64, 64>}, {pipeline_mode = #tpu.pipeline_mode<synchronous>, transform_indices = @transform_28, window_bounds = array<i64: 64, 64>}, {pipeline_mode = #tpu.pipeline_mode<synchronous>, transform_indices = @transform_29, window_bounds = array<i64: 1, 64>}, {pipeline_mode = #tpu.pipeline_mode<synchronous>, transform_indices = @transform_30, window_bounds = array<i64: 1, 64>}, {pipeline_mode = #tpu.pipeline_mode<synchronous>, transform_indices = @transform_31, window_bounds = array<i64: 1, 64>}, {pipeline_mode = #tpu.pipeline_mode<synchronous>, transform_indices = @transform_32, window_bounds = array<i64: 64, 128>}, {pipeline_mode = #tpu.pipeline_mode<synchronous>, transform_indices = @transform_33, window_bounds = array<i64: 1, 128>}, {pipeline_mode = #tpu.pipeline_mode<synchronous>, transform_indices = @transform_34, window_bounds = array<i64: 128, 32>}, {pipeline_mode = #tpu.pipeline_mode<synchronous>, transform_indices = @transform_35, window_bounds = array<i64: 1, 32>}, {pipeline_mode = #tpu.pipeline_mode<synchronous>, transform_indices = @transform_36, window_bounds = array<i64: 128, 32>}, {pipeline_mode = #tpu.pipeline_mode<synchronous>, transform_indices = @transform_37, window_bounds = array<i64: 1, 32>}, {transform_indices = @transform_38, window_bounds = array<i64: 1, 8, 288>}]} {
    %c0_i32 = arith.constant 0 : i32
    %0 = arith.cmpi eq, %arg0, %c0_i32 : i32
    %1 = arith.extui %0 : i1 to i32
    %c0_i32_0 = arith.constant 0 : i32
    %2 = arith.cmpi ne, %1, %c0_i32_0 : i32
    scf.if %2 {
      %c0_111 = arith.constant 0 : index
      %c0_112 = arith.constant 0 : index
      %158 = vector.load %arg1[%c0_111, %c0_112] : memref<8x64xf32, #tpu.memory_space<vmem>>, vector<8x64xf32>
      %c0_113 = arith.constant 0 : index
      %c0_114 = arith.constant 0 : index
      %159 = vector.load %arg40[%c0_113, %c0_114] : memref<8x64xf32, #tpu.memory_space<vmem>>, vector<8x64xf32>
      tpu.vector_store %arg40[%c0_113, %c0_114], %158 {strides = array<i32>} : memref<8x64xf32, #tpu.memory_space<vmem>>, vector<8x64xf32>,
    } else {
    }
    %c0 = arith.constant 0 : index
    %c0_1 = arith.constant 0 : index
    %3 = vector.load %arg40[%c0, %c0_1] : memref<8x64xf32, #tpu.memory_space<vmem>>, vector<8x64xf32>
    %4 = arith.truncf %3 : vector<8x64xf32> to vector<8x64xbf16>
    %c0_2 = arith.constant 0 : index
    %c0_3 = arith.constant 0 : index
    %c0_4 = arith.constant 0 : index
    %5 = vector.load %arg2[%c0_2, %c0_3, %c0_4] : memref<1x8x32xf32, #tpu.memory_space<vmem>>, vector<1x8x32xf32>
    %6 = vector.shape_cast %5 : vector<1x8x32xf32> to vector<8x32xf32>
    %7 = arith.truncf %6 : vector<8x32xf32> to vector<8x32xbf16>
    %c0_5 = arith.constant 0 : index
    %c0_6 = arith.constant 0 : index
    %c0_7 = arith.constant 0 : index
    %8 = vector.load %arg3[%c0_5, %c0_6, %c0_7] : memref<1x8x8xf32, #tpu.memory_space<vmem>>, vector<1x8x8xf32>
    %9 = vector.shape_cast %8 : vector<1x8x8xf32> to vector<8x8xf32>
    %10 = arith.truncf %9 : vector<8x8xf32> to vector<8x8xbf16>
    %c0_8 = arith.constant 0 : index
    %c0_9 = arith.constant 0 : index
    %c0_10 = arith.constant 0 : index
    %11 = vector.load %arg4[%c0_8, %c0_9, %c0_10] : memref<1x8x32xf32, #tpu.memory_space<vmem>>, vector<1x8x32xf32>
    %12 = vector.shape_cast %11 : vector<1x8x32xf32> to vector<8x32xf32>
    %c0_11 = arith.constant 0 : index
    %c0_12 = arith.constant 0 : index
    %c0_13 = arith.constant 0 : index
    %13 = vector.load %arg5[%c0_11, %c0_12, %c0_13] : memref<1x8x32xf32, #tpu.memory_space<vmem>>, vector<1x8x32xf32>
    %14 = vector.shape_cast %13 : vector<1x8x32xf32> to vector<8x32xf32>
    %c0_14 = arith.constant 0 : index
    %c0_15 = arith.constant 0 : index
    %15 = vector.load %arg6[%c0_14, %c0_15] : memref<32x128xbf16, #tpu.memory_space<vmem>>, vector<32x128xbf16>
    %cst = arith.constant dense<0.000000e+00> : vector<8x128xf32>
    %16 = tpu.matmul %7, %15, %cst {dimension_numbers = #tpu.dot_dimension_numbers<[1], [0], [0], [1], [0, 0, 1, 1], [], []>} : vector<8x32xbf16>, vector<32x128xbf16>, vector<8x128xf32> -> vector<8x128xf32>
    %c0_16 = arith.constant 0 : index
    %c0_17 = arith.constant 0 : index
    %17 = vector.load %arg7[%c0_16, %c0_17] : memref<64x128xbf16, #tpu.memory_space<vmem>>, vector<64x128xbf16>
    %cst_18 = arith.constant dense<0.000000e+00> : vector<8x128xf32>
    %18 = tpu.matmul %4, %17, %cst_18 {dimension_numbers = #tpu.dot_dimension_numbers<[1], [0], [0], [1], [0, 0, 1, 1], [], []>} : vector<8x64xbf16>, vector<64x128xbf16>, vector<8x128xf32> -> vector<8x128xf32>
    %19 = arith.addf %16, %18 : vector<8x128xf32>
    %c0_19 = arith.constant 0 : index
    %c0_20 = arith.constant 0 : index
    %20 = vector.load %arg8[%c0_19, %c0_20] : memref<1x128xf32, #tpu.memory_space<vmem>>, vector<1x128xf32>
    %21 = vector.broadcast %20 : vector<1x128xf32> to vector<8x128xf32>
    %22 = arith.addf %19, %21 : vector<8x128xf32>
    %23 = math.tanh %22 : vector<8x128xf32>
    %24 = arith.truncf %23 : vector<8x128xf32> to vector<8x128xbf16>
    %c0_21 = arith.constant 0 : index
    %c0_22 = arith.constant 0 : index
    %25 = vector.load %arg9[%c0_21, %c0_22] : memref<128x32xbf16, #tpu.memory_space<vmem>>, vector<128x32xbf16>
    %cst_23 = arith.constant dense<0.000000e+00> : vector<8x32xf32>
    %26 = tpu.matmul %24, %25, %cst_23 {dimension_numbers = #tpu.dot_dimension_numbers<[1], [0], [0], [1], [0, 0, 1, 1], [], []>} : vector<8x128xbf16>, vector<128x32xbf16>, vector<8x32xf32> -> vector<8x32xf32>
    %c0_24 = arith.constant 0 : index
    %c0_25 = arith.constant 0 : index
    %27 = vector.load %arg10[%c0_24, %c0_25] : memref<1x32xf32, #tpu.memory_space<vmem>>, vector<1x32xf32>
    %28 = vector.broadcast %27 : vector<1x32xf32> to vector<8x32xf32>
    %29 = arith.addf %26, %28 : vector<8x32xf32>
    %c0_26 = arith.constant 0 : index
    %c0_27 = arith.constant 0 : index
    %30 = vector.load %arg11[%c0_26, %c0_27] : memref<128x32xbf16, #tpu.memory_space<vmem>>, vector<128x32xbf16>
    %cst_28 = arith.constant dense<0.000000e+00> : vector<8x32xf32>
    %31 = tpu.matmul %24, %30, %cst_28 {dimension_numbers = #tpu.dot_dimension_numbers<[1], [0], [0], [1], [0, 0, 1, 1], [], []>} : vector<8x128xbf16>, vector<128x32xbf16>, vector<8x32xf32> -> vector<8x32xf32>
    %c0_29 = arith.constant 0 : index
    %c0_30 = arith.constant 0 : index
    %32 = vector.load %arg12[%c0_29, %c0_30] : memref<1x32xf32, #tpu.memory_space<vmem>>, vector<1x32xf32>
    %33 = vector.broadcast %32 : vector<1x32xf32> to vector<8x32xf32>
    %34 = arith.addf %31, %33 : vector<8x32xf32>
    %cst_31 = arith.constant 0.000000e+00 : f32
    %35 = vector.broadcast %cst_31 : f32 to vector<8x32xf32>
    %36 = arith.maximumf %34, %35 : vector<8x32xf32>
    %37 = math.absf %34 : vector<8x32xf32>
    %cst_32 = arith.constant 0.000000e+00 : f32
    %38 = vector.broadcast %cst_32 : f32 to vector<8x32xf32>
    %39 = arith.subf %38, %37 : vector<8x32xf32>
    %40 = math.exp %39 : vector<8x32xf32>
    %41 = math.log1p %40 : vector<8x32xf32>
    %42 = arith.addf %36, %41 : vector<8x32xf32>
    %cst_33 = arith.constant 1.000000e-01 : f32
    %43 = vector.broadcast %cst_33 : f32 to vector<8x32xf32>
    %44 = arith.addf %42, %43 : vector<8x32xf32>
    %45 = arith.mulf %44, %12 : vector<8x32xf32>
    %46 = arith.addf %29, %45 : vector<8x32xf32>
    %47 = arith.truncf %46 : vector<8x32xf32> to vector<8x32xbf16>
    %c0_34 = arith.constant 0 : index
    %c0_35 = arith.constant 0 : index
    %48 = vector.load %arg13[%c0_34, %c0_35] : memref<32x128xbf16, #tpu.memory_space<vmem>>, vector<32x128xbf16>
    %cst_36 = arith.constant dense<0.000000e+00> : vector<8x128xf32>
    %49 = tpu.matmul %47, %48, %cst_36 {dimension_numbers = #tpu.dot_dimension_numbers<[1], [0], [0], [1], [0, 0, 1, 1], [], []>} : vector<8x32xbf16>, vector<32x128xbf16>, vector<8x128xf32> -> vector<8x128xf32>
    %c0_37 = arith.constant 0 : index
    %c0_38 = arith.constant 0 : index
    %50 = vector.load %arg14[%c0_37, %c0_38] : memref<64x128xbf16, #tpu.memory_space<vmem>>, vector<64x128xbf16>
    %cst_39 = arith.constant dense<0.000000e+00> : vector<8x128xf32>
    %51 = tpu.matmul %4, %50, %cst_39 {dimension_numbers = #tpu.dot_dimension_numbers<[1], [0], [0], [1], [0, 0, 1, 1], [], []>} : vector<8x64xbf16>, vector<64x128xbf16>, vector<8x128xf32> -> vector<8x128xf32>
    %52 = arith.addf %49, %51 : vector<8x128xf32>
    %c0_40 = arith.constant 0 : index
    %c0_41 = arith.constant 0 : index
    %53 = vector.load %arg15[%c0_40, %c0_41] : memref<1x128xf32, #tpu.memory_space<vmem>>, vector<1x128xf32>
    %54 = vector.broadcast %53 : vector<1x128xf32> to vector<8x128xf32>
    %55 = arith.addf %52, %54 : vector<8x128xf32>
    %56 = math.tanh %55 : vector<8x128xf32>
    %57 = arith.truncf %56 : vector<8x128xf32> to vector<8x128xbf16>
    %c0_42 = arith.constant 0 : index
    %c0_43 = arith.constant 0 : index
    %58 = vector.load %arg16[%c0_42, %c0_43] : memref<128x32xbf16, #tpu.memory_space<vmem>>, vector<128x32xbf16>
    %cst_44 = arith.constant dense<0.000000e+00> : vector<8x32xf32>
    %59 = tpu.matmul %57, %58, %cst_44 {dimension_numbers = #tpu.dot_dimension_numbers<[1], [0], [0], [1], [0, 0, 1, 1], [], []>} : vector<8x128xbf16>, vector<128x32xbf16>, vector<8x32xf32> -> vector<8x32xf32>
    %c0_45 = arith.constant 0 : index
    %c0_46 = arith.constant 0 : index
    %60 = vector.load %arg17[%c0_45, %c0_46] : memref<1x32xf32, #tpu.memory_space<vmem>>, vector<1x32xf32>
    %61 = vector.broadcast %60 : vector<1x32xf32> to vector<8x32xf32>
    %62 = arith.addf %59, %61 : vector<8x32xf32>
    %c0_47 = arith.constant 0 : index
    %c0_48 = arith.constant 0 : index
    %63 = vector.load %arg18[%c0_47, %c0_48] : memref<32x64xbf16, #tpu.memory_space<vmem>>, vector<32x64xbf16>
    %cst_49 = arith.constant dense<0.000000e+00> : vector<8x64xf32>
    %64 = tpu.matmul %47, %63, %cst_49 {dimension_numbers = #tpu.dot_dimension_numbers<[1], [0], [0], [1], [0, 0, 1, 1], [], []>} : vector<8x32xbf16>, vector<32x64xbf16>, vector<8x64xf32> -> vector<8x64xf32>
    %c0_50 = arith.constant 0 : index
    %c0_51 = arith.constant 0 : index
    %65 = vector.load %arg19[%c0_50, %c0_51] : memref<8x64xbf16, #tpu.memory_space<vmem>>, vector<8x64xbf16>
    %cst_52 = arith.constant dense<0.000000e+00> : vector<8x64xf32>
    %66 = tpu.matmul %10, %65, %cst_52 {dimension_numbers = #tpu.dot_dimension_numbers<[1], [0], [0], [1], [0, 0, 1, 1], [], []>} : vector<8x8xbf16>, vector<8x64xbf16>, vector<8x64xf32> -> vector<8x64xf32>
    %67 = arith.addf %64, %66 : vector<8x64xf32>
    %c0_53 = arith.constant 0 : index
    %c0_54 = arith.constant 0 : index
    %68 = vector.load %arg20[%c0_53, %c0_54] : memref<1x64xf32, #tpu.memory_space<vmem>>, vector<1x64xf32>
    %69 = vector.broadcast %68 : vector<1x64xf32> to vector<8x64xf32>
    %70 = arith.addf %67, %69 : vector<8x64xf32>
    %71 = math.tanh %70 : vector<8x64xf32>
    %72 = arith.truncf %71 : vector<8x64xf32> to vector<8x64xbf16>
    %c0_55 = arith.constant 0 : index
    %c0_56 = arith.constant 0 : index
    %73 = vector.load %arg21[%c0_55, %c0_56] : memref<64x64xbf16, #tpu.memory_space<vmem>>, vector<64x64xbf16>
    %cst_57 = arith.constant dense<0.000000e+00> : vector<8x64xf32>
    %74 = tpu.matmul %72, %73, %cst_57 {dimension_numbers = #tpu.dot_dimension_numbers<[1], [0], [0], [1], [0, 0, 1, 1], [], []>} : vector<8x64xbf16>, vector<64x64xbf16>, vector<8x64xf32> -> vector<8x64xf32>
    %c0_58 = arith.constant 0 : index
    %c0_59 = arith.constant 0 : index
    %75 = vector.load %arg24[%c0_58, %c0_59] : memref<1x64xf32, #tpu.memory_space<vmem>>, vector<1x64xf32>
    %76 = vector.broadcast %75 : vector<1x64xf32> to vector<8x64xf32>
    %77 = arith.addf %74, %76 : vector<8x64xf32>
    %c0_60 = arith.constant 0 : index
    %c0_61 = arith.constant 0 : index
    %78 = vector.load %arg27[%c0_60, %c0_61] : memref<64x64xbf16, #tpu.memory_space<vmem>>, vector<64x64xbf16>
    %cst_62 = arith.constant dense<0.000000e+00> : vector<8x64xf32>
    %79 = tpu.matmul %4, %78, %cst_62 {dimension_numbers = #tpu.dot_dimension_numbers<[1], [0], [0], [1], [0, 0, 1, 1], [], []>} : vector<8x64xbf16>, vector<64x64xbf16>, vector<8x64xf32> -> vector<8x64xf32>
    %80 = arith.addf %77, %79 : vector<8x64xf32>
    %c0_63 = arith.constant 0 : index
    %c0_64 = arith.constant 0 : index
    %81 = vector.load %arg30[%c0_63, %c0_64] : memref<1x64xf32, #tpu.memory_space<vmem>>, vector<1x64xf32>
    %82 = vector.broadcast %81 : vector<1x64xf32> to vector<8x64xf32>
    %83 = arith.addf %80, %82 : vector<8x64xf32>
    %84 = arith.negf %83 : vector<8x64xf32>
    %85 = math.exp %84 : vector<8x64xf32>
    %cst_65 = arith.constant 1.000000e+00 : f32
    %86 = vector.broadcast %cst_65 : f32 to vector<8x64xf32>
    %87 = arith.addf %86, %85 : vector<8x64xf32>
    %88 = arith.divf %86, %87 : vector<8x64xf32>
    %c0_66 = arith.constant 0 : index
    %c0_67 = arith.constant 0 : index
    %89 = vector.load %arg22[%c0_66, %c0_67] : memref<64x64xbf16, #tpu.memory_space<vmem>>, vector<64x64xbf16>
    %cst_68 = arith.constant dense<0.000000e+00> : vector<8x64xf32>
    %90 = tpu.matmul %72, %89, %cst_68 {dimension_numbers = #tpu.dot_dimension_numbers<[1], [0], [0], [1], [0, 0, 1, 1], [], []>} : vector<8x64xbf16>, vector<64x64xbf16>, vector<8x64xf32> -> vector<8x64xf32>
    %c0_69 = arith.constant 0 : index
    %c0_70 = arith.constant 0 : index
    %91 = vector.load %arg25[%c0_69, %c0_70] : memref<1x64xf32, #tpu.memory_space<vmem>>, vector<1x64xf32>
    %92 = vector.broadcast %91 : vector<1x64xf32> to vector<8x64xf32>
    %93 = arith.addf %90, %92 : vector<8x64xf32>
    %c0_71 = arith.constant 0 : index
    %c0_72 = arith.constant 0 : index
    %94 = vector.load %arg28[%c0_71, %c0_72] : memref<64x64xbf16, #tpu.memory_space<vmem>>, vector<64x64xbf16>
    %cst_73 = arith.constant dense<0.000000e+00> : vector<8x64xf32>
    %95 = tpu.matmul %4, %94, %cst_73 {dimension_numbers = #tpu.dot_dimension_numbers<[1], [0], [0], [1], [0, 0, 1, 1], [], []>} : vector<8x64xbf16>, vector<64x64xbf16>, vector<8x64xf32> -> vector<8x64xf32>
    %96 = arith.addf %93, %95 : vector<8x64xf32>
    %c0_74 = arith.constant 0 : index
    %c0_75 = arith.constant 0 : index
    %97 = vector.load %arg31[%c0_74, %c0_75] : memref<1x64xf32, #tpu.memory_space<vmem>>, vector<1x64xf32>
    %98 = vector.broadcast %97 : vector<1x64xf32> to vector<8x64xf32>
    %99 = arith.addf %96, %98 : vector<8x64xf32>
    %100 = arith.negf %99 : vector<8x64xf32>
    %101 = math.exp %100 : vector<8x64xf32>
    %cst_76 = arith.constant 1.000000e+00 : f32
    %102 = vector.broadcast %cst_76 : f32 to vector<8x64xf32>
    %103 = arith.addf %102, %101 : vector<8x64xf32>
    %104 = arith.divf %102, %103 : vector<8x64xf32>
    %c0_77 = arith.constant 0 : index
    %c0_78 = arith.constant 0 : index
    %105 = vector.load %arg23[%c0_77, %c0_78] : memref<64x64xbf16, #tpu.memory_space<vmem>>, vector<64x64xbf16>
    %cst_79 = arith.constant dense<0.000000e+00> : vector<8x64xf32>
    %106 = tpu.matmul %72, %105, %cst_79 {dimension_numbers = #tpu.dot_dimension_numbers<[1], [0], [0], [1], [0, 0, 1, 1], [], []>} : vector<8x64xbf16>, vector<64x64xbf16>, vector<8x64xf32> -> vector<8x64xf32>
    %c0_80 = arith.constant 0 : index
    %c0_81 = arith.constant 0 : index
    %107 = vector.load %arg26[%c0_80, %c0_81] : memref<1x64xf32, #tpu.memory_space<vmem>>, vector<1x64xf32>
    %108 = vector.broadcast %107 : vector<1x64xf32> to vector<8x64xf32>
    %109 = arith.addf %106, %108 : vector<8x64xf32>
    %c0_82 = arith.constant 0 : index
    %c0_83 = arith.constant 0 : index
    %110 = vector.load %arg29[%c0_82, %c0_83] : memref<64x64xbf16, #tpu.memory_space<vmem>>, vector<64x64xbf16>
    %cst_84 = arith.constant dense<0.000000e+00> : vector<8x64xf32>
    %111 = tpu.matmul %4, %110, %cst_84 {dimension_numbers = #tpu.dot_dimension_numbers<[1], [0], [0], [1], [0, 0, 1, 1], [], []>} : vector<8x64xbf16>, vector<64x64xbf16>, vector<8x64xf32> -> vector<8x64xf32>
    %c0_85 = arith.constant 0 : index
    %c0_86 = arith.constant 0 : index
    %112 = vector.load %arg32[%c0_85, %c0_86] : memref<1x64xf32, #tpu.memory_space<vmem>>, vector<1x64xf32>
    %113 = vector.broadcast %112 : vector<1x64xf32> to vector<8x64xf32>
    %114 = arith.addf %111, %113 : vector<8x64xf32>
    %115 = arith.mulf %88, %114 : vector<8x64xf32>
    %116 = arith.addf %109, %115 : vector<8x64xf32>
    %117 = math.tanh %116 : vector<8x64xf32>
    %cst_87 = arith.constant 1.000000e+00 : f32
    %118 = vector.broadcast %cst_87 : f32 to vector<8x64xf32>
    %119 = arith.subf %118, %104 : vector<8x64xf32>
    %120 = arith.mulf %119, %117 : vector<8x64xf32>
    %121 = arith.mulf %104, %3 : vector<8x64xf32>
    %122 = arith.addf %120, %121 : vector<8x64xf32>
    %c0_88 = arith.constant 0 : index
    %c0_89 = arith.constant 0 : index
    %123 = vector.load %arg40[%c0_88, %c0_89] : memref<8x64xf32, #tpu.memory_space<vmem>>, vector<8x64xf32>
    tpu.vector_store %arg40[%c0_88, %c0_89], %122 {strides = array<i32>} : memref<8x64xf32, #tpu.memory_space<vmem>>, vector<8x64xf32>,
    %124 = arith.truncf %122 : vector<8x64xf32> to vector<8x64xbf16>
    %c0_90 = arith.constant 0 : index
    %c0_91 = arith.constant 0 : index
    %125 = vector.load %arg33[%c0_90, %c0_91] : memref<64x128xbf16, #tpu.memory_space<vmem>>, vector<64x128xbf16>
    %cst_92 = arith.constant dense<0.000000e+00> : vector<8x128xf32>
    %126 = tpu.matmul %124, %125, %cst_92 {dimension_numbers = #tpu.dot_dimension_numbers<[1], [0], [0], [1], [0, 0, 1, 1], [], []>} : vector<8x64xbf16>, vector<64x128xbf16>, vector<8x128xf32> -> vector<8x128xf32>
    %c0_93 = arith.constant 0 : index
    %c0_94 = arith.constant 0 : index
    %127 = vector.load %arg34[%c0_93, %c0_94] : memref<1x128xf32, #tpu.memory_space<vmem>>, vector<1x128xf32>
    %128 = vector.broadcast %127 : vector<1x128xf32> to vector<8x128xf32>
    %129 = arith.addf %126, %128 : vector<8x128xf32>
    %130 = math.tanh %129 : vector<8x128xf32>
    %131 = arith.truncf %130 : vector<8x128xf32> to vector<8x128xbf16>
    %c0_95 = arith.constant 0 : index
    %c0_96 = arith.constant 0 : index
    %132 = vector.load %arg35[%c0_95, %c0_96] : memref<128x32xbf16, #tpu.memory_space<vmem>>, vector<128x32xbf16>
    %cst_97 = arith.constant dense<0.000000e+00> : vector<8x32xf32>
    %133 = tpu.matmul %131, %132, %cst_97 {dimension_numbers = #tpu.dot_dimension_numbers<[1], [0], [0], [1], [0, 0, 1, 1], [], []>} : vector<8x128xbf16>, vector<128x32xbf16>, vector<8x32xf32> -> vector<8x32xf32>
    %c0_98 = arith.constant 0 : index
    %c0_99 = arith.constant 0 : index
    %134 = vector.load %arg36[%c0_98, %c0_99] : memref<1x32xf32, #tpu.memory_space<vmem>>, vector<1x32xf32>
    %135 = vector.broadcast %134 : vector<1x32xf32> to vector<8x32xf32>
    %136 = arith.addf %133, %135 : vector<8x32xf32>
    %c0_100 = arith.constant 0 : index
    %c0_101 = arith.constant 0 : index
    %137 = vector.load %arg37[%c0_100, %c0_101] : memref<128x32xbf16, #tpu.memory_space<vmem>>, vector<128x32xbf16>
    %cst_102 = arith.constant dense<0.000000e+00> : vector<8x32xf32>
    %138 = tpu.matmul %131, %137, %cst_102 {dimension_numbers = #tpu.dot_dimension_numbers<[1], [0], [0], [1], [0, 0, 1, 1], [], []>} : vector<8x128xbf16>, vector<128x32xbf16>, vector<8x32xf32> -> vector<8x32xf32>
    %c0_103 = arith.constant 0 : index
    %c0_104 = arith.constant 0 : index
    %139 = vector.load %arg38[%c0_103, %c0_104] : memref<1x32xf32, #tpu.memory_space<vmem>>, vector<1x32xf32>
    %140 = vector.broadcast %139 : vector<1x32xf32> to vector<8x32xf32>
    %141 = arith.addf %138, %140 : vector<8x32xf32>
    %cst_105 = arith.constant 0.000000e+00 : f32
    %142 = vector.broadcast %cst_105 : f32 to vector<8x32xf32>
    %143 = arith.maximumf %141, %142 : vector<8x32xf32>
    %144 = math.absf %141 : vector<8x32xf32>
    %cst_106 = arith.constant 0.000000e+00 : f32
    %145 = vector.broadcast %cst_106 : f32 to vector<8x32xf32>
    %146 = arith.subf %145, %144 : vector<8x32xf32>
    %147 = math.exp %146 : vector<8x32xf32>
    %148 = math.log1p %147 : vector<8x32xf32>
    %149 = arith.addf %143, %148 : vector<8x32xf32>
    %cst_107 = arith.constant 1.000000e-01 : f32
    %150 = vector.broadcast %cst_107 : f32 to vector<8x32xf32>
    %151 = arith.addf %149, %150 : vector<8x32xf32>
    %152 = arith.mulf %151, %14 : vector<8x32xf32>
    %153 = arith.addf %136, %152 : vector<8x32xf32>
    %154 = tpu.concatenate %46, %29, %44, %62, %122, %136, %151, %153 in 1 : vector<8x32xf32>, vector<8x32xf32>, vector<8x32xf32>, vector<8x32xf32>, vector<8x64xf32>, vector<8x32xf32>, vector<8x32xf32>, vector<8x32xf32> -> vector<8x288xf32>
    %c0_108 = arith.constant 0 : index
    %c0_109 = arith.constant 0 : index
    %c0_110 = arith.constant 0 : index
    %155 = vector.load %arg39[%c0_108, %c0_109, %c0_110] : memref<1x8x288xf32, #tpu.memory_space<vmem>>, vector<1x8x288xf32>
    %156 = vector.shape_cast %155 : vector<1x8x288xf32> to vector<8x288xf32>
    %157 = vector.shape_cast %154 : vector<8x288xf32> to vector<1x8x288xf32>
    tpu.vector_store %arg39[%c0_108, %c0_109, %c0_110], %157 {strides = array<i32>} : memref<1x8x288xf32, #tpu.memory_space<vmem>>, vector<1x8x288xf32>,
    return
  }
  func.func @transform_0(%arg0: i32) -> (i32, i32) {
    %c0_i32 = arith.constant 0 : i32
    %c0_i32_0 = arith.constant 0 : i32
    %c0_i32_1 = arith.constant 0 : i32
    return %c0_i32, %c0_i32_0 : i32, i32
  }
  func.func @transform_1(%arg0: i32) -> (i32, i32, i32) {
    %c0_i32 = arith.constant 0 : i32
    %c0_i32_0 = arith.constant 0 : i32
    %c0_i32_1 = arith.constant 0 : i32
    return %arg0, %c0_i32, %c0_i32_0 : i32, i32, i32
  }
  func.func @transform_2(%arg0: i32) -> (i32, i32, i32) {
    %c0_i32 = arith.constant 0 : i32
    %c0_i32_0 = arith.constant 0 : i32
    %c0_i32_1 = arith.constant 0 : i32
    return %arg0, %c0_i32, %c0_i32_0 : i32, i32, i32
  }
  func.func @transform_3(%arg0: i32) -> (i32, i32, i32) {
    %c0_i32 = arith.constant 0 : i32
    %c0_i32_0 = arith.constant 0 : i32
    %c0_i32_1 = arith.constant 0 : i32
    return %arg0, %c0_i32, %c0_i32_0 : i32, i32, i32
  }
  func.func @transform_4(%arg0: i32) -> (i32, i32, i32) {
    %c0_i32 = arith.constant 0 : i32
    %c0_i32_0 = arith.constant 0 : i32
    %c0_i32_1 = arith.constant 0 : i32
    return %arg0, %c0_i32, %c0_i32_0 : i32, i32, i32
  }
  func.func @transform_5(%arg0: i32) -> (i32, i32) {
    %c0_i32 = arith.constant 0 : i32
    %c0_i32_0 = arith.constant 0 : i32
    %c0_i32_1 = arith.constant 0 : i32
    return %c0_i32, %c0_i32_0 : i32, i32
  }
  func.func @transform_6(%arg0: i32) -> (i32, i32) {
    %c0_i32 = arith.constant 0 : i32
    %c0_i32_0 = arith.constant 0 : i32
    %c0_i32_1 = arith.constant 0 : i32
    return %c0_i32, %c0_i32_0 : i32, i32
  }
  func.func @transform_7(%arg0: i32) -> (i32, i32) {
    %c0_i32 = arith.constant 0 : i32
    %c0_i32_0 = arith.constant 0 : i32
    %c0_i32_1 = arith.constant 0 : i32
    return %c0_i32, %c0_i32_0 : i32, i32
  }
  func.func @transform_8(%arg0: i32) -> (i32, i32) {
    %c0_i32 = arith.constant 0 : i32
    %c0_i32_0 = arith.constant 0 : i32
    %c0_i32_1 = arith.constant 0 : i32
    return %c0_i32, %c0_i32_0 : i32, i32
  }
  func.func @transform_9(%arg0: i32) -> (i32, i32) {
    %c0_i32 = arith.constant 0 : i32
    %c0_i32_0 = arith.constant 0 : i32
    %c0_i32_1 = arith.constant 0 : i32
    return %c0_i32, %c0_i32_0 : i32, i32
  }
  func.func @transform_10(%arg0: i32) -> (i32, i32) {
    %c0_i32 = arith.constant 0 : i32
    %c0_i32_0 = arith.constant 0 : i32
    %c0_i32_1 = arith.constant 0 : i32
    return %c0_i32, %c0_i32_0 : i32, i32
  }
  func.func @transform_11(%arg0: i32) -> (i32, i32) {
    %c0_i32 = arith.constant 0 : i32
    %c0_i32_0 = arith.constant 0 : i32
    %c0_i32_1 = arith.constant 0 : i32
    return %c0_i32, %c0_i32_0 : i32, i32
  }
  func.func @transform_12(%arg0: i32) -> (i32, i32) {
    %c0_i32 = arith.constant 0 : i32
    %c0_i32_0 = arith.constant 0 : i32
    %c0_i32_1 = arith.constant 0 : i32
    return %c0_i32, %c0_i32_0 : i32, i32
  }
  func.func @transform_13(%arg0: i32) -> (i32, i32) {
    %c0_i32 = arith.constant 0 : i32
    %c0_i32_0 = arith.constant 0 : i32
    %c0_i32_1 = arith.constant 0 : i32
    return %c0_i32, %c0_i32_0 : i32, i32
  }
  func.func @transform_14(%arg0: i32) -> (i32, i32) {
    %c0_i32 = arith.constant 0 : i32
    %c0_i32_0 = arith.constant 0 : i32
    %c0_i32_1 = arith.constant 0 : i32
    return %c0_i32, %c0_i32_0 : i32, i32
  }
  func.func @transform_15(%arg0: i32) -> (i32, i32) {
    %c0_i32 = arith.constant 0 : i32
    %c0_i32_0 = arith.constant 0 : i32
    %c0_i32_1 = arith.constant 0 : i32
    return %c0_i32, %c0_i32_0 : i32, i32
  }
  func.func @transform_16(%arg0: i32) -> (i32, i32) {
    %c0_i32 = arith.constant 0 : i32
    %c0_i32_0 = arith.constant 0 : i32
    %c0_i32_1 = arith.constant 0 : i32
    return %c0_i32, %c0_i32_0 : i32, i32
  }
  func.func @transform_17(%arg0: i32) -> (i32, i32) {
    %c0_i32 = arith.constant 0 : i32
    %c0_i32_0 = arith.constant 0 : i32
    %c0_i32_1 = arith.constant 0 : i32
    return %c0_i32, %c0_i32_0 : i32, i32
  }
  func.func @transform_18(%arg0: i32) -> (i32, i32) {
    %c0_i32 = arith.constant 0 : i32
    %c0_i32_0 = arith.constant 0 : i32
    %c0_i32_1 = arith.constant 0 : i32
    return %c0_i32, %c0_i32_0 : i32, i32
  }
  func.func @transform_19(%arg0: i32) -> (i32, i32) {
    %c0_i32 = arith.constant 0 : i32
    %c0_i32_0 = arith.constant 0 : i32
    %c0_i32_1 = arith.constant 0 : i32
    return %c0_i32, %c0_i32_0 : i32, i32
  }
  func.func @transform_20(%arg0: i32) -> (i32, i32) {
    %c0_i32 = arith.constant 0 : i32
    %c0_i32_0 = arith.constant 0 : i32
    %c0_i32_1 = arith.constant 0 : i32
    return %c0_i32, %c0_i32_0 : i32, i32
  }
  func.func @transform_21(%arg0: i32) -> (i32, i32) {
    %c0_i32 = arith.constant 0 : i32
    %c0_i32_0 = arith.constant 0 : i32
    %c0_i32_1 = arith.constant 0 : i32
    return %c0_i32, %c0_i32_0 : i32, i32
  }
  func.func @transform_22(%arg0: i32) -> (i32, i32) {
    %c0_i32 = arith.constant 0 : i32
    %c0_i32_0 = arith.constant 0 : i32
    %c0_i32_1 = arith.constant 0 : i32
    return %c0_i32, %c0_i32_0 : i32, i32
  }
  func.func @transform_23(%arg0: i32) -> (i32, i32) {
    %c0_i32 = arith.constant 0 : i32
    %c0_i32_0 = arith.constant 0 : i32
    %c0_i32_1 = arith.constant 0 : i32
    return %c0_i32, %c0_i32_0 : i32, i32
  }
  func.func @transform_24(%arg0: i32) -> (i32, i32) {
    %c0_i32 = arith.constant 0 : i32
    %c0_i32_0 = arith.constant 0 : i32
    %c0_i32_1 = arith.constant 0 : i32
    return %c0_i32, %c0_i32_0 : i32, i32
  }
  func.func @transform_25(%arg0: i32) -> (i32, i32) {
    %c0_i32 = arith.constant 0 : i32
    %c0_i32_0 = arith.constant 0 : i32
    %c0_i32_1 = arith.constant 0 : i32
    return %c0_i32, %c0_i32_0 : i32, i32
  }
  func.func @transform_26(%arg0: i32) -> (i32, i32) {
    %c0_i32 = arith.constant 0 : i32
    %c0_i32_0 = arith.constant 0 : i32
    %c0_i32_1 = arith.constant 0 : i32
    return %c0_i32, %c0_i32_0 : i32, i32
  }
  func.func @transform_27(%arg0: i32) -> (i32, i32) {
    %c0_i32 = arith.constant 0 : i32
    %c0_i32_0 = arith.constant 0 : i32
    %c0_i32_1 = arith.constant 0 : i32
    return %c0_i32, %c0_i32_0 : i32, i32
  }
  func.func @transform_28(%arg0: i32) -> (i32, i32) {
    %c0_i32 = arith.constant 0 : i32
    %c0_i32_0 = arith.constant 0 : i32
    %c0_i32_1 = arith.constant 0 : i32
    return %c0_i32, %c0_i32_0 : i32, i32
  }
  func.func @transform_29(%arg0: i32) -> (i32, i32) {
    %c0_i32 = arith.constant 0 : i32
    %c0_i32_0 = arith.constant 0 : i32
    %c0_i32_1 = arith.constant 0 : i32
    return %c0_i32, %c0_i32_0 : i32, i32
  }
  func.func @transform_30(%arg0: i32) -> (i32, i32) {
    %c0_i32 = arith.constant 0 : i32
    %c0_i32_0 = arith.constant 0 : i32
    %c0_i32_1 = arith.constant 0 : i32
    return %c0_i32, %c0_i32_0 : i32, i32
  }
  func.func @transform_31(%arg0: i32) -> (i32, i32) {
    %c0_i32 = arith.constant 0 : i32
    %c0_i32_0 = arith.constant 0 : i32
    %c0_i32_1 = arith.constant 0 : i32
    return %c0_i32, %c0_i32_0 : i32, i32
  }
  func.func @transform_32(%arg0: i32) -> (i32, i32) {
    %c0_i32 = arith.constant 0 : i32
    %c0_i32_0 = arith.constant 0 : i32
    %c0_i32_1 = arith.constant 0 : i32
    return %c0_i32, %c0_i32_0 : i32, i32
  }
  func.func @transform_33(%arg0: i32) -> (i32, i32) {
    %c0_i32 = arith.constant 0 : i32
    %c0_i32_0 = arith.constant 0 : i32
    %c0_i32_1 = arith.constant 0 : i32
    return %c0_i32, %c0_i32_0 : i32, i32
  }
  func.func @transform_34(%arg0: i32) -> (i32, i32) {
    %c0_i32 = arith.constant 0 : i32
    %c0_i32_0 = arith.constant 0 : i32
    %c0_i32_1 = arith.constant 0 : i32
    return %c0_i32, %c0_i32_0 : i32, i32
  }
  func.func @transform_35(%arg0: i32) -> (i32, i32) {
    %c0_i32 = arith.constant 0 : i32
    %c0_i32_0 = arith.constant 0 : i32
    %c0_i32_1 = arith.constant 0 : i32
    return %c0_i32, %c0_i32_0 : i32, i32
  }
  func.func @transform_36(%arg0: i32) -> (i32, i32) {
    %c0_i32 = arith.constant 0 : i32
    %c0_i32_0 = arith.constant 0 : i32
    %c0_i32_1 = arith.constant 0 : i32
    return %c0_i32, %c0_i32_0 : i32, i32
  }
  func.func @transform_37(%arg0: i32) -> (i32, i32) {
    %c0_i32 = arith.constant 0 : i32
    %c0_i32_0 = arith.constant 0 : i32
    %c0_i32_1 = arith.constant 0 : i32
    return %c0_i32, %c0_i32_0 : i32, i32
  }
  func.func @transform_38(%arg0: i32) -> (i32, i32, i32) {
    %c0_i32 = arith.constant 0 : i32
    %c0_i32_0 = arith.constant 0 : i32
    %c0_i32_1 = arith.constant 0 : i32
    return %arg0, %c0_i32, %c0_i32_0 : i32, i32, i32
  }
}

</mosaic_0001>

<llo_original>
// kernel: rssm_forward.1
$region0: #{rssm_forward.1}
  #allocation0 [shape = 'u32[]', space=smem, size = 0x4, offset = 0x4, fixed_abs, tag = 'smem constant byte address 0x4 - core index']
  #allocation1 [shape = 'u32[72,128]{1,0:T(1,128)}', space=vmem, size = 0x9000, scoped, tag = 'internal scratch']
  #allocation2 [shape = 'f32[8,64]{1,0:T(8,128)}', space=vmem, size = 0x1000, scoped, tag = 'scratch operand']
  %s0 = inlined_call_operand.smem [shape: u32[39], index: -1, kind: input, shape index: {}]
  %s1 = sld [smem:[%s0]]
  %s2 = scalar_lea.smem %s0, 1
  %s3 = sld [smem:[%s2]]
  %s4 = scalar_lea.smem %s0, 2
  %s5 = sld [smem:[%s4]]
  %s6 = scalar_lea.smem %s0, 3
  %s7 = sld [smem:[%s6]]
  %s8 = scalar_lea.smem %s0, 4
  %s9 = sld [smem:[%s8]]
  %s10 = scalar_lea.smem %s0, 5
  %s11 = sld [smem:[%s10]]
  %s12 = scalar_lea.smem %s0, 6
  %s13 = sld [smem:[%s12]]
  %s14 = scalar_lea.smem %s0, 7
  %s15 = sld [smem:[%s14]]
  %s16 = scalar_lea.smem %s0, 8
  %s17 = sld [smem:[%s16]]
  %s18 = scalar_lea.smem %s0, 9
  %s19 = sld [smem:[%s18]]
  %s20 = scalar_lea.smem %s0, 10
  %s21 = sld [smem:[%s20]]
  %s22 = scalar_lea.smem %s0, 11
  %s23 = sld [smem:[%s22]]
  %s24 = scalar_lea.smem %s0, 12
  %s25 = sld [smem:[%s24]]
  %s26 = scalar_lea.smem %s0, 13
  %s27 = sld [smem:[%s26]]
  %s28 = scalar_lea.smem %s0, 14
  %s29 = sld [smem:[%s28]]
  %s30 = scalar_lea.smem %s0, 15
  %s31 = sld [smem:[%s30]]
  %s32 = scalar_lea.smem %s0, 16
  %s33 = sld [smem:[%s32]]
  %s34 = scalar_lea.smem %s0, 17
  %s35 = sld [smem:[%s34]]
  %s36 = scalar_lea.smem %s0, 18
  %s37 = sld [smem:[%s36]]
  %s38 = scalar_lea.smem %s0, 19
  %s39 = sld [smem:[%s38]]
  %s40 = scalar_lea.smem %s0, 20
  %s41 = sld [smem:[%s40]]
  %s42 = scalar_lea.smem %s0, 21
  %s43 = sld [smem:[%s42]]
  %s44 = scalar_lea.smem %s0, 22
  %s45 = sld [smem:[%s44]]
  %s46 = scalar_lea.smem %s0, 23
  %s47 = sld [smem:[%s46]]
  %s48 = scalar_lea.smem %s0, 24
  %s49 = sld [smem:[%s48]]
  %s50 = scalar_lea.smem %s0, 25
  %s51 = sld [smem:[%s50]]
  %s52 = scalar_lea.smem %s0, 26
  %s53 = sld [smem:[%s52]]
  %s54 = scalar_lea.smem %s0, 27
  %s55 = sld [smem:[%s54]]
  %s56 = scalar_lea.smem %s0, 28
  %s57 = sld [smem:[%s56]]
  %s58 = scalar_lea.smem %s0, 29
  %s59 = sld [smem:[%s58]]
  %s60 = scalar_lea.smem %s0, 30
  %s61 = sld [smem:[%s60]]
  %s62 = scalar_lea.smem %s0, 31
  %s63 = sld [smem:[%s62]]
  %s64 = scalar_lea.smem %s0, 32
  %s65 = sld [smem:[%s64]]
  %s66 = scalar_lea.smem %s0, 33
  %s67 = sld [smem:[%s66]]
  %s68 = scalar_lea.smem %s0, 34
  %s69 = sld [smem:[%s68]]
  %s70 = scalar_lea.smem %s0, 35
  %s71 = sld [smem:[%s70]]
  %s72 = scalar_lea.smem %s0, 36
  %s73 = sld [smem:[%s72]]
  %s74 = scalar_lea.smem %s0, 37
  %s75 = sld [smem:[%s74]]
  %s76 = scalar_lea.smem %s0, 38
  %s77 = sld [smem:[%s76]]
  %s78 = sld [smem:[#allocation0]]
  $region261: #{rssm_forward.1} parent=0
    _
  %s80 = ssub.s32 1, %s78
  %s81 = scalar_select 0, %s80, %s78
  $region1: #{rssm_forward.1} parent=0
    #allocation3 [shape = 'u8[8192]{0}', space=vmem, size = 0x2000, scoped, tag = 'input window, operand 12, single buffered']
    #allocation4 [shape = 's32[2]{0}', space=sflag, size = 0x8, scoped, tag = 'scoped memory for rssm_forward.1']
    #allocation5 [shape = 'u8[8192]{0}', space=vmem, size = 0x2000, scoped, tag = 'input window, operand 17, single buffered']
    #allocation6 [shape = 's32[1]{0}', space=sflag, size = 0x4, scoped, tag = 'scoped memory for rssm_forward.1']
    #allocation7 [shape = 'u8[2048]{0}', space=vmem, size = 0x800, scoped, tag = 'input window, operand 18, single buffered']
    #allocation8 [shape = 'u8[512]{0}', space=vmem, size = 0x400, scoped, tag = 'input window, operand 19, single buffered']
    #allocation9 [shape = 's32[1]{0}', space=sflag, size = 0x4, scoped, tag = 'scoped memory for rssm_forward.1']
    #allocation10 [shape = 'u8[16384]{0}', space=vmem, size = 0x4000, scoped, tag = 'input window, operand 20, single buffered']
    #allocation11 [shape = 'u8[16384]{0}', space=vmem, size = 0x4000, scoped, tag = 'input window, operand 21, single buffered']
    #allocation12 [shape = 's32[1]{0}', space=sflag, size = 0x4, scoped, tag = 'scoped memory for rssm_forward.1']
    #allocation13 [shape = 'u8[16384]{0}', space=vmem, size = 0x4000, scoped, tag = 'input window, operand 22, single buffered']
    #allocation14 [shape = 'u8[512]{0}', space=vmem, size = 0x400, scoped, tag = 'input window, operand 24, single buffered']
    #allocation15 [shape = 's32[1]{0}', space=sflag, size = 0x4, scoped, tag = 'scoped memory for rssm_forward.1']
    #allocation16 [shape = 'u8[512]{0}', space=vmem, size = 0x400, scoped, tag = 'input window, operand 25, single buffered']
    #allocation17 [shape = 'u8[16384]{0}', space=vmem, size = 0x4000, scoped, tag = 'input window, operand 26, single buffered']
    #allocation18 [shape = 's32[1]{0}', space=sflag, size = 0x4, scoped, tag = 'scoped memory for rssm_forward.1']
    #allocation19 [shape = 'u8[16384]{0}', space=vmem, size = 0x4000, scoped, tag = 'input window, operand 27, single buffered']
    #allocation20 [shape = 'u8[16384]{0}', space=vmem, size = 0x4000, scoped, tag = 'input window, operand 28, single buffered']
    #allocation21 [shape = 's32[1]{0}', space=sflag, size = 0x4, scoped, tag = 'scoped memory for rssm_forward.1']
    #allocation22 [shape = 'u8[512]{0}', space=vmem, size = 0x400, scoped, tag = 'input window, operand 30, single buffered']
    #allocation23 [shape = 'u8[512]{0}', space=vmem, size = 0x400, scoped, tag = 'input window, operand 31, single buffered']
    #allocation24 [shape = 's32[1]{0}', space=sflag, size = 0x4, scoped, tag = 'scoped memory for rssm_forward.1']
    #allocation25 [shape = 'u8[16384]{0}', space=vmem, size = 0x4000, scoped, tag = 'input window, operand 32, single buffered']
    #allocation26 [shape = 'u8[512]{0}', space=vmem, size = 0x400, scoped, tag = 'input window, operand 33, single buffered']
    #allocation27 [shape = 's32[1]{0}', space=sflag, size = 0x4, scoped, tag = 'scoped memory for rssm_forward.1']
    #allocation28 [shape = 'u8[512]{0}', space=vmem, size = 0x400, scoped, tag = 'input window, operand 35, single buffered']
    #allocation29 [shape = 'u8[512]{0}', space=vmem, size = 0x400, scoped, tag = 'input window, operand 37, single buffered']
    #allocation30 [shape = 's32[1]{0}', space=sflag, size = 0x4, scoped, tag = 'scoped memory for rssm_forward.1']
    %82 = vsyncpa [#allocation4], 0
    %83 = vsyncpa [#allocation6], 0
    %84 = vsyncpa [#allocation9], 0
    %85 = vsyncpa [#allocation12], 0
    %86 = vsyncpa [#allocation15], 0
    %87 = vsyncpa [#allocation18], 0
    %88 = vsyncpa [#allocation21], 0
    %89 = vsyncpa [#allocation24], 0
    %90 = vsyncpa [#allocation27], 0
    %91 = vsyncpa [#allocation30], 0
    loop: start=0, step=1, limit=10
    $region2: #{rssm_forward.1} parent=1 // loop_pre_header
      _
    $region3: #{rssm_forward.1} parent=1 // loop_header
      %s93 = sphi 0, %s97
      %p94 = scmp.ge.s32.totalorder %s93, 10
      %s101 = sphi 0, %s101
      %s103 = sphi 0, %s101
      %s104 = sphi 0, %s103
      %s118 = sphi 0, %s104
      %s124 = sphi 0, %s126
      %s127 = sphi 0, %s124
      %s128 = sphi 0, %s127
      %s144 = sphi 0, %s128
      %s150 = sphi 0, %s152
      %s153 = sphi 0, %s150
      %s154 = sphi 0, %s153
      %s170 = sphi 0, %s154
      %s176 = sphi 0, %s178
      %s179 = sphi 0, %s176
      %s180 = sphi 0, %s179
      %s196 = sphi 0, %s180
      %s202 = sphi 0, %s204
      %s205 = sphi 0, %s202
      %s206 = sphi 0, %s205
      %s222 = sphi 0, %s206
      %s226 = sphi 0, %s226
      %s228 = sphi 0, %s226
      %s229 = sphi 0, %s228
      %s243 = sphi 0, %s229
      %s247 = sphi 0, %s247
      %s249 = sphi 0, %s247
      %s250 = sphi 0, %s249
      %s264 = sphi 0, %s250
      %s268 = sphi 0, %s268
      %s270 = sphi 0, %s268
      %s271 = sphi 0, %s270
      %s285 = sphi 0, %s271
      %s289 = sphi 0, %s289
      %s291 = sphi 0, %s289
      %s292 = sphi 0, %s291
      %s306 = sphi 0, %s292
      %s310 = sphi 0, %s310
      %s312 = sphi 0, %s310
      %s313 = sphi 0, %s312
      %s327 = sphi 0, %s313
      %s331 = sphi 0, %s331
      %s333 = sphi 0, %s331
      %s334 = sphi 0, %s333
      %s348 = sphi 0, %s334
      %s352 = sphi 0, %s352
      %s354 = sphi 0, %s352
      %s355 = sphi 0, %s354
      %s369 = sphi 0, %s355
      %s373 = sphi 0, %s373
      %s375 = sphi 0, %s373
      %s376 = sphi 0, %s375
      %s390 = sphi 0, %s376
      %s394 = sphi 0, %s394
      %s396 = sphi 0, %s394
      %s397 = sphi 0, %s396
      %s411 = sphi 0, %s397
      %s415 = sphi 0, %s415
      %s417 = sphi 0, %s415
      %s418 = sphi 0, %s417
      %s432 = sphi 0, %s418
      %s436 = sphi 0, %s436
      %s438 = sphi 0, %s436
      %s439 = sphi 0, %s438
      %s453 = sphi 0, %s439
      %s457 = sphi 0, %s457
      %s459 = sphi 0, %s457
      %s460 = sphi 0, %s459
      %s474 = sphi 0, %s460
      %s478 = sphi 0, %s478
      %s480 = sphi 0, %s478
      %s481 = sphi 0, %s480
      %s495 = sphi 0, %s481
      %s499 = sphi 0, %s499
      %s501 = sphi 0, %s499
      %s502 = sphi 0, %s501
      %s516 = sphi 0, %s502
      %s520 = sphi 0, %s520
      %s522 = sphi 0, %s520
      %s523 = sphi 0, %s522
      %s537 = sphi 0, %s523
      %s541 = sphi 0, %s541
      %s543 = sphi 0, %s541
      %s544 = sphi 0, %s543
      %s558 = sphi 0, %s544
      %s562 = sphi 0, %s562
      %s564 = sphi 0, %s562
      %s565 = sphi 0, %s564
      %s579 = sphi 0, %s565
      %s583 = sphi 0, %s583
      %s585 = sphi 0, %s583
      %s586 = sphi 0, %s585
      %s600 = sphi 0, %s586
      %s604 = sphi 0, %s604
      %s606 = sphi 0, %s604
      %s607 = sphi 0, %s606
      %s621 = sphi 0, %s607
      %s625 = sphi 0, %s625
      %s627 = sphi 0, %s625
      %s628 = sphi 0, %s627
      %s642 = sphi 0, %s628
      %s646 = sphi 0, %s646
      %s648 = sphi 0, %s646
      %s649 = sphi 0, %s648
      %s663 = sphi 0, %s649
      %s667 = sphi 0, %s667
      %s669 = sphi 0, %s667
      %s670 = sphi 0, %s669
      %s684 = sphi 0, %s670
      %s688 = sphi 0, %s688
      %s690 = sphi 0, %s688
      %s691 = sphi 0, %s690
      %s705 = sphi 0, %s691
      %s709 = sphi 0, %s709
      %s711 = sphi 0, %s709
      %s712 = sphi 0, %s711
      %s726 = sphi 0, %s712
      %s730 = sphi 0, %s730
      %s732 = sphi 0, %s730
      %s733 = sphi 0, %s732
      %s747 = sphi 0, %s733
      %s751 = sphi 0, %s751
      %s753 = sphi 0, %s751
      %s754 = sphi 0, %s753
      %s768 = sphi 0, %s754
      %s772 = sphi 0, %s772
      %s774 = sphi 0, %s772
      %s775 = sphi 0, %s774
      %s789 = sphi 0, %s775
      %s793 = sphi 0, %s793
      %s795 = sphi 0, %s793
      %s796 = sphi 0, %s795
      %s810 = sphi 0, %s796
      %s814 = sphi 0, %s814
      %s816 = sphi 0, %s814
      %s817 = sphi 0, %s816
      %s831 = sphi 0, %s817
      %s835 = sphi 0, %s835
      %s837 = sphi 0, %s835
      %s838 = sphi 0, %s837
      %s852 = sphi 0, %s838
      %s856 = sphi 0, %s856
      %s858 = sphi 0, %s856
      %s859 = sphi 0, %s858
      %s873 = sphi 0, %s859
      %s877 = sphi 0, %s877
      %s879 = sphi 0, %s877
      %s880 = sphi 0, %s879
      %s894 = sphi 0, %s880
      %s898 = sphi 0, %s898
      %s900 = sphi 0, %s898
      %s901 = sphi 0, %s900
      %s915 = sphi 0, %s901
      %s921 = sphi 0, %s923
      %s924 = sphi 0, %s921
      %s925 = sphi 0, %s924
      %s941 = sphi 0, %s925
    $region4: #{rssm_forward.1} parent=1 // loop_header_branch
      %96 = sbr.rel (%p94) target = $region8
    $region5: #{rssm_forward.1} parent=1 // loop_body
      %s98 = ssub.s32 %s93, 1
      %s99 = ssub.s32 %s93, 2
      %s100 = sadd.s32 %s93, 1
      %s102 = sadd.s32 %s101, 1
      %p105 = scmp.eq.s32.totalorder %s93, 7
      %p106 = scmp.ne.s32.totalorder %s101, %s103
      %p107 = scmp.eq.s32.totalorder %s93, 0
      %p108 = por %p106, %p107
      %p109 = scmp.ne.s32.totalorder %s101, %s103
      %p110 = scmp.eq.s32.totalorder %s98, 7
      %p111 = por %p109, %p110
      %p112 = scmp.ne.s32.totalorder %s103, %s104
      %p113 = scmp.eq.s32.totalorder %s98, 0
      %p114 = por %p112, %p113
      %p115 = scmp.ne.s32.totalorder %s103, %s104
      %p116 = scmp.eq.s32.totalorder %s99, 7
      %p117 = por %p115, %p116
      %p119 = scmp.ne.s32.totalorder %s104, %s118
      %p120 = scmp.eq.s32.totalorder %s99, 0
      %p121 = por %p119, %p120
      %s122 = ssub.s32 %s93, %s100
      %p123 = scmp.eq.s32.totalorder %s122, 0
      %s125 = sadd.s32 %s124, 1
      %s126 = scalar_select %p123, %s124, %s125
      %p129 = pneg %p123
      %p130 = scmp.eq.s32.totalorder %s93, 7
      %p131 = por %p129, %p130
      %p132 = scmp.ne.s32.totalorder %s124, %s127
      %p133 = scmp.eq.s32.totalorder %s93, 0
      %p134 = por %p132, %p133
      %p135 = scmp.ne.s32.totalorder %s124, %s127
      %p136 = scmp.eq.s32.totalorder %s98, 7
      %p137 = por %p135, %p136
      %p138 = scmp.ne.s32.totalorder %s127, %s128
      %p139 = scmp.eq.s32.totalorder %s98, 0
      %p140 = por %p138, %p139
      %p141 = scmp.ne.s32.totalorder %s127, %s128
      %p142 = scmp.eq.s32.totalorder %s99, 7
      %p143 = por %p141, %p142
      %p145 = scmp.ne.s32.totalorder %s128, %s144
      %p146 = scmp.eq.s32.totalorder %s99, 0
      %p147 = por %p145, %p146
      %s148 = ssub.s32 %s93, %s100
      %p149 = scmp.eq.s32.totalorder %s148, 0
      %s151 = sadd.s32 %s150, 1
      %s152 = scalar_select %p149, %s150, %s151
      %p155 = pneg %p149
      %p156 = scmp.eq.s32.totalorder %s93, 7
      %p157 = por %p155, %p156
      %p158 = scmp.ne.s32.totalorder %s150, %s153
      %p159 = scmp.eq.s32.totalorder %s93, 0
      %p160 = por %p158, %p159
      %p161 = scmp.ne.s32.totalorder %s150, %s153
      %p162 = scmp.eq.s32.totalorder %s98, 7
      %p163 = por %p161, %p162
      %p164 = scmp.ne.s32.totalorder %s153, %s154
      %p165 = scmp.eq.s32.totalorder %s98, 0
      %p166 = por %p164, %p165
      %p167 = scmp.ne.s32.totalorder %s153, %s154
      %p168 = scmp.eq.s32.totalorder %s99, 7
      %p169 = por %p167, %p168
      %p171 = scmp.ne.s32.totalorder %s154, %s170
      %p172 = scmp.eq.s32.totalorder %s99, 0
      %p173 = por %p171, %p172
      %s174 = ssub.s32 %s93, %s100
      %p175 = scmp.eq.s32.totalorder %s174, 0
      %s177 = sadd.s32 %s176, 1
      %s178 = scalar_select %p175, %s176, %s177
      %p181 = pneg %p175
      %p182 = scmp.eq.s32.totalorder %s93, 7
      %p183 = por %p181, %p182
      %p184 = scmp.ne.s32.totalorder %s176, %s179
      %p185 = scmp.eq.s32.totalorder %s93, 0
      %p186 = por %p184, %p185
      %p187 = scmp.ne.s32.totalorder %s176, %s179
      %p188 = scmp.eq.s32.totalorder %s98, 7
      %p189 = por %p187, %p188
      %p190 = scmp.ne.s32.totalorder %s179, %s180
      %p191 = scmp.eq.s32.totalorder %s98, 0
      %p192 = por %p190, %p191
      %p193 = scmp.ne.s32.totalorder %s179, %s180
      %p194 = scmp.eq.s32.totalorder %s99, 7
      %p195 = por %p193, %p194
      %p197 = scmp.ne.s32.totalorder %s180, %s196
      %p198 = scmp.eq.s32.totalorder %s99, 0
      %p199 = por %p197, %p198
      %s200 = ssub.s32 %s93, %s100
      %p201 = scmp.eq.s32.totalorder %s200, 0
      %s203 = sadd.s32 %s202, 1
      %s204 = scalar_select %p201, %s202, %s203
      %p207 = pneg %p201
      %p208 = scmp.eq.s32.totalorder %s93, 7
      %p209 = por %p207, %p208
      %p210 = scmp.ne.s32.totalorder %s202, %s205
      %p211 = scmp.eq.s32.totalorder %s93, 0
      %p212 = por %p210, %p211
      %p213 = scmp.ne.s32.totalorder %s202, %s205
      %p214 = scmp.eq.s32.totalorder %s98, 7
      %p215 = por %p213, %p214
      %p216 = scmp.ne.s32.totalorder %s205, %s206
      %p217 = scmp.eq.s32.totalorder %s98, 0
      %p218 = por %p216, %p217
      %p219 = scmp.ne.s32.totalorder %s205, %s206
      %p220 = scmp.eq.s32.totalorder %s99, 7
      %p221 = por %p219, %p220
      %p223 = scmp.ne.s32.totalorder %s206, %s222
      %p224 = scmp.eq.s32.totalorder %s99, 0
      %p225 = por %p223, %p224
      %s227 = sadd.s32 %s226, 1
      %p230 = scmp.eq.s32.totalorder %s93, 7
      %p231 = scmp.ne.s32.totalorder %s226, %s228
      %p232 = scmp.eq.s32.totalorder %s93, 0
      %p233 = por %p231, %p232
      %p234 = scmp.ne.s32.totalorder %s226, %s228
      %p235 = scmp.eq.s32.totalorder %s98, 7
      %p236 = por %p234, %p235
      %p237 = scmp.ne.s32.totalorder %s228, %s229
      %p238 = scmp.eq.s32.totalorder %s98, 0
      %p239 = por %p237, %p238
      %p240 = scmp.ne.s32.totalorder %s228, %s229
      %p241 = scmp.eq.s32.totalorder %s99, 7
      %p242 = por %p240, %p241
      %p244 = scmp.ne.s32.totalorder %s229, %s243
      %p245 = scmp.eq.s32.totalorder %s99, 0
      %p246 = por %p244, %p245
      %s248 = sadd.s32 %s247, 1
      %p251 = scmp.eq.s32.totalorder %s93, 7
      %p252 = scmp.ne.s32.totalorder %s247, %s249
      %p253 = scmp.eq.s32.totalorder %s93, 0
      %p254 = por %p252, %p253
      %p255 = scmp.ne.s32.totalorder %s247, %s249
      %p256 = scmp.eq.s32.totalorder %s98, 7
      %p257 = por %p255, %p256
      %p258 = scmp.ne.s32.totalorder %s249, %s250
      %p259 = scmp.eq.s32.totalorder %s98, 0
      %p260 = por %p258, %p259
      %p261 = scmp.ne.s32.totalorder %s249, %s250
      %p262 = scmp.eq.s32.totalorder %s99, 7
      %p263 = por %p261, %p262
      %p265 = scmp.ne.s32.totalorder %s250, %s264
      %p266 = scmp.eq.s32.totalorder %s99, 0
      %p267 = por %p265, %p266
      %s269 = sadd.s32 %s268, 1
      %p272 = scmp.eq.s32.totalorder %s93, 7
      %p273 = scmp.ne.s32.totalorder %s268, %s270
      %p274 = scmp.eq.s32.totalorder %s93, 0
      %p275 = por %p273, %p274
      %p276 = scmp.ne.s32.totalorder %s268, %s270
      %p277 = scmp.eq.s32.totalorder %s98, 7
      %p278 = por %p276, %p277
      %p279 = scmp.ne.s32.totalorder %s270, %s271
      %p280 = scmp.eq.s32.totalorder %s98, 0
      %p281 = por %p279, %p280
      %p282 = scmp.ne.s32.totalorder %s270, %s271
      %p283 = scmp.eq.s32.totalorder %s99, 7
      %p284 = por %p282, %p283
      %p286 = scmp.ne.s32.totalorder %s271, %s285
      %p287 = scmp.eq.s32.totalorder %s99, 0
      %p288 = por %p286, %p287
      %s290 = sadd.s32 %s289, 1
      %p293 = scmp.eq.s32.totalorder %s93, 7
      %p294 = scmp.ne.s32.totalorder %s289, %s291
      %p295 = scmp.eq.s32.totalorder %s93, 0
      %p296 = por %p294, %p295
      %p297 = scmp.ne.s32.totalorder %s289, %s291
      %p298 = scmp.eq.s32.totalorder %s98, 7
      %p299 = por %p297, %p298
      %p300 = scmp.ne.s32.totalorder %s291, %s292
      %p301 = scmp.eq.s32.totalorder %s98, 0
      %p302 = por %p300, %p301
      %p303 = scmp.ne.s32.totalorder %s291, %s292
      %p304 = scmp.eq.s32.totalorder %s99, 7
      %p305 = por %p303, %p304
      %p307 = scmp.ne.s32.totalorder %s292, %s306
      %p308 = scmp.eq.s32.totalorder %s99, 0
      %p309 = por %p307, %p308
      %s311 = sadd.s32 %s310, 1
      %p314 = scmp.eq.s32.totalorder %s93, 7
      %p315 = scmp.ne.s32.totalorder %s310, %s312
      %p316 = scmp.eq.s32.totalorder %s93, 0
      %p317 = por %p315, %p316
      %p318 = scmp.ne.s32.totalorder %s310, %s312
      %p319 = scmp.eq.s32.totalorder %s98, 7
      %p320 = por %p318, %p319
      %p321 = scmp.ne.s32.totalorder %s312, %s313
      %p322 = scmp.eq.s32.totalorder %s98, 0
      %p323 = por %p321, %p322
      %p324 = scmp.ne.s32.totalorder %s312, %s313
      %p325 = scmp.eq.s32.totalorder %s99, 7
      %p326 = por %p324, %p325
      %p328 = scmp.ne.s32.totalorder %s313, %s327
      %p329 = scmp.eq.s32.totalorder %s99, 0
      %p330 = por %p328, %p329
      %s332 = sadd.s32 %s331, 1
      %p335 = scmp.eq.s32.totalorder %s93, 7
      %p336 = scmp.ne.s32.totalorder %s331, %s333
      %p337 = scmp.eq.s32.totalorder %s93, 0
      %p338 = por %p336, %p337
      %p339 = scmp.ne.s32.totalorder %s331, %s333
      %p340 = scmp.eq.s32.totalorder %s98, 7
      %p341 = por %p339, %p340
      %p342 = scmp.ne.s32.totalorder %s333, %s334
      %p343 = scmp.eq.s32.totalorder %s98, 0
      %p344 = por %p342, %p343
      %p345 = scmp.ne.s32.totalorder %s333, %s334
      %p346 = scmp.eq.s32.totalorder %s99, 7
      %p347 = por %p345, %p346
      %p349 = scmp.ne.s32.totalorder %s334, %s348
      %p350 = scmp.eq.s32.totalorder %s99, 0
      %p351 = por %p349, %p350
      %s353 = sadd.s32 %s352, 1
      %p356 = scmp.eq.s32.totalorder %s93, 7
      %p357 = scmp.ne.s32.totalorder %s352, %s354
      %p358 = scmp.eq.s32.totalorder %s93, 0
      %p359 = por %p357, %p358
      %p360 = scmp.ne.s32.totalorder %s352, %s354
      %p361 = scmp.eq.s32.totalorder %s98, 7
      %p362 = por %p360, %p361
      %p363 = scmp.ne.s32.totalorder %s354, %s355
      %p364 = scmp.eq.s32.totalorder %s98, 0
      %p365 = por %p363, %p364
      %p366 = scmp.ne.s32.totalorder %s354, %s355
      %p367 = scmp.eq.s32.totalorder %s99, 7
      %p368 = por %p366, %p367
      %p370 = scmp.ne.s32.totalorder %s355, %s369
      %p371 = scmp.eq.s32.totalorder %s99, 0
      %p372 = por %p370, %p371
      %s374 = sadd.s32 %s373, 1
      %p377 = scmp.eq.s32.totalorder %s93, 7
      %p378 = scmp.ne.s32.totalorder %s373, %s375
      %p379 = scmp.eq.s32.totalorder %s93, 0
      %p380 = por %p378, %p379
      %p381 = scmp.ne.s32.totalorder %s373, %s375
      %p382 = scmp.eq.s32.totalorder %s98, 7
      %p383 = por %p381, %p382
      %p384 = scmp.ne.s32.totalorder %s375, %s376
      %p385 = scmp.eq.s32.totalorder %s98, 0
      %p386 = por %p384, %p385
      %p387 = scmp.ne.s32.totalorder %s375, %s376
      %p388 = scmp.eq.s32.totalorder %s99, 7
      %p389 = por %p387, %p388
      %p391 = scmp.ne.s32.totalorder %s376, %s390
      %p392 = scmp.eq.s32.totalorder %s99, 0
      %p393 = por %p391, %p392
      %s395 = sadd.s32 %s394, 1
      %p398 = scmp.eq.s32.totalorder %s93, 7
      %p399 = scmp.ne.s32.totalorder %s394, %s396
      %p400 = scmp.eq.s32.totalorder %s93, 0
      %p401 = por %p399, %p400
      %p402 = scmp.ne.s32.totalorder %s394, %s396
      %p403 = scmp.eq.s32.totalorder %s98, 7
      %p404 = por %p402, %p403
      %p405 = scmp.ne.s32.totalorder %s396, %s397
      %p406 = scmp.eq.s32.totalorder %s98, 0
      %p407 = por %p405, %p406
      %p408 = scmp.ne.s32.totalorder %s396, %s397
      %p409 = scmp.eq.s32.totalorder %s99, 7
      %p410 = por %p408, %p409
      %p412 = scmp.ne.s32.totalorder %s397, %s411
      %p413 = scmp.eq.s32.totalorder %s99, 0
      %p414 = por %p412, %p413
      %s416 = sadd.s32 %s415, 1
      %p419 = scmp.eq.s32.totalorder %s93, 7
      %p420 = scmp.ne.s32.totalorder %s415, %s417
      %p421 = scmp.eq.s32.totalorder %s93, 0
      %p422 = por %p420, %p421
      %p423 = scmp.ne.s32.totalorder %s415, %s417
      %p424 = scmp.eq.s32.totalorder %s98, 7
      %p425 = por %p423, %p424
      %p426 = scmp.ne.s32.totalorder %s417, %s418
      %p427 = scmp.eq.s32.totalorder %s98, 0
      %p428 = por %p426, %p427
      %p429 = scmp.ne.s32.totalorder %s417, %s418
      %p430 = scmp.eq.s32.totalorder %s99, 7
      %p431 = por %p429, %p430
      %p433 = scmp.ne.s32.totalorder %s418, %s432
      %p434 = scmp.eq.s32.totalorder %s99, 0
      %p435 = por %p433, %p434
      %s437 = sadd.s32 %s436, 1
      %p440 = scmp.eq.s32.totalorder %s93, 7
      %p441 = scmp.ne.s32.totalorder %s436, %s438
      %p442 = scmp.eq.s32.totalorder %s93, 0
      %p443 = por %p441, %p442
      %p444 = scmp.ne.s32.totalorder %s436, %s438
      %p445 = scmp.eq.s32.totalorder %s98, 7
      %p446 = por %p444, %p445
      %p447 = scmp.ne.s32.totalorder %s438, %s439
      %p448 = scmp.eq.s32.totalorder %s98, 0
      %p449 = por %p447, %p448
      %p450 = scmp.ne.s32.totalorder %s438, %s439
      %p451 = scmp.eq.s32.totalorder %s99, 7
      %p452 = por %p450, %p451
      %p454 = scmp.ne.s32.totalorder %s439, %s453
      %p455 = scmp.eq.s32.totalorder %s99, 0
      %p456 = por %p454, %p455
      %s458 = sadd.s32 %s457, 1
      %p461 = scmp.eq.s32.totalorder %s93, 7
      %p462 = scmp.ne.s32.totalorder %s457, %s459
      %p463 = scmp.eq.s32.totalorder %s93, 0
      %p464 = por %p462, %p463
      %p465 = scmp.ne.s32.totalorder %s457, %s459
      %p466 = scmp.eq.s32.totalorder %s98, 7
      %p467 = por %p465, %p466
      %p468 = scmp.ne.s32.totalorder %s459, %s460
      %p469 = scmp.eq.s32.totalorder %s98, 0
      %p470 = por %p468, %p469
      %p471 = scmp.ne.s32.totalorder %s459, %s460
      %p472 = scmp.eq.s32.totalorder %s99, 7
      %p473 = por %p471, %p472
      %p475 = scmp.ne.s32.totalorder %s460, %s474
      %p476 = scmp.eq.s32.totalorder %s99, 0
      %p477 = por %p475, %p476
      %s479 = sadd.s32 %s478, 1
      %p482 = scmp.eq.s32.totalorder %s93, 7
      %p483 = scmp.ne.s32.totalorder %s478, %s480
      %p484 = scmp.eq.s32.totalorder %s93, 0
      %p485 = por %p483, %p484
      %p486 = scmp.ne.s32.totalorder %s478, %s480
      %p487 = scmp.eq.s32.totalorder %s98, 7
      %p488 = por %p486, %p487
      %p489 = scmp.ne.s32.totalorder %s480, %s481
      %p490 = scmp.eq.s32.totalorder %s98, 0
      %p491 = por %p489, %p490
      %p492 = scmp.ne.s32.totalorder %s480, %s481
      %p493 = scmp.eq.s32.totalorder %s99, 7
      %p494 = por %p492, %p493
      %p496 = scmp.ne.s32.totalorder %s481, %s495
      %p497 = scmp.eq.s32.totalorder %s99, 0
      %p498 = por %p496, %p497
      %s500 = sadd.s32 %s499, 1
      %p503 = scmp.eq.s32.totalorder %s93, 7
      %p504 = scmp.ne.s32.totalorder %s499, %s501
      %p505 = scmp.eq.s32.totalorder %s93, 0
      %p506 = por %p504, %p505
      %p507 = scmp.ne.s32.totalorder %s499, %s501
      %p508 = scmp.eq.s32.totalorder %s98, 7
      %p509 = por %p507, %p508
      %p510 = scmp.ne.s32.totalorder %s501, %s502
      %p511 = scmp.eq.s32.totalorder %s98, 0
      %p512 = por %p510, %p511
      %p513 = scmp.ne.s32.totalorder %s501, %s502
      %p514 = scmp.eq.s32.totalorder %s99, 7
      %p515 = por %p513, %p514
      %p517 = scmp.ne.s32.totalorder %s502, %s516
      %p518 = scmp.eq.s32.totalorder %s99, 0
      %p519 = por %p517, %p518
      %s521 = sadd.s32 %s520, 1
      %p524 = scmp.eq.s32.totalorder %s93, 7
      %p525 = scmp.ne.s32.totalorder %s520, %s522
      %p526 = scmp.eq.s32.totalorder %s93, 0
      %p527 = por %p525, %p526
      %p528 = scmp.ne.s32.totalorder %s520, %s522
      %p529 = scmp.eq.s32.totalorder %s98, 7
      %p530 = por %p528, %p529
      %p531 = scmp.ne.s32.totalorder %s522, %s523
      %p532 = scmp.eq.s32.totalorder %s98, 0
      %p533 = por %p531, %p532
      %p534 = scmp.ne.s32.totalorder %s522, %s523
      %p535 = scmp.eq.s32.totalorder %s99, 7
      %p536 = por %p534, %p535
      %p538 = scmp.ne.s32.totalorder %s523, %s537
      %p539 = scmp.eq.s32.totalorder %s99, 0
      %p540 = por %p538, %p539
      %s542 = sadd.s32 %s541, 1
      %p545 = scmp.eq.s32.totalorder %s93, 7
      %p546 = scmp.ne.s32.totalorder %s541, %s543
      %p547 = scmp.eq.s32.totalorder %s93, 0
      %p548 = por %p546, %p547
      %p549 = scmp.ne.s32.totalorder %s541, %s543
      %p550 = scmp.eq.s32.totalorder %s98, 7
      %p551 = por %p549, %p550
      %p552 = scmp.ne.s32.totalorder %s543, %s544
      %p553 = scmp.eq.s32.totalorder %s98, 0
      %p554 = por %p552, %p553
      %p555 = scmp.ne.s32.totalorder %s543, %s544
      %p556 = scmp.eq.s32.totalorder %s99, 7
      %p557 = por %p555, %p556
      %p559 = scmp.ne.s32.totalorder %s544, %s558
      %p560 = scmp.eq.s32.totalorder %s99, 0
      %p561 = por %p559, %p560
      %s563 = sadd.s32 %s562, 1
      %p566 = scmp.eq.s32.totalorder %s93, 7
      %p567 = scmp.ne.s32.totalorder %s562, %s564
      %p568 = scmp.eq.s32.totalorder %s93, 0
      %p569 = por %p567, %p568
      %p570 = scmp.ne.s32.totalorder %s562, %s564
      %p571 = scmp.eq.s32.totalorder %s98, 7
      %p572 = por %p570, %p571
      %p573 = scmp.ne.s32.totalorder %s564, %s565
      %p574 = scmp.eq.s32.totalorder %s98, 0
      %p575 = por %p573, %p574
      %p576 = scmp.ne.s32.totalorder %s564, %s565
      %p577 = scmp.eq.s32.totalorder %s99, 7
      %p578 = por %p576, %p577
      %p580 = scmp.ne.s32.totalorder %s565, %s579
      %p581 = scmp.eq.s32.totalorder %s99, 0
      %p582 = por %p580, %p581
      %s584 = sadd.s32 %s583, 1
      %p587 = scmp.eq.s32.totalorder %s93, 7
      %p588 = scmp.ne.s32.totalorder %s583, %s585
      %p589 = scmp.eq.s32.totalorder %s93, 0
      %p590 = por %p588, %p589
      %p591 = scmp.ne.s32.totalorder %s583, %s585
      %p592 = scmp.eq.s32.totalorder %s98, 7
      %p593 = por %p591, %p592
      %p594 = scmp.ne.s32.totalorder %s585, %s586
      %p595 = scmp.eq.s32.totalorder %s98, 0
      %p596 = por %p594, %p595
      %p597 = scmp.ne.s32.totalorder %s585, %s586
      %p598 = scmp.eq.s32.totalorder %s99, 7
      %p599 = por %p597, %p598
      %p601 = scmp.ne.s32.totalorder %s586, %s600
      %p602 = scmp.eq.s32.totalorder %s99, 0
      %p603 = por %p601, %p602
      %s605 = sadd.s32 %s604, 1
      %p608 = scmp.eq.s32.totalorder %s93, 7
      %p609 = scmp.ne.s32.totalorder %s604, %s606
      %p610 = scmp.eq.s32.totalorder %s93, 0
      %p611 = por %p609, %p610
      %p612 = scmp.ne.s32.totalorder %s604, %s606
      %p613 = scmp.eq.s32.totalorder %s98, 7
      %p614 = por %p612, %p613
      %p615 = scmp.ne.s32.totalorder %s606, %s607
      %p616 = scmp.eq.s32.totalorder %s98, 0
      %p617 = por %p615, %p616
      %p618 = scmp.ne.s32.totalorder %s606, %s607
      %p619 = scmp.eq.s32.totalorder %s99, 7
      %p620 = por %p618, %p619
      %p622 = scmp.ne.s32.totalorder %s607, %s621
      %p623 = scmp.eq.s32.totalorder %s99, 0
      %p624 = por %p622, %p623
      %s626 = sadd.s32 %s625, 1
      %p629 = scmp.eq.s32.totalorder %s93, 7
      %p630 = scmp.ne.s32.totalorder %s625, %s627
      %p631 = scmp.eq.s32.totalorder %s93, 0
      %p632 = por %p630, %p631
      %p633 = scmp.ne.s32.totalorder %s625, %s627
      %p634 = scmp.eq.s32.totalorder %s98, 7
      %p635 = por %p633, %p634
      %p636 = scmp.ne.s32.totalorder %s627, %s628
      %p637 = scmp.eq.s32.totalorder %s98, 0
      %p638 = por %p636, %p637
      %p639 = scmp.ne.s32.totalorder %s627, %s628
      %p640 = scmp.eq.s32.totalorder %s99, 7
      %p641 = por %p639, %p640
      %p643 = scmp.ne.s32.totalorder %s628, %s642
      %p644 = scmp.eq.s32.totalorder %s99, 0
      %p645 = por %p643, %p644
      %s647 = sadd.s32 %s646, 1
      %p650 = scmp.eq.s32.totalorder %s93, 7
      %p651 = scmp.ne.s32.totalorder %s646, %s648
      %p652 = scmp.eq.s32.totalorder %s93, 0
      %p653 = por %p651, %p652
      %p654 = scmp.ne.s32.totalorder %s646, %s648
      %p655 = scmp.eq.s32.totalorder %s98, 7
      %p656 = por %p654, %p655
      %p657 = scmp.ne.s32.totalorder %s648, %s649
      %p658 = scmp.eq.s32.totalorder %s98, 0
      %p659 = por %p657, %p658
      %p660 = scmp.ne.s32.totalorder %s648, %s649
      %p661 = scmp.eq.s32.totalorder %s99, 7
      %p662 = por %p660, %p661
      %p664 = scmp.ne.s32.totalorder %s649, %s663
      %p665 = scmp.eq.s32.totalorder %s99, 0
      %p666 = por %p664, %p665
      %s668 = sadd.s32 %s667, 1
      %p671 = scmp.eq.s32.totalorder %s93, 7
      %p672 = scmp.ne.s32.totalorder %s667, %s669
      %p673 = scmp.eq.s32.totalorder %s93, 0
      %p674 = por %p672, %p673
      %p675 = scmp.ne.s32.totalorder %s667, %s669
      %p676 = scmp.eq.s32.totalorder %s98, 7
      %p677 = por %p675, %p676
      %p678 = scmp.ne.s32.totalorder %s669, %s670
      %p679 = scmp.eq.s32.totalorder %s98, 0
      %p680 = por %p678, %p679
      %p681 = scmp.ne.s32.totalorder %s669, %s670
      %p682 = scmp.eq.s32.totalorder %s99, 7
      %p683 = por %p681, %p682
      %p685 = scmp.ne.s32.totalorder %s670, %s684
      %p686 = scmp.eq.s32.totalorder %s99, 0
      %p687 = por %p685, %p686
      %s689 = sadd.s32 %s688, 1
      %p692 = scmp.eq.s32.totalorder %s93, 7
      %p693 = scmp.ne.s32.totalorder %s688, %s690
      %p694 = scmp.eq.s32.totalorder %s93, 0
      %p695 = por %p693, %p694
      %p696 = scmp.ne.s32.totalorder %s688, %s690
      %p697 = scmp.eq.s32.totalorder %s98, 7
      %p698 = por %p696, %p697
      %p699 = scmp.ne.s32.totalorder %s690, %s691
      %p700 = scmp.eq.s32.totalorder %s98, 0
      %p701 = por %p699, %p700
      %p702 = scmp.ne.s32.totalorder %s690, %s691
      %p703 = scmp.eq.s32.totalorder %s99, 7
      %p704 = por %p702, %p703
      %p706 = scmp.ne.s32.totalorder %s691, %s705
      %p707 = scmp.eq.s32.totalorder %s99, 0
      %p708 = por %p706, %p707
      %s710 = sadd.s32 %s709, 1
      %p713 = scmp.eq.s32.totalorder %s93, 7
      %p714 = scmp.ne.s32.totalorder %s709, %s711
      %p715 = scmp.eq.s32.totalorder %s93, 0
      %p716 = por %p714, %p715
      %p717 = scmp.ne.s32.totalorder %s709, %s711
      %p718 = scmp.eq.s32.totalorder %s98, 7
      %p719 = por %p717, %p718
      %p720 = scmp.ne.s32.totalorder %s711, %s712
      %p721 = scmp.eq.s32.totalorder %s98, 0
      %p722 = por %p720, %p721
      %p723 = scmp.ne.s32.totalorder %s711, %s712
      %p724 = scmp.eq.s32.totalorder %s99, 7
      %p725 = por %p723, %p724
      %p727 = scmp.ne.s32.totalorder %s712, %s726
      %p728 = scmp.eq.s32.totalorder %s99, 0
      %p729 = por %p727, %p728
      %s731 = sadd.s32 %s730, 1
      %p734 = scmp.eq.s32.totalorder %s93, 7
      %p735 = scmp.ne.s32.totalorder %s730, %s732
      %p736 = scmp.eq.s32.totalorder %s93, 0
      %p737 = por %p735, %p736
      %p738 = scmp.ne.s32.totalorder %s730, %s732
      %p739 = scmp.eq.s32.totalorder %s98, 7
      %p740 = por %p738, %p739
      %p741 = scmp.ne.s32.totalorder %s732, %s733
      %p742 = scmp.eq.s32.totalorder %s98, 0
      %p743 = por %p741, %p742
      %p744 = scmp.ne.s32.totalorder %s732, %s733
      %p745 = scmp.eq.s32.totalorder %s99, 7
      %p746 = por %p744, %p745
      %p748 = scmp.ne.s32.totalorder %s733, %s747
      %p749 = scmp.eq.s32.totalorder %s99, 0
      %p750 = por %p748, %p749
      %s752 = sadd.s32 %s751, 1
      %p755 = scmp.eq.s32.totalorder %s93, 7
      %p756 = scmp.ne.s32.totalorder %s751, %s753
      %p757 = scmp.eq.s32.totalorder %s93, 0
      %p758 = por %p756, %p757
      %p759 = scmp.ne.s32.totalorder %s751, %s753
      %p760 = scmp.eq.s32.totalorder %s98, 7
      %p761 = por %p759, %p760
      %p762 = scmp.ne.s32.totalorder %s753, %s754
      %p763 = scmp.eq.s32.totalorder %s98, 0
      %p764 = por %p762, %p763
      %p765 = scmp.ne.s32.totalorder %s753, %s754
      %p766 = scmp.eq.s32.totalorder %s99, 7
      %p767 = por %p765, %p766
      %p769 = scmp.ne.s32.totalorder %s754, %s768
      %p770 = scmp.eq.s32.totalorder %s99, 0
      %p771 = por %p769, %p770
      %s773 = sadd.s32 %s772, 1
      %p776 = scmp.eq.s32.totalorder %s93, 7
      %p777 = scmp.ne.s32.totalorder %s772, %s774
      %p778 = scmp.eq.s32.totalorder %s93, 0
      %p779 = por %p777, %p778
      %p780 = scmp.ne.s32.totalorder %s772, %s774
      %p781 = scmp.eq.s32.totalorder %s98, 7
      %p782 = por %p780, %p781
      %p783 = scmp.ne.s32.totalorder %s774, %s775
      %p784 = scmp.eq.s32.totalorder %s98, 0
      %p785 = por %p783, %p784
      %p786 = scmp.ne.s32.totalorder %s774, %s775
      %p787 = scmp.eq.s32.totalorder %s99, 7
      %p788 = por %p786, %p787
      %p790 = scmp.ne.s32.totalorder %s775, %s789
      %p791 = scmp.eq.s32.totalorder %s99, 0
      %p792 = por %p790, %p791
      %s794 = sadd.s32 %s793, 1
      %p797 = scmp.eq.s32.totalorder %s93, 7
      %p798 = scmp.ne.s32.totalorder %s793, %s795
      %p799 = scmp.eq.s32.totalorder %s93, 0
      %p800 = por %p798, %p799
      %p801 = scmp.ne.s32.totalorder %s793, %s795
      %p802 = scmp.eq.s32.totalorder %s98, 7
      %p803 = por %p801, %p802
      %p804 = scmp.ne.s32.totalorder %s795, %s796
      %p805 = scmp.eq.s32.totalorder %s98, 0
      %p806 = por %p804, %p805
      %p807 = scmp.ne.s32.totalorder %s795, %s796
      %p808 = scmp.eq.s32.totalorder %s99, 7
      %p809 = por %p807, %p808
      %p811 = scmp.ne.s32.totalorder %s796, %s810
      %p812 = scmp.eq.s32.totalorder %s99, 0
      %p813 = por %p811, %p812
      %s815 = sadd.s32 %s814, 1
      %p818 = scmp.eq.s32.totalorder %s93, 7
      %p819 = scmp.ne.s32.totalorder %s814, %s816
      %p820 = scmp.eq.s32.totalorder %s93, 0
      %p821 = por %p819, %p820
      %p822 = scmp.ne.s32.totalorder %s814, %s816
      %p823 = scmp.eq.s32.totalorder %s98, 7
      %p824 = por %p822, %p823
      %p825 = scmp.ne.s32.totalorder %s816, %s817
      %p826 = scmp.eq.s32.totalorder %s98, 0
      %p827 = por %p825, %p826
      %p828 = scmp.ne.s32.totalorder %s816, %s817
      %p829 = scmp.eq.s32.totalorder %s99, 7
      %p830 = por %p828, %p829
      %p832 = scmp.ne.s32.totalorder %s817, %s831
      %p833 = scmp.eq.s32.totalorder %s99, 0
      %p834 = por %p832, %p833
      %s836 = sadd.s32 %s835, 1
      %p839 = scmp.eq.s32.totalorder %s93, 7
      %p840 = scmp.ne.s32.totalorder %s835, %s837
      %p841 = scmp.eq.s32.totalorder %s93, 0
      %p842 = por %p840, %p841
      %p843 = scmp.ne.s32.totalorder %s835, %s837
      %p844 = scmp.eq.s32.totalorder %s98, 7
      %p845 = por %p843, %p844
      %p846 = scmp.ne.s32.totalorder %s837, %s838
      %p847 = scmp.eq.s32.totalorder %s98, 0
      %p848 = por %p846, %p847
      %p849 = scmp.ne.s32.totalorder %s837, %s838
      %p850 = scmp.eq.s32.totalorder %s99, 7
      %p851 = por %p849, %p850
      %p853 = scmp.ne.s32.totalorder %s838, %s852
      %p854 = scmp.eq.s32.totalorder %s99, 0
      %p855 = por %p853, %p854
      %s857 = sadd.s32 %s856, 1
      %p860 = scmp.eq.s32.totalorder %s93, 7
      %p861 = scmp.ne.s32.totalorder %s856, %s858
      %p862 = scmp.eq.s32.totalorder %s93, 0
      %p863 = por %p861, %p862
      %p864 = scmp.ne.s32.totalorder %s856, %s858
      %p865 = scmp.eq.s32.totalorder %s98, 7
      %p866 = por %p864, %p865
      %p867 = scmp.ne.s32.totalorder %s858, %s859
      %p868 = scmp.eq.s32.totalorder %s98, 0
      %p869 = por %p867, %p868
      %p870 = scmp.ne.s32.totalorder %s858, %s859
      %p871 = scmp.eq.s32.totalorder %s99, 7
      %p872 = por %p870, %p871
      %p874 = scmp.ne.s32.totalorder %s859, %s873
      %p875 = scmp.eq.s32.totalorder %s99, 0
      %p876 = por %p874, %p875
      %s878 = sadd.s32 %s877, 1
      %p881 = scmp.eq.s32.totalorder %s93, 7
      %p882 = scmp.ne.s32.totalorder %s877, %s879
      %p883 = scmp.eq.s32.totalorder %s93, 0
      %p884 = por %p882, %p883
      %p885 = scmp.ne.s32.totalorder %s877, %s879
      %p886 = scmp.eq.s32.totalorder %s98, 7
      %p887 = por %p885, %p886
      %p888 = scmp.ne.s32.totalorder %s879, %s880
      %p889 = scmp.eq.s32.totalorder %s98, 0
      %p890 = por %p888, %p889
      %p891 = scmp.ne.s32.totalorder %s879, %s880
      %p892 = scmp.eq.s32.totalorder %s99, 7
      %p893 = por %p891, %p892
      %p895 = scmp.ne.s32.totalorder %s880, %s894
      %p896 = scmp.eq.s32.totalorder %s99, 0
      %p897 = por %p895, %p896
      %s899 = sadd.s32 %s898, 1
      %p902 = scmp.eq.s32.totalorder %s93, 7
      %p903 = scmp.ne.s32.totalorder %s898, %s900
      %p904 = scmp.eq.s32.totalorder %s93, 0
      %p905 = por %p903, %p904
      %p906 = scmp.ne.s32.totalorder %s898, %s900
      %p907 = scmp.eq.s32.totalorder %s98, 7
      %p908 = por %p906, %p907
      %p909 = scmp.ne.s32.totalorder %s900, %s901
      %p910 = scmp.eq.s32.totalorder %s98, 0
      %p911 = por %p909, %p910
      %p912 = scmp.ne.s32.totalorder %s900, %s901
      %p913 = scmp.eq.s32.totalorder %s99, 7
      %p914 = por %p912, %p913
      %p916 = scmp.ne.s32.totalorder %s901, %s915
      %p917 = scmp.eq.s32.totalorder %s99, 0
      %p918 = por %p916, %p917
      %s919 = ssub.s32 %s93, %s100
      %p920 = scmp.eq.s32.totalorder %s919, 0
      %s922 = sadd.s32 %s921, 1
      %s923 = scalar_select %p920, %s921, %s922
      %p926 = pneg %p920
      %p927 = scmp.eq.s32.totalorder %s93, 7
      %p928 = por %p926, %p927
      %p929 = scmp.ne.s32.totalorder %s921, %s924
      %p930 = scmp.eq.s32.totalorder %s93, 0
      %p931 = por %p929, %p930
      %p932 = scmp.ne.s32.totalorder %s921, %s924
      %p933 = scmp.eq.s32.totalorder %s98, 7
      %p934 = por %p932, %p933
      %p935 = scmp.ne.s32.totalorder %s924, %s925
      %p936 = scmp.eq.s32.totalorder %s98, 0
      %p937 = por %p935, %p936
      %p938 = scmp.ne.s32.totalorder %s924, %s925
      %p939 = scmp.eq.s32.totalorder %s99, 7
      %p940 = por %p938, %p939
      %p942 = scmp.ne.s32.totalorder %s925, %s941
      %p943 = scmp.eq.s32.totalorder %s99, 0
      %p944 = por %p942, %p943
      %p945 = scmp.le.s32.totalorder 1, %s93
      %p946 = scmp.lt.s32.totalorder %s93, 9
      %p947 = pnand %p945, %p946
      %p948 = pneg %p947
      // Predicated region
      $region9: #{rssm_forward.1} parent=5 // pred_check
        _
      $region10: #{rssm_forward.1} parent=5 // pred_check_branch
        %950 = sbr.rel (%p947) target = $region12
      $region11: #{rssm_forward.1} parent=5 // pred_region
        %s951 = ssub.s32 %s93, 1
        // Predicated region
        $region13: #{rssm_forward.1} parent=11 // pred_check
          %p952 = pneg %p114
        $region14: #{rssm_forward.1} parent=11 // pred_check_branch
          %954 = sbr.rel (%p952) target = $region16
        $region15: #{rssm_forward.1} parent=11 // pred_region
          _
        $region16: #{rssm_forward.1} parent=11 // pred_fallthru
          _
        // Predicated region
        $region17: #{rssm_forward.1} parent=11 // pred_check
          %p955 = pneg %p239
        $region18: #{rssm_forward.1} parent=11 // pred_check_branch
          %957 = sbr.rel (%p955) target = $region20
        $region19: #{rssm_forward.1} parent=11 // pred_region
          _
        $region20: #{rssm_forward.1} parent=11 // pred_fallthru
          _
        // Predicated region
        $region21: #{rssm_forward.1} parent=11 // pred_check
          %p958 = pneg %p260
        $region22: #{rssm_forward.1} parent=11 // pred_check_branch
          %960 = sbr.rel (%p958) target = $region24
        $region23: #{rssm_forward.1} parent=11 // pred_region
          _
        $region24: #{rssm_forward.1} parent=11 // pred_fallthru
          _
        // Predicated region
        $region25: #{rssm_forward.1} parent=11 // pred_check
          %p961 = pneg %p281
        $region26: #{rssm_forward.1} parent=11 // pred_check_branch
          %963 = sbr.rel (%p961) target = $region28
        $region27: #{rssm_forward.1} parent=11 // pred_region
          _
        $region28: #{rssm_forward.1} parent=11 // pred_fallthru
          _
        // Predicated region
        $region29: #{rssm_forward.1} parent=11 // pred_check
          %p964 = pneg %p302
        $region30: #{rssm_forward.1} parent=11 // pred_check_branch
          %966 = sbr.rel (%p964) target = $region32
        $region31: #{rssm_forward.1} parent=11 // pred_region
          _
        $region32: #{rssm_forward.1} parent=11 // pred_fallthru
          _
        // Predicated region
        $region33: #{rssm_forward.1} parent=11 // pred_check
          %p967 = pneg %p323
        $region34: #{rssm_forward.1} parent=11 // pred_check_branch
          %969 = sbr.rel (%p967) target = $region36
        $region35: #{rssm_forward.1} parent=11 // pred_region
          _
        $region36: #{rssm_forward.1} parent=11 // pred_fallthru
          _
        // Predicated region
        $region37: #{rssm_forward.1} parent=11 // pred_check
          %p970 = pneg %p344
        $region38: #{rssm_forward.1} parent=11 // pred_check_branch
          %972 = sbr.rel (%p970) target = $region40
        $region39: #{rssm_forward.1} parent=11 // pred_region
          _
        $region40: #{rssm_forward.1} parent=11 // pred_fallthru
          _
        // Predicated region
        $region41: #{rssm_forward.1} parent=11 // pred_check
          %p973 = pneg %p365
        $region42: #{rssm_forward.1} parent=11 // pred_check_branch
          %975 = sbr.rel (%p973) target = $region44
        $region43: #{rssm_forward.1} parent=11 // pred_region
          _
        $region44: #{rssm_forward.1} parent=11 // pred_fallthru
          _
        // Predicated region
        $region45: #{rssm_forward.1} parent=11 // pred_check
          %p976 = pneg %p386
        $region46: #{rssm_forward.1} parent=11 // pred_check_branch
          %978 = sbr.rel (%p976) target = $region48
        $region47: #{rssm_forward.1} parent=11 // pred_region
          %980 = vsyncadd [#allocation4], 0
          %s981 = sshll.u32 %s25, 4
          %s982 = int_to_ptr.hbm [resolvable:$true] %s981
          %s983 = sshll.u32 [#allocation3], 4
          %s984 = int_to_ptr.vmem [resolvable:$true] %s983
          %989 = dma.hbm_to_vmem [thread:$0]  %s982, 256, %s984, [#allocation4], 64, 64, 4
        $region48: #{rssm_forward.1} parent=11 // pred_fallthru
          _
        // Predicated region
        $region49: #{rssm_forward.1} parent=11 // pred_check
          %p990 = pneg %p407
        $region50: #{rssm_forward.1} parent=11 // pred_check_branch
          %992 = sbr.rel (%p990) target = $region52
        $region51: #{rssm_forward.1} parent=11 // pred_region
          _
        $region52: #{rssm_forward.1} parent=11 // pred_fallthru
          _
        // Predicated region
        $region53: #{rssm_forward.1} parent=11 // pred_check
          %p993 = pneg %p428
        $region54: #{rssm_forward.1} parent=11 // pred_check_branch
          %995 = sbr.rel (%p993) target = $region56
        $region55: #{rssm_forward.1} parent=11 // pred_region
          _
        $region56: #{rssm_forward.1} parent=11 // pred_fallthru
          _
        // Predicated region
        $region57: #{rssm_forward.1} parent=11 // pred_check
          %p996 = pneg %p449
        $region58: #{rssm_forward.1} parent=11 // pred_check_branch
          %998 = sbr.rel (%p996) target = $region60
        $region59: #{rssm_forward.1} parent=11 // pred_region
          _
        $region60: #{rssm_forward.1} parent=11 // pred_fallthru
          _
        // Predicated region
        $region61: #{rssm_forward.1} parent=11 // pred_check
          %p999 = pneg %p470
        $region62: #{rssm_forward.1} parent=11 // pred_check_branch
          %1001 = sbr.rel (%p999) target = $region64
        $region63: #{rssm_forward.1} parent=11 // pred_region
          _
        $region64: #{rssm_forward.1} parent=11 // pred_fallthru
          _
        // Predicated region
        $region65: #{rssm_forward.1} parent=11 // pred_check
          %p1002 = pneg %p491
        $region66: #{rssm_forward.1} parent=11 // pred_check_branch
          %1004 = sbr.rel (%p1002) target = $region68
        $region67: #{rssm_forward.1} parent=11 // pred_region
          %1006 = vsyncadd [#allocation6], 0
          %s1007 = sshll.u32 %s35, 4
          %s1008 = int_to_ptr.hbm [resolvable:$true] %s1007
          %s1009 = sshll.u32 [#allocation5], 4
          %s1010 = int_to_ptr.vmem [resolvable:$true] %s1009
          %1015 = dma.hbm_to_vmem [thread:$0]  %s1008, 256, %s1010, [#allocation6], 64, 64, 4
        $region68: #{rssm_forward.1} parent=11 // pred_fallthru
          _
        // Predicated region
        $region69: #{rssm_forward.1} parent=11 // pred_check
          %p1016 = pneg %p512
        $region70: #{rssm_forward.1} parent=11 // pred_check_branch
          %1018 = sbr.rel (%p1016) target = $region72
        $region71: #{rssm_forward.1} parent=11 // pred_region
          %1020 = vsyncadd [#allocation6], 0
          %s1022 = sshll.u32 %s37, 4
          %s1023 = int_to_ptr.hbm [resolvable:$true] %s1022
          %s1024 = sshll.u32 [#allocation7], 4
          %s1025 = int_to_ptr.vmem [resolvable:$true] %s1024
          %1027 = dma.hbm_to_vmem [thread:$0]  %s1023, 64, %s1025, [#allocation6]
        $region72: #{rssm_forward.1} parent=11 // pred_fallthru
          _
        // Predicated region
        $region73: #{rssm_forward.1} parent=11 // pred_check
          %p1028 = pneg %p533
        $region74: #{rssm_forward.1} parent=11 // pred_check_branch
          %1030 = sbr.rel (%p1028) target = $region76
        $region75: #{rssm_forward.1} parent=11 // pred_region
          %1032 = vsyncadd [#allocation9], 0
          %s1034 = sshll.u32 %s39, 4
          %s1035 = int_to_ptr.hbm [resolvable:$true] %s1034
          %s1036 = sshll.u32 [#allocation8], 4
          %s1037 = int_to_ptr.vmem [resolvable:$true] %s1036
          %1039 = dma.hbm_to_vmem [thread:$0]  %s1035, 16, %s1037, [#allocation9]
        $region76: #{rssm_forward.1} parent=11 // pred_fallthru
          _
        // Predicated region
        $region77: #{rssm_forward.1} parent=11 // pred_check
          %p1040 = pneg %p554
        $region78: #{rssm_forward.1} parent=11 // pred_check_branch
          %1042 = sbr.rel (%p1040) target = $region80
        $region79: #{rssm_forward.1} parent=11 // pred_region
          %1044 = vsyncadd [#allocation9], 0
          %s1045 = sshll.u32 %s41, 4
          %s1046 = int_to_ptr.hbm [resolvable:$true] %s1045
          %s1047 = sshll.u32 [#allocation10], 4
          %s1048 = int_to_ptr.vmem [resolvable:$true] %s1047
          %1053 = dma.hbm_to_vmem [thread:$0]  %s1046, 512, %s1048, [#allocation9], 64, 64, 4
        $region80: #{rssm_forward.1} parent=11 // pred_fallthru
          _
        // Predicated region
        $region81: #{rssm_forward.1} parent=11 // pred_check
          %p1054 = pneg %p575
        $region82: #{rssm_forward.1} parent=11 // pred_check_branch
          %1056 = sbr.rel (%p1054) target = $region84
        $region83: #{rssm_forward.1} parent=11 // pred_region
          %1058 = vsyncadd [#allocation12], 0
          %s1059 = sshll.u32 %s43, 4
          %s1060 = int_to_ptr.hbm [resolvable:$true] %s1059
          %s1061 = sshll.u32 [#allocation11], 4
          %s1062 = int_to_ptr.vmem [resolvable:$true] %s1061
          %1067 = dma.hbm_to_vmem [thread:$0]  %s1060, 512, %s1062, [#allocation12], 64, 64, 4
        $region84: #{rssm_forward.1} parent=11 // pred_fallthru
          _
        // Predicated region
        $region85: #{rssm_forward.1} parent=11 // pred_check
          %p1068 = pneg %p596
        $region86: #{rssm_forward.1} parent=11 // pred_check_branch
          %1070 = sbr.rel (%p1068) target = $region88
        $region87: #{rssm_forward.1} parent=11 // pred_region
          %1072 = vsyncadd [#allocation12], 0
          %s1073 = sshll.u32 %s45, 4
          %s1074 = int_to_ptr.hbm [resolvable:$true] %s1073
          %s1075 = sshll.u32 [#allocation13], 4
          %s1076 = int_to_ptr.vmem [resolvable:$true] %s1075
          %1081 = dma.hbm_to_vmem [thread:$0]  %s1074, 512, %s1076, [#allocation12], 64, 64, 4
        $region88: #{rssm_forward.1} parent=11 // pred_fallthru
          _
        // Predicated region
        $region89: #{rssm_forward.1} parent=11 // pred_check
          %p1082 = pneg %p617
        $region90: #{rssm_forward.1} parent=11 // pred_check_branch
          %1084 = sbr.rel (%p1082) target = $region92
        $region91: #{rssm_forward.1} parent=11 // pred_region
          _
        $region92: #{rssm_forward.1} parent=11 // pred_fallthru
          _
        // Predicated region
        $region93: #{rssm_forward.1} parent=11 // pred_check
          %p1085 = pneg %p638
        $region94: #{rssm_forward.1} parent=11 // pred_check_branch
          %1087 = sbr.rel (%p1085) target = $region96
        $region95: #{rssm_forward.1} parent=11 // pred_region
          %1089 = vsyncadd [#allocation15], 0
          %s1091 = sshll.u32 %s49, 4
          %s1092 = int_to_ptr.hbm [resolvable:$true] %s1091
          %s1093 = sshll.u32 [#allocation14], 4
          %s1094 = int_to_ptr.vmem [resolvable:$true] %s1093
          %1096 = dma.hbm_to_vmem [thread:$0]  %s1092, 16, %s1094, [#allocation15]
        $region96: #{rssm_forward.1} parent=11 // pred_fallthru
          _
        // Predicated region
        $region97: #{rssm_forward.1} parent=11 // pred_check
          %p1097 = pneg %p659
        $region98: #{rssm_forward.1} parent=11 // pred_check_branch
          %1099 = sbr.rel (%p1097) target = $region100
        $region99: #{rssm_forward.1} parent=11 // pred_region
          %1101 = vsyncadd [#allocation15], 0
          %s1103 = sshll.u32 %s51, 4
          %s1104 = int_to_ptr.hbm [resolvable:$true] %s1103
          %s1105 = sshll.u32 [#allocation16], 4
          %s1106 = int_to_ptr.vmem [resolvable:$true] %s1105
          %1108 = dma.hbm_to_vmem [thread:$0]  %s1104, 16, %s1106, [#allocation15]
        $region100: #{rssm_forward.1} parent=11 // pred_fallthru
          _
        // Predicated region
        $region101: #{rssm_forward.1} parent=11 // pred_check
          %p1109 = pneg %p680
        $region102: #{rssm_forward.1} parent=11 // pred_check_branch
          %1111 = sbr.rel (%p1109) target = $region104
        $region103: #{rssm_forward.1} parent=11 // pred_region
          %1113 = vsyncadd [#allocation18], 0
          %s1114 = sshll.u32 %s53, 4
          %s1115 = int_to_ptr.hbm [resolvable:$true] %s1114
          %s1116 = sshll.u32 [#allocation17], 4
          %s1117 = int_to_ptr.vmem [resolvable:$true] %s1116
          %1122 = dma.hbm_to_vmem [thread:$0]  %s1115, 512, %s1117, [#allocation18], 64, 64, 4
        $region104: #{rssm_forward.1} parent=11 // pred_fallthru
          _
        // Predicated region
        $region105: #{rssm_forward.1} parent=11 // pred_check
          %p1123 = pneg %p701
        $region106: #{rssm_forward.1} parent=11 // pred_check_branch
          %1125 = sbr.rel (%p1123) target = $region108
        $region107: #{rssm_forward.1} parent=11 // pred_region
          %1127 = vsyncadd [#allocation18], 0
          %s1128 = sshll.u32 %s55, 4
          %s1129 = int_to_ptr.hbm [resolvable:$true] %s1128
          %s1130 = sshll.u32 [#allocation19], 4
          %s1131 = int_to_ptr.vmem [resolvable:$true] %s1130
          %1136 = dma.hbm_to_vmem [thread:$0]  %s1129, 512, %s1131, [#allocation18], 64, 64, 4
        $region108: #{rssm_forward.1} parent=11 // pred_fallthru
          _
        // Predicated region
        $region109: #{rssm_forward.1} parent=11 // pred_check
          %p1137 = pneg %p722
        $region110: #{rssm_forward.1} parent=11 // pred_check_branch
          %1139 = sbr.rel (%p1137) target = $region112
        $region111: #{rssm_forward.1} parent=11 // pred_region
          %1141 = vsyncadd [#allocation21], 0
          %s1142 = sshll.u32 %s57, 4
          %s1143 = int_to_ptr.hbm [resolvable:$true] %s1142
          %s1144 = sshll.u32 [#allocation20], 4
          %s1145 = int_to_ptr.vmem [resolvable:$true] %s1144
          %1150 = dma.hbm_to_vmem [thread:$0]  %s1143, 512, %s1145, [#allocation21], 64, 64, 4
        $region112: #{rssm_forward.1} parent=11 // pred_fallthru
          _
        // Predicated region
        $region113: #{rssm_forward.1} parent=11 // pred_check
          %p1151 = pneg %p743
        $region114: #{rssm_forward.1} parent=11 // pred_check_branch
          %1153 = sbr.rel (%p1151) target = $region116
        $region115: #{rssm_forward.1} parent=11 // pred_region
          _
        $region116: #{rssm_forward.1} parent=11 // pred_fallthru
          _
        // Predicated region
        $region117: #{rssm_forward.1} parent=11 // pred_check
          %p1154 = pneg %p764
        $region118: #{rssm_forward.1} parent=11 // pred_check_branch
          %1156 = sbr.rel (%p1154) target = $region120
        $region119: #{rssm_forward.1} parent=11 // pred_region
          %1158 = vsyncadd [#allocation21], 0
          %s1160 = sshll.u32 %s61, 4
          %s1161 = int_to_ptr.hbm [resolvable:$true] %s1160
          %s1162 = sshll.u32 [#allocation22], 4
          %s1163 = int_to_ptr.vmem [resolvable:$true] %s1162
          %1165 = dma.hbm_to_vmem [thread:$0]  %s1161, 16, %s1163, [#allocation21]
        $region120: #{rssm_forward.1} parent=11 // pred_fallthru
          _
        // Predicated region
        $region121: #{rssm_forward.1} parent=11 // pred_check
          %p1166 = pneg %p785
        $region122: #{rssm_forward.1} parent=11 // pred_check_branch
          %1168 = sbr.rel (%p1166) target = $region124
        $region123: #{rssm_forward.1} parent=11 // pred_region
          %1170 = vsyncadd [#allocation24], 0
          %s1172 = sshll.u32 %s63, 4
          %s1173 = int_to_ptr.hbm [resolvable:$true] %s1172
          %s1174 = sshll.u32 [#allocation23], 4
          %s1175 = int_to_ptr.vmem [resolvable:$true] %s1174
          %1177 = dma.hbm_to_vmem [thread:$0]  %s1173, 16, %s1175, [#allocation24]
        $region124: #{rssm_forward.1} parent=11 // pred_fallthru
          _
        // Predicated region
        $region125: #{rssm_forward.1} parent=11 // pred_check
          %p1178 = pneg %p806
        $region126: #{rssm_forward.1} parent=11 // pred_check_branch
          %1180 = sbr.rel (%p1178) target = $region128
        $region127: #{rssm_forward.1} parent=11 // pred_region
          %1182 = vsyncadd [#allocation24], 0
          %s1183 = sshll.u32 %s65, 4
          %s1184 = int_to_ptr.hbm [resolvable:$true] %s1183
          %s1185 = sshll.u32 [#allocation25], 4
          %s1186 = int_to_ptr.vmem [resolvable:$true] %s1185
          %1191 = dma.hbm_to_vmem [thread:$0]  %s1184, 512, %s1186, [#allocation24], 64, 64, 4
        $region128: #{rssm_forward.1} parent=11 // pred_fallthru
          _
        // Predicated region
        $region129: #{rssm_forward.1} parent=11 // pred_check
          %p1192 = pneg %p827
        $region130: #{rssm_forward.1} parent=11 // pred_check_branch
          %1194 = sbr.rel (%p1192) target = $region132
        $region131: #{rssm_forward.1} parent=11 // pred_region
          %1196 = vsyncadd [#allocation27], 0
          %s1198 = sshll.u32 %s67, 4
          %s1199 = int_to_ptr.hbm [resolvable:$true] %s1198
          %s1200 = sshll.u32 [#allocation26], 4
          %s1201 = int_to_ptr.vmem [resolvable:$true] %s1200
          %1203 = dma.hbm_to_vmem [thread:$0]  %s1199, 16, %s1201, [#allocation27]
        $region132: #{rssm_forward.1} parent=11 // pred_fallthru
          _
        // Predicated region
        $region133: #{rssm_forward.1} parent=11 // pred_check
          %p1204 = pneg %p848
        $region134: #{rssm_forward.1} parent=11 // pred_check_branch
          %1206 = sbr.rel (%p1204) target = $region136
        $region135: #{rssm_forward.1} parent=11 // pred_region
          _
        $region136: #{rssm_forward.1} parent=11 // pred_fallthru
          _
        // Predicated region
        $region137: #{rssm_forward.1} parent=11 // pred_check
          %p1207 = pneg %p869
        $region138: #{rssm_forward.1} parent=11 // pred_check_branch
          %1209 = sbr.rel (%p1207) target = $region140
        $region139: #{rssm_forward.1} parent=11 // pred_region
          %1211 = vsyncadd [#allocation27], 0
          %s1213 = sshll.u32 %s71, 4
          %s1214 = int_to_ptr.hbm [resolvable:$true] %s1213
          %s1215 = sshll.u32 [#allocation28], 4
          %s1216 = int_to_ptr.vmem [resolvable:$true] %s1215
          %1218 = dma.hbm_to_vmem [thread:$0]  %s1214, 16, %s1216, [#allocation27]
        $region140: #{rssm_forward.1} parent=11 // pred_fallthru
          _
        // Predicated region
        $region141: #{rssm_forward.1} parent=11 // pred_check
          %p1219 = pneg %p890
        $region142: #{rssm_forward.1} parent=11 // pred_check_branch
          %1221 = sbr.rel (%p1219) target = $region144
        $region143: #{rssm_forward.1} parent=11 // pred_region
          _
        $region144: #{rssm_forward.1} parent=11 // pred_fallthru
          _
        // Predicated region
        $region145: #{rssm_forward.1} parent=11 // pred_check
          %p1222 = pneg %p911
        $region146: #{rssm_forward.1} parent=11 // pred_check_branch
          %1224 = sbr.rel (%p1222) target = $region148
        $region147: #{rssm_forward.1} parent=11 // pred_region
          %1226 = vsyncadd [#allocation30], 0
          %s1228 = sshll.u32 %s75, 4
          %s1229 = int_to_ptr.hbm [resolvable:$true] %s1228
          %s1230 = sshll.u32 [#allocation29], 4
          %s1231 = int_to_ptr.vmem [resolvable:$true] %s1230
          %1233 = dma.hbm_to_vmem [thread:$0]  %s1229, 16, %s1231, [#allocation30]
        $region148: #{rssm_forward.1} parent=11 // pred_fallthru
          _
      $region12: #{rssm_forward.1} parent=5 // pred_fallthru
        _
      %p1234 = scmp.lt.s32.totalorder %s93, 8
      // Predicated region
      $region149: #{rssm_forward.1} parent=5 // pred_check
        %p1235 = pneg %p1234
      $region150: #{rssm_forward.1} parent=5 // pred_check_branch
        %1237 = sbr.rel (%p1235) target = $region152
      $region151: #{rssm_forward.1} parent=5 // pred_region
        // Predicated region
        $region153: #{rssm_forward.1} parent=151 // pred_check
          %p1238 = pneg %p134
        $region154: #{rssm_forward.1} parent=151 // pred_check_branch
          %1240 = sbr.rel (%p1238) target = $region156
        $region155: #{rssm_forward.1} parent=151 // pred_region
          %p1241 = scmp.lt.s32.totalorder %s93, 7
          %s1242 = scalar_select %p1241, %s93, 7
          %s1243 = smul.addr %s1242, 8
          %s1244 = scalar_lea.vmem %s3, %s1243
        $region156: #{rssm_forward.1} parent=151 // pred_fallthru
          _
        // Predicated region
        $region157: #{rssm_forward.1} parent=151 // pred_check
          %p1245 = pneg %p160
        $region158: #{rssm_forward.1} parent=151 // pred_check_branch
          %1247 = sbr.rel (%p1245) target = $region160
        $region159: #{rssm_forward.1} parent=151 // pred_region
          %p1248 = scmp.lt.s32.totalorder %s93, 7
          %s1249 = scalar_select %p1248, %s93, 7
          %s1250 = smul.addr %s1249, 8
          %s1251 = scalar_lea.vmem %s5, %s1250
        $region160: #{rssm_forward.1} parent=151 // pred_fallthru
          _
        // Predicated region
        $region161: #{rssm_forward.1} parent=151 // pred_check
          %p1252 = pneg %p186
        $region162: #{rssm_forward.1} parent=151 // pred_check_branch
          %1254 = sbr.rel (%p1252) target = $region164
        $region163: #{rssm_forward.1} parent=151 // pred_region
          %p1255 = scmp.lt.s32.totalorder %s93, 7
          %s1256 = scalar_select %p1255, %s93, 7
          %s1257 = smul.addr %s1256, 8
          %s1258 = scalar_lea.vmem %s7, %s1257
        $region164: #{rssm_forward.1} parent=151 // pred_fallthru
          _
        // Predicated region
        $region165: #{rssm_forward.1} parent=151 // pred_check
          %p1259 = pneg %p212
        $region166: #{rssm_forward.1} parent=151 // pred_check_branch
          %1261 = sbr.rel (%p1259) target = $region168
        $region167: #{rssm_forward.1} parent=151 // pred_region
          %p1262 = scmp.lt.s32.totalorder %s93, 7
          %s1263 = scalar_select %p1262, %s93, 7
          %s1264 = smul.addr %s1263, 8
          %s1265 = scalar_lea.vmem %s9, %s1264
        $region168: #{rssm_forward.1} parent=151 // pred_fallthru
          _
      $region152: #{rssm_forward.1} parent=5 // pred_fallthru
        _
      %p1266 = scmp.le.s32.totalorder 1, %s93
      %p1267 = scmp.lt.s32.totalorder %s93, 9
      %p1268 = pnand %p1266, %p1267
      %p1269 = pneg %p1268
      // Predicated region
      $region169: #{rssm_forward.1} parent=5 // pred_check
        _
      $region170: #{rssm_forward.1} parent=5 // pred_check_branch
        %1271 = sbr.rel (%p1268) target = $region172
      $region171: #{rssm_forward.1} parent=5 // pred_region
        %s1272 = ssub.s32 %s93, 1
        // Predicated region
        $region173: #{rssm_forward.1} parent=171 // pred_check
          %p1273 = pneg %p386
        $region174: #{rssm_forward.1} parent=171 // pred_check_branch
          %1275 = sbr.rel (%p1273) target = $region176
        $region175: #{rssm_forward.1} parent=171 // pred_region
          %1277 = dma.done [#allocation4], 256
        $region176: #{rssm_forward.1} parent=171 // pred_fallthru
          _
        // Predicated region
        $region177: #{rssm_forward.1} parent=171 // pred_check
          %p1278 = pneg %p491
        $region178: #{rssm_forward.1} parent=171 // pred_check_branch
          %1280 = sbr.rel (%p1278) target = $region180
        $region179: #{rssm_forward.1} parent=171 // pred_region
          %1282 = dma.done [#allocation6], 256
        $region180: #{rssm_forward.1} parent=171 // pred_fallthru
          _
        // Predicated region
        $region181: #{rssm_forward.1} parent=171 // pred_check
          %p1283 = pneg %p512
        $region182: #{rssm_forward.1} parent=171 // pred_check_branch
          %1285 = sbr.rel (%p1283) target = $region184
        $region183: #{rssm_forward.1} parent=171 // pred_region
          %1287 = dma.done [#allocation6], 64
        $region184: #{rssm_forward.1} parent=171 // pred_fallthru
          _
        // Predicated region
        $region185: #{rssm_forward.1} parent=171 // pred_check
          %p1288 = pneg %p533
        $region186: #{rssm_forward.1} parent=171 // pred_check_branch
          %1290 = sbr.rel (%p1288) target = $region188
        $region187: #{rssm_forward.1} parent=171 // pred_region
          %1292 = dma.done [#allocation9], 16
        $region188: #{rssm_forward.1} parent=171 // pred_fallthru
          _
        // Predicated region
        $region189: #{rssm_forward.1} parent=171 // pred_check
          %p1293 = pneg %p554
        $region190: #{rssm_forward.1} parent=171 // pred_check_branch
          %1295 = sbr.rel (%p1293) target = $region192
        $region191: #{rssm_forward.1} parent=171 // pred_region
          %1297 = dma.done [#allocation9], 512
        $region192: #{rssm_forward.1} parent=171 // pred_fallthru
          _
        // Predicated region
        $region193: #{rssm_forward.1} parent=171 // pred_check
          %p1298 = pneg %p575
        $region194: #{rssm_forward.1} parent=171 // pred_check_branch
          %1300 = sbr.rel (%p1298) target = $region196
        $region195: #{rssm_forward.1} parent=171 // pred_region
          %1302 = dma.done [#allocation12], 512
        $region196: #{rssm_forward.1} parent=171 // pred_fallthru
          _
        // Predicated region
        $region197: #{rssm_forward.1} parent=171 // pred_check
          %p1303 = pneg %p596
        $region198: #{rssm_forward.1} parent=171 // pred_check_branch
          %1305 = sbr.rel (%p1303) target = $region200
        $region199: #{rssm_forward.1} parent=171 // pred_region
          %1307 = dma.done [#allocation12], 512
        $region200: #{rssm_forward.1} parent=171 // pred_fallthru
          _
        // Predicated region
        $region201: #{rssm_forward.1} parent=171 // pred_check
          %p1308 = pneg %p638
        $region202: #{rssm_forward.1} parent=171 // pred_check_branch
          %1310 = sbr.rel (%p1308) target = $region204
        $region203: #{rssm_forward.1} parent=171 // pred_region
          %1312 = dma.done [#allocation15], 16
        $region204: #{rssm_forward.1} parent=171 // pred_fallthru
          _
        // Predicated region
        $region205: #{rssm_forward.1} parent=171 // pred_check
          %p1313 = pneg %p659
        $region206: #{rssm_forward.1} parent=171 // pred_check_branch
          %1315 = sbr.rel (%p1313) target = $region208
        $region207: #{rssm_forward.1} parent=171 // pred_region
          %1317 = dma.done [#allocation15], 16
        $region208: #{rssm_forward.1} parent=171 // pred_fallthru
          _
        // Predicated region
        $region209: #{rssm_forward.1} parent=171 // pred_check
          %p1318 = pneg %p680
        $region210: #{rssm_forward.1} parent=171 // pred_check_branch
          %1320 = sbr.rel (%p1318) target = $region212
        $region211: #{rssm_forward.1} parent=171 // pred_region
          %1322 = dma.done [#allocation18], 512
        $region212: #{rssm_forward.1} parent=171 // pred_fallthru
          _
        // Predicated region
        $region213: #{rssm_forward.1} parent=171 // pred_check
          %p1323 = pneg %p701
        $region214: #{rssm_forward.1} parent=171 // pred_check_branch
          %1325 = sbr.rel (%p1323) target = $region216
        $region215: #{rssm_forward.1} parent=171 // pred_region
          %1327 = dma.done [#allocation18], 512
        $region216: #{rssm_forward.1} parent=171 // pred_fallthru
          _
        // Predicated region
        $region217: #{rssm_forward.1} parent=171 // pred_check
          %p1328 = pneg %p722
        $region218: #{rssm_forward.1} parent=171 // pred_check_branch
          %1330 = sbr.rel (%p1328) target = $region220
        $region219: #{rssm_forward.1} parent=171 // pred_region
          %1332 = dma.done [#allocation21], 512
        $region220: #{rssm_forward.1} parent=171 // pred_fallthru
          _
        // Predicated region
        $region221: #{rssm_forward.1} parent=171 // pred_check
          %p1333 = pneg %p764
        $region222: #{rssm_forward.1} parent=171 // pred_check_branch
          %1335 = sbr.rel (%p1333) target = $region224
        $region223: #{rssm_forward.1} parent=171 // pred_region
          %1337 = dma.done [#allocation21], 16
        $region224: #{rssm_forward.1} parent=171 // pred_fallthru
          _
        // Predicated region
        $region225: #{rssm_forward.1} parent=171 // pred_check
          %p1338 = pneg %p785
        $region226: #{rssm_forward.1} parent=171 // pred_check_branch
          %1340 = sbr.rel (%p1338) target = $region228
        $region227: #{rssm_forward.1} parent=171 // pred_region
          %1342 = dma.done [#allocation24], 16
        $region228: #{rssm_forward.1} parent=171 // pred_fallthru
          _
        // Predicated region
        $region229: #{rssm_forward.1} parent=171 // pred_check
          %p1343 = pneg %p806
        $region230: #{rssm_forward.1} parent=171 // pred_check_branch
          %1345 = sbr.rel (%p1343) target = $region232
        $region231: #{rssm_forward.1} parent=171 // pred_region
          %1347 = dma.done [#allocation24], 512
        $region232: #{rssm_forward.1} parent=171 // pred_fallthru
          _
        // Predicated region
        $region233: #{rssm_forward.1} parent=171 // pred_check
          %p1348 = pneg %p827
        $region234: #{rssm_forward.1} parent=171 // pred_check_branch
          %1350 = sbr.rel (%p1348) target = $region236
        $region235: #{rssm_forward.1} parent=171 // pred_region
          %1352 = dma.done [#allocation27], 16
        $region236: #{rssm_forward.1} parent=171 // pred_fallthru
          _
        // Predicated region
        $region237: #{rssm_forward.1} parent=171 // pred_check
          %p1353 = pneg %p869
        $region238: #{rssm_forward.1} parent=171 // pred_check_branch
          %1355 = sbr.rel (%p1353) target = $region240
        $region239: #{rssm_forward.1} parent=171 // pred_region
          %1357 = dma.done [#allocation27], 16
        $region240: #{rssm_forward.1} parent=171 // pred_fallthru
          _
        // Predicated region
        $region241: #{rssm_forward.1} parent=171 // pred_check
          %p1358 = pneg %p911
        $region242: #{rssm_forward.1} parent=171 // pred_check_branch
          %1360 = sbr.rel (%p1358) target = $region244
        $region243: #{rssm_forward.1} parent=171 // pred_region
          %1362 = dma.done [#allocation30], 16
        $region244: #{rssm_forward.1} parent=171 // pred_fallthru
          _
        %p1363 = pneg %p114
        %p1364 = pneg %p111
        %p1365 = scmp.lt.s32.totalorder %s98, 7
        %s1366 = scalar_select %p1365, %s98, 7
        %s1367 = smul.addr %s1366, 8
        %s1368 = scalar_lea.vmem %s3, %s1367
        %p1369 = pneg %p140
        %p1370 = pneg %p137
        %p1371 = scmp.lt.s32.totalorder %s98, 7
        %s1372 = scalar_select %p1371, %s98, 7
        %s1373 = smul.addr %s1372, 8
        %s1374 = scalar_lea.vmem %s5, %s1373
        %p1375 = pneg %p166
        %p1376 = pneg %p163
        %p1377 = scmp.lt.s32.totalorder %s98, 7
        %s1378 = scalar_select %p1377, %s98, 7
        %s1379 = smul.addr %s1378, 8
        %s1380 = scalar_lea.vmem %s7, %s1379
        %p1381 = pneg %p192
        %p1382 = pneg %p189
        %p1383 = scmp.lt.s32.totalorder %s98, 7
        %s1384 = scalar_select %p1383, %s98, 7
        %s1385 = smul.addr %s1384, 8
        %s1386 = scalar_lea.vmem %s9, %s1385
        %p1387 = pneg %p218
        %p1388 = pneg %p215
        %p1389 = pneg %p239
        %p1390 = pneg %p236
        %p1391 = pneg %p260
        %p1392 = pneg %p257
        %p1393 = pneg %p281
        %p1394 = pneg %p278
        %p1395 = pneg %p302
        %p1396 = pneg %p299
        %p1397 = pneg %p323
        %p1398 = pneg %p320
        %p1399 = pneg %p344
        %p1400 = pneg %p341
        %p1401 = pneg %p365
        %p1402 = pneg %p362
        %p1403 = pneg %p386
        %p1404 = pneg %p383
        %p1405 = pneg %p407
        %p1406 = pneg %p404
        %p1407 = pneg %p428
        %p1408 = pneg %p425
        %p1409 = pneg %p449
        %p1410 = pneg %p446
        %p1411 = pneg %p470
        %p1412 = pneg %p467
        %p1413 = pneg %p491
        %p1414 = pneg %p488
        %p1415 = pneg %p512
        %p1416 = pneg %p509
        %p1417 = pneg %p533
        %p1418 = pneg %p530
        %p1419 = pneg %p554
        %p1420 = pneg %p551
        %p1421 = pneg %p575
        %p1422 = pneg %p572
        %p1423 = pneg %p596
        %p1424 = pneg %p593
        %p1425 = pneg %p617
        %p1426 = pneg %p614
        %p1427 = pneg %p638
        %p1428 = pneg %p635
        %p1429 = pneg %p659
        %p1430 = pneg %p656
        %p1431 = pneg %p680
        %p1432 = pneg %p677
        %p1433 = pneg %p701
        %p1434 = pneg %p698
        %p1435 = pneg %p722
        %p1436 = pneg %p719
        %p1437 = pneg %p743
        %p1438 = pneg %p740
        %p1439 = pneg %p764
        %p1440 = pneg %p761
        %p1441 = pneg %p785
        %p1442 = pneg %p782
        %p1443 = pneg %p806
        %p1444 = pneg %p803
        %p1445 = pneg %p827
        %p1446 = pneg %p824
        %p1447 = pneg %p848
        %p1448 = pneg %p845
        %p1449 = pneg %p869
        %p1450 = pneg %p866
        %p1451 = pneg %p890
        %p1452 = pneg %p887
        %p1453 = pneg %p911
        %p1454 = pneg %p908
        %p1455 = pneg %p937
        %p1456 = pneg %p934
        %p1457 = scmp.lt.s32.totalorder %s98, 7
        %s1458 = scalar_select %p1457, %s98, 7
        %s1459 = smul.addr %s1458, 3
        %s1460 = smul.addr %s1459, 8
        %s1461 = scalar_lea.vmem %s77, %s1460
        %p1462 = scmp.lt.s32.totalorder %s98, 7
        %s1463 = scalar_select %p1462, %s98, 7
        %s1464 = smul.addr %s1463, 8
        %s1465 = scalar_lea.vmem %s3, %s1464
        %p1466 = scmp.lt.s32.totalorder %s98, 7
        %s1467 = scalar_select %p1466, %s98, 7
        %s1468 = smul.addr %s1467, 8
        %s1469 = scalar_lea.vmem %s5, %s1468
        %p1470 = scmp.lt.s32.totalorder %s98, 7
        %s1471 = scalar_select %p1470, %s98, 7
        %s1472 = smul.addr %s1471, 8
        %s1473 = scalar_lea.vmem %s7, %s1472
        %p1474 = scmp.lt.s32.totalorder %s98, 7
        %s1475 = scalar_select %p1474, %s98, 7
        %s1476 = smul.addr %s1475, 8
        %s1477 = scalar_lea.vmem %s9, %s1476
        %p1478 = scmp.lt.s32.totalorder %s98, 7
        %s1479 = scalar_select %p1478, %s98, 7
        %s1480 = smul.addr %s1479, 3
        %s1481 = smul.addr %s1480, 8
        %s1482 = scalar_lea.vmem %s77, %s1481
        %p1484 = scmp.eq.s32.totalorder %s98, 0
        // Predicated region
        $region245: #{rssm_forward.1} parent=171 // pred_check
          %p1485 = pneg %p1484
        $region246: #{rssm_forward.1} parent=171 // pred_check_branch
          %1487 = sbr.rel (%p1485) target = $region248
        $region247: #{rssm_forward.1} parent=171 // pred_region
          %v1488 = vld [vmem:[%s1] sm:$0xff]
          %vm1489 = vcmask 523264
          %1490 = vst.msk [vmem:[#allocation2] sm:$0xff] %vm1489, %v1488
        $region248: #{rssm_forward.1} parent=171 // pred_fallthru
          _
        %v1491 = vld [vmem:[#allocation2] sm:$0xff]
        %v1492 = vpack.c.bf16 %v1491, %v1491
        %v1493 = vld [vmem:[%s1465] sm:$0xff]
        %v1494 = vpack.c.bf16 %v1493, %v1493
        %v1495 = vld [vmem:[%s1469] sm:$0xff]
        %v1496 = vpack.c.bf16 %v1495, %v1495
        %v1497 = vld [vmem:[%s1473] sm:$0xff]
        %v1498 = vld [vmem:[%s1477] sm:$0xff]
        %v1499 = vld [vmem:[%s11] sm:$0xf]
        %v1500 = vld [vmem:[%s11 + $0x4] sm:$0xf]
        %v1501 = vld [vmem:[%s11 + $0x8] sm:$0xf]
        %v1502 = vld [vmem:[%s11 + $0xc] sm:$0xf]
        %v1503 = vld [vmem:[%s13] sm:$0xf]
        %v1504 = vld [vmem:[%s13 + $0x4] sm:$0xf]
        %v1505 = vld [vmem:[%s13 + $0x8] sm:$0xf]
        %v1506 = vld [vmem:[%s13 + $0xc] sm:$0xf]
        %v1507 = vld [vmem:[%s13 + $0x10] sm:$0xf]
        %v1508 = vld [vmem:[%s13 + $0x14] sm:$0xf]
        %v1509 = vld [vmem:[%s13 + $0x18] sm:$0xf]
        %v1510 = vld [vmem:[%s13 + $0x1c] sm:$0xf]
        %v1519 = vunpack.c.l.b16 %v1503
        %v1520 = vunpack.c.l.b16 %v1504
        %v1521 = vunpack.c.l.b16 %v1505
        %v1522 = vunpack.c.l.b16 %v1506
        %v1523 = vunpack.c.l.b16 %v1507
        %v1524 = vunpack.c.l.b16 %v1508
        %v1525 = vunpack.c.l.b16 %v1509
        %v1526 = vunpack.c.l.b16 %v1510
        %v1527 = vpack.c.b16 %v1520, %v1519
        %v1528 = vpack.c.b16 %v1522, %v1521
        %v1529 = vpack.c.b16 %v1524, %v1523
        %v1530 = vpack.c.b16 %v1526, %v1525
        %vm1535 = vcmask 523264
        %v1537 = vsel %vm1535, %v1492, 0
        %1539 = vmatpush.bf16.msra.mxu0 0
        %1540 = vmatpush.bf16.msra.mxu0 0
        %1541 = vmatpush.bf16.msra.mxu0 0
        %1542 = vmatpush.bf16.msra.mxu0 0
        %1543 = vmatpush.bf16.msra.mxu0 %v1530
        %1544 = vmatpush.bf16.msra.mxu0 %v1529
        %1545 = vmatpush.bf16.msra.mxu0 %v1528
        %1546 = vmatpush.bf16.msra.mxu0 %v1527
        %1547 = vmatmul.bf16.gmra.mxu0 %v1537
        %v1548 = vpop.f32.mrf.mxu0
        %v1549 = vadd.f32 0.0, %v1548
        %v1550 = vpop.f32.mrf.mxu0
        %1551 = vdwg.mxu0
        %v1556 = vunpack.c.l.b16 %v1499
        %v1557 = vunpack.c.l.b16 %v1500
        %v1558 = vunpack.c.l.b16 %v1501
        %v1559 = vunpack.c.l.b16 %v1502
        %v1560 = vpack.c.b16 %v1557, %v1556
        %v1561 = vpack.c.b16 %v1559, %v1558
        %vm1564 = vcmask 261120
        %v1566 = vsel %vm1564, %v1494, 0
        %1568 = vmatpush.bf16.msra.mxu0 0
        %1569 = vmatpush.bf16.msra.mxu0 0
        %1570 = vmatpush.bf16.msra.mxu0 0
        %1571 = vmatpush.bf16.msra.mxu0 0
        %1572 = vmatpush.bf16.msra.mxu0 0
        %1573 = vmatpush.bf16.msra.mxu0 0
        %1574 = vmatpush.bf16.msra.mxu0 %v1561
        %1575 = vmatpush.bf16.msra.mxu0 %v1560
        %1576 = vmatmul.bf16.gmra.mxu0 %v1566
        %v1577 = vpop.f32.mrf.mxu0
        %v1578 = vadd.f32 %v1549, %v1577
        %v1579 = vpop.f32.mrf.mxu0
        %1580 = vdwg.mxu0
        %v1581 = vld [vmem:[%s15] sm:$0x1]
        %v1583 = vperm.slane %v1581, 0
        %v1585 = vadd.f32 %v1578, %v1583
        %v1586 = vtanh.pop %v1585
        %v1587 = vpack.c.bf16 %v1586, %v1586
        %v1588 = vld [vmem:[%s17] sm:$0xf]
        %v1589 = vld [vmem:[%s17 + $0x4] sm:$0xf]
        %v1590 = vld [vmem:[%s17 + $0x8] sm:$0xf]
        %v1591 = vld [vmem:[%s17 + $0xc] sm:$0xf]
        %v1592 = vld [vmem:[%s17 + $0x10] sm:$0xf]
        %v1593 = vld [vmem:[%s17 + $0x14] sm:$0xf]
        %v1594 = vld [vmem:[%s17 + $0x18] sm:$0xf]
        %v1595 = vld [vmem:[%s17 + $0x1c] sm:$0xf]
        %v1596 = vld [vmem:[%s17 + $0x20] sm:$0xf]
        %v1597 = vld [vmem:[%s17 + $0x24] sm:$0xf]
        %v1598 = vld [vmem:[%s17 + $0x28] sm:$0xf]
        %v1599 = vld [vmem:[%s17 + $0x2c] sm:$0xf]
        %v1600 = vld [vmem:[%s17 + $0x30] sm:$0xf]
        %v1601 = vld [vmem:[%s17 + $0x34] sm:$0xf]
        %v1602 = vld [vmem:[%s17 + $0x38] sm:$0xf]
        %v1603 = vld [vmem:[%s17 + $0x3c] sm:$0xf]
        %v1604 = vld [vmem:[%s19] sm:$0x1]
        %v1606 = vperm.slane %v1604, 0
        %v1624 = vunpack.c.l.b16 %v1588
        %v1625 = vunpack.c.l.b16 %v1589
        %v1626 = vunpack.c.l.b16 %v1590
        %v1627 = vunpack.c.l.b16 %v1591
        %v1628 = vunpack.c.l.b16 %v1592
        %v1629 = vunpack.c.l.b16 %v1593
        %v1630 = vunpack.c.l.b16 %v1594
        %v1631 = vunpack.c.l.b16 %v1595
        %v1632 = vunpack.c.l.b16 %v1596
        %v1633 = vunpack.c.l.b16 %v1597
        %v1634 = vunpack.c.l.b16 %v1598
        %v1635 = vunpack.c.l.b16 %v1599
        %v1636 = vunpack.c.l.b16 %v1600
        %v1637 = vunpack.c.l.b16 %v1601
        %v1638 = vunpack.c.l.b16 %v1602
        %v1639 = vunpack.c.l.b16 %v1603
        %v1640 = vpack.c.b16 %v1625, %v1624
        %v1641 = vpack.c.b16 %v1627, %v1626
        %v1642 = vpack.c.b16 %v1629, %v1628
        %v1643 = vpack.c.b16 %v1631, %v1630
        %v1644 = vpack.c.b16 %v1633, %v1632
        %v1645 = vpack.c.b16 %v1635, %v1634
        %v1646 = vpack.c.b16 %v1637, %v1636
        %v1647 = vpack.c.b16 %v1639, %v1638
        %1656 = vmatpush.bf16.msra.mxu0 %v1647
        %1657 = vmatpush.bf16.msra.mxu0 %v1646
        %1658 = vmatpush.bf16.msra.mxu0 %v1645
        %1659 = vmatpush.bf16.msra.mxu0 %v1644
        %1660 = vmatpush.bf16.msra.mxu0 %v1643
        %1661 = vmatpush.bf16.msra.mxu0 %v1642
        %1662 = vmatpush.bf16.msra.mxu0 %v1641
        %1663 = vmatpush.bf16.msra.mxu0 %v1640
        %1664 = vmatmul.bf16.gmra.mxu0 %v1587
        %v1665 = vpop.f32.mrf.mxu0
        %v1666 = vadd.f32 %v1606, %v1665
        %v1667 = vpop.f32.mrf.mxu0
        %1668 = vdwg.mxu0
        %v1669 = vld [vmem:[%s21] sm:$0xf]
        %v1670 = vld [vmem:[%s21 + $0x4] sm:$0xf]
        %v1671 = vld [vmem:[%s21 + $0x8] sm:$0xf]
        %v1672 = vld [vmem:[%s21 + $0xc] sm:$0xf]
        %v1673 = vld [vmem:[%s21 + $0x10] sm:$0xf]
        %v1674 = vld [vmem:[%s21 + $0x14] sm:$0xf]
        %v1675 = vld [vmem:[%s21 + $0x18] sm:$0xf]
        %v1676 = vld [vmem:[%s21 + $0x1c] sm:$0xf]
        %v1677 = vld [vmem:[%s21 + $0x20] sm:$0xf]
        %v1678 = vld [vmem:[%s21 + $0x24] sm:$0xf]
        %v1679 = vld [vmem:[%s21 + $0x28] sm:$0xf]
        %v1680 = vld [vmem:[%s21 + $0x2c] sm:$0xf]
        %v1681 = vld [vmem:[%s21 + $0x30] sm:$0xf]
        %v1682 = vld [vmem:[%s21 + $0x34] sm:$0xf]
        %v1683 = vld [vmem:[%s21 + $0x38] sm:$0xf]
        %v1684 = vld [vmem:[%s21 + $0x3c] sm:$0xf]
        %v1685 = vld [vmem:[%s23] sm:$0x1]
        %v1687 = vperm.slane %v1685, 0
        %v1705 = vunpack.c.l.b16 %v1669
        %v1706 = vunpack.c.l.b16 %v1670
        %v1707 = vunpack.c.l.b16 %v1671
        %v1708 = vunpack.c.l.b16 %v1672
        %v1709 = vunpack.c.l.b16 %v1673
        %v1710 = vunpack.c.l.b16 %v1674
        %v1711 = vunpack.c.l.b16 %v1675
        %v1712 = vunpack.c.l.b16 %v1676
        %v1713 = vunpack.c.l.b16 %v1677
        %v1714 = vunpack.c.l.b16 %v1678
        %v1715 = vunpack.c.l.b16 %v1679
        %v1716 = vunpack.c.l.b16 %v1680
        %v1717 = vunpack.c.l.b16 %v1681
        %v1718 = vunpack.c.l.b16 %v1682
        %v1719 = vunpack.c.l.b16 %v1683
        %v1720 = vunpack.c.l.b16 %v1684
        %v1721 = vpack.c.b16 %v1706, %v1705
        %v1722 = vpack.c.b16 %v1708, %v1707
        %v1723 = vpack.c.b16 %v1710, %v1709
        %v1724 = vpack.c.b16 %v1712, %v1711
        %v1725 = vpack.c.b16 %v1714, %v1713
        %v1726 = vpack.c.b16 %v1716, %v1715
        %v1727 = vpack.c.b16 %v1718, %v1717
        %v1728 = vpack.c.b16 %v1720, %v1719
        %1737 = vmatpush.bf16.msra.mxu0 %v1728
        %1738 = vmatpush.bf16.msra.mxu0 %v1727
        %1739 = vmatpush.bf16.msra.mxu0 %v1726
        %1740 = vmatpush.bf16.msra.mxu0 %v1725
        %1741 = vmatpush.bf16.msra.mxu0 %v1724
        %1742 = vmatpush.bf16.msra.mxu0 %v1723
        %1743 = vmatpush.bf16.msra.mxu0 %v1722
        %1744 = vmatpush.bf16.msra.mxu0 %v1721
        %1745 = vmatmul.bf16.gmra.mxu0 %v1587
        %v1746 = vpop.f32.mrf.mxu0
        %v1747 = vadd.f32 %v1687, %v1746
        %v1748 = vpop.f32.mrf.mxu0
        %1749 = vdwg.mxu0
        %v1750 = vmax.f32 %v1747, 0.0
        %v1751 = vand.u32 2147483647, %v1747
        %v1752 = vsub.f32 0.0, %v1751
        %v1753 = vmul.f32 %v1752, 1.442695
        %v1754 = vpow.pop %v1753
        %v1755 = vadd.f32 %v1754, 1.0
        %v1756 = vlog2.pop %v1755
        %v1757 = vmul.f32 %v1756, 0.6931472
        %v1758 = vmul.f32 -0.5, %v1754
        %v1759 = vadd.f32 %v1758, 1.0
        %v1760 = vmul.f32 %v1759, %v1754
        %v1761 = vand.u32 2147483647, %v1754
        %vm1762 = vcmp.lt.f32.partialorder %v1761, 0.0004427343
        %v1763 = vsel %vm1762, %v1760, %v1757
        %v1764 = vadd.f32 %v1750, %v1763
        %v1765 = vadd.f32 %v1764, 0.1
        %v1766 = vmul.f32 %v1765, %v1497
        %v1767 = vadd.f32 %v1666, %v1766
        %v1768 = vpack.c.bf16 %v1767, %v1767
        %v1769 = vld [vmem:[#allocation3] sm:$0xf]
        %v1770 = vld [vmem:[#allocation3 + $0x4] sm:$0xf]
        %v1771 = vld [vmem:[#allocation3 + $0x8] sm:$0xf]
        %v1772 = vld [vmem:[#allocation3 + $0xc] sm:$0xf]
        %v1773 = vld [vmem:[%s27] sm:$0xf]
        %v1774 = vld [vmem:[%s27 + $0x4] sm:$0xf]
        %v1775 = vld [vmem:[%s27 + $0x8] sm:$0xf]
        %v1776 = vld [vmem:[%s27 + $0xc] sm:$0xf]
        %v1777 = vld [vmem:[%s27 + $0x10] sm:$0xf]
        %v1778 = vld [vmem:[%s27 + $0x14] sm:$0xf]
        %v1779 = vld [vmem:[%s27 + $0x18] sm:$0xf]
        %v1780 = vld [vmem:[%s27 + $0x1c] sm:$0xf]
        %v1789 = vunpack.c.l.b16 %v1773
        %v1790 = vunpack.c.l.b16 %v1774
        %v1791 = vunpack.c.l.b16 %v1775
        %v1792 = vunpack.c.l.b16 %v1776
        %v1793 = vunpack.c.l.b16 %v1777
        %v1794 = vunpack.c.l.b16 %v1778
        %v1795 = vunpack.c.l.b16 %v1779
        %v1796 = vunpack.c.l.b16 %v1780
        %v1797 = vpack.c.b16 %v1790, %v1789
        %v1798 = vpack.c.b16 %v1792, %v1791
        %v1799 = vpack.c.b16 %v1794, %v1793
        %v1800 = vpack.c.b16 %v1796, %v1795
        %1805 = vmatpush.bf16.msra.mxu0 0
        %1806 = vmatpush.bf16.msra.mxu0 0
        %1807 = vmatpush.bf16.msra.mxu0 0
        %1808 = vmatpush.bf16.msra.mxu0 0
        %1809 = vmatpush.bf16.msra.mxu0 %v1800
        %1810 = vmatpush.bf16.msra.mxu0 %v1799
        %1811 = vmatpush.bf16.msra.mxu0 %v1798
        %1812 = vmatpush.bf16.msra.mxu0 %v1797
        %1813 = vmatmul.bf16.gmra.mxu0 %v1537
        %v1814 = vpop.f32.mrf.mxu0
        %v1815 = vadd.f32 0.0, %v1814
        %v1816 = vpop.f32.mrf.mxu0
        %1817 = vdwg.mxu0
        %v1822 = vunpack.c.l.b16 %v1769
        %v1823 = vunpack.c.l.b16 %v1770
        %v1824 = vunpack.c.l.b16 %v1771
        %v1825 = vunpack.c.l.b16 %v1772
        %v1826 = vpack.c.b16 %v1823, %v1822
        %v1827 = vpack.c.b16 %v1825, %v1824
        %v1831 = vsel %vm1564, %v1768, 0
        %1833 = vmatpush.bf16.msra.mxu0 0
        %1834 = vmatpush.bf16.msra.mxu0 0
        %1835 = vmatpush.bf16.msra.mxu0 0
        %1836 = vmatpush.bf16.msra.mxu0 0
        %1837 = vmatpush.bf16.msra.mxu0 0
        %1838 = vmatpush.bf16.msra.mxu0 0
        %1839 = vmatpush.bf16.msra.mxu0 %v1827
        %1840 = vmatpush.bf16.msra.mxu0 %v1826
        %1841 = vmatmul.bf16.gmra.mxu0 %v1831
        %v1842 = vpop.f32.mrf.mxu0
        %v1843 = vadd.f32 %v1815, %v1842
        %v1844 = vpop.f32.mrf.mxu0
        %1845 = vdwg.mxu0
        %v1846 = vld [vmem:[%s29] sm:$0x1]
        %v1848 = vperm.slane %v1846, 0
        %v1850 = vadd.f32 %v1843, %v1848
        %v1851 = vtanh.pop %v1850
        %v1852 = vpack.c.bf16 %v1851, %v1851
        %v1853 = vld [vmem:[%s31] sm:$0xf]
        %v1854 = vld [vmem:[%s31 + $0x4] sm:$0xf]
        %v1855 = vld [vmem:[%s31 + $0x8] sm:$0xf]
        %v1856 = vld [vmem:[%s31 + $0xc] sm:$0xf]
        %v1857 = vld [vmem:[%s31 + $0x10] sm:$0xf]
        %v1858 = vld [vmem:[%s31 + $0x14] sm:$0xf]
        %v1859 = vld [vmem:[%s31 + $0x18] sm:$0xf]
        %v1860 = vld [vmem:[%s31 + $0x1c] sm:$0xf]
        %v1861 = vld [vmem:[%s31 + $0x20] sm:$0xf]
        %v1862 = vld [vmem:[%s31 + $0x24] sm:$0xf]
        %v1863 = vld [vmem:[%s31 + $0x28] sm:$0xf]
        %v1864 = vld [vmem:[%s31 + $0x2c] sm:$0xf]
        %v1865 = vld [vmem:[%s31 + $0x30] sm:$0xf]
        %v1866 = vld [vmem:[%s31 + $0x34] sm:$0xf]
        %v1867 = vld [vmem:[%s31 + $0x38] sm:$0xf]
        %v1868 = vld [vmem:[%s31 + $0x3c] sm:$0xf]
        %v1869 = vld [vmem:[%s33] sm:$0x1]
        %v1871 = vperm.slane %v1869, 0
        %v1889 = vunpack.c.l.b16 %v1853
        %v1890 = vunpack.c.l.b16 %v1854
        %v1891 = vunpack.c.l.b16 %v1855
        %v1892 = vunpack.c.l.b16 %v1856
        %v1893 = vunpack.c.l.b16 %v1857
        %v1894 = vunpack.c.l.b16 %v1858
        %v1895 = vunpack.c.l.b16 %v1859
        %v1896 = vunpack.c.l.b16 %v1860
        %v1897 = vunpack.c.l.b16 %v1861
        %v1898 = vunpack.c.l.b16 %v1862
        %v1899 = vunpack.c.l.b16 %v1863
        %v1900 = vunpack.c.l.b16 %v1864
        %v1901 = vunpack.c.l.b16 %v1865
        %v1902 = vunpack.c.l.b16 %v1866
        %v1903 = vunpack.c.l.b16 %v1867
        %v1904 = vunpack.c.l.b16 %v1868
        %v1905 = vpack.c.b16 %v1890, %v1889
        %v1906 = vpack.c.b16 %v1892, %v1891
        %v1907 = vpack.c.b16 %v1894, %v1893
        %v1908 = vpack.c.b16 %v1896, %v1895
        %v1909 = vpack.c.b16 %v1898, %v1897
        %v1910 = vpack.c.b16 %v1900, %v1899
        %v1911 = vpack.c.b16 %v1902, %v1901
        %v1912 = vpack.c.b16 %v1904, %v1903
        %1921 = vmatpush.bf16.msra.mxu0 %v1912
        %1922 = vmatpush.bf16.msra.mxu0 %v1911
        %1923 = vmatpush.bf16.msra.mxu0 %v1910
        %1924 = vmatpush.bf16.msra.mxu0 %v1909
        %1925 = vmatpush.bf16.msra.mxu0 %v1908
        %1926 = vmatpush.bf16.msra.mxu0 %v1907
        %1927 = vmatpush.bf16.msra.mxu0 %v1906
        %1928 = vmatpush.bf16.msra.mxu0 %v1905
        %1929 = vmatmul.bf16.gmra.mxu0 %v1852
        %v1930 = vpop.f32.mrf.mxu0
        %v1931 = vadd.f32 %v1871, %v1930
        %v1932 = vpop.f32.mrf.mxu0
        %1933 = vdwg.mxu0
        %v1934 = vld [vmem:[#allocation5] sm:$0xf]
        %v1935 = vld [vmem:[#allocation5 + $0x4] sm:$0xf]
        %v1936 = vld [vmem:[#allocation5 + $0x8] sm:$0xf]
        %v1937 = vld [vmem:[#allocation5 + $0xc] sm:$0xf]
        %v1938 = vld [vmem:[#allocation7] sm:$0xf]
        %vm1939 = vcmask 64512
        %v1941 = vsel %vm1939, %v1496, 0
        %vm1943 = vcmask 1043456
        %v1945 = vsel %vm1943, %v1938, 0
        %1947 = vmatpush.bf16.msra.mxu0 0
        %1948 = vmatpush.bf16.msra.mxu0 0
        %1949 = vmatpush.bf16.msra.mxu0 0
        %1950 = vmatpush.bf16.msra.mxu0 0
        %1951 = vmatpush.bf16.msra.mxu0 0
        %1952 = vmatpush.bf16.msra.mxu0 0
        %1953 = vmatpush.bf16.msra.mxu0 0
        %1954 = vmatpush.bf16.msra.mxu0 %v1945
        %1955 = vmatmul.bf16.gmra.mxu0 %v1941
        %v1956 = vpop.f32.mrf.mxu0
        %v1957 = vadd.f32 0.0, %v1956
        %v1958 = vpop.f32.mrf.mxu0
        %1959 = vdwg.mxu0
        %v1964 = vunpack.c.l.b16 %v1934
        %v1965 = vunpack.c.l.b16 %v1935
        %v1966 = vunpack.c.l.b16 %v1936
        %v1967 = vunpack.c.l.b16 %v1937
        %v1968 = vpack.c.b16 %v1965, %v1964
        %v1969 = vpack.c.b16 %v1967, %v1966
        %1972 = vmatpush.bf16.msra.mxu0 0
        %1973 = vmatpush.bf16.msra.mxu0 0
        %1974 = vmatpush.bf16.msra.mxu0 0
        %1975 = vmatpush.bf16.msra.mxu0 0
        %1976 = vmatpush.bf16.msra.mxu0 0
        %1977 = vmatpush.bf16.msra.mxu0 0
        %1978 = vmatpush.bf16.msra.mxu0 %v1969
        %1979 = vmatpush.bf16.msra.mxu0 %v1968
        %1980 = vmatmul.bf16.gmra.mxu0 %v1831
        %v1981 = vpop.f32.mrf.mxu0
        %v1982 = vadd.f32 %v1957, %v1981
        %v1983 = vpop.f32.mrf.mxu0
        %1984 = vdwg.mxu0
        %v1985 = vld [vmem:[#allocation8] sm:$0x1]
        %v1987 = vperm.slane %v1985, 0
        %v1989 = vadd.f32 %v1982, %v1987
        %v1990 = vtanh.pop %v1989
        %v1991 = vpack.c.bf16 %v1990, %v1990
        %v1992 = vld [vmem:[#allocation10] sm:$0xf]
        %v1993 = vld [vmem:[#allocation10 + $0x4] sm:$0xf]
        %v1994 = vld [vmem:[#allocation10 + $0x8] sm:$0xf]
        %v1995 = vld [vmem:[#allocation10 + $0xc] sm:$0xf]
        %v1996 = vld [vmem:[#allocation10 + $0x10] sm:$0xf]
        %v1997 = vld [vmem:[#allocation10 + $0x14] sm:$0xf]
        %v1998 = vld [vmem:[#allocation10 + $0x18] sm:$0xf]
        %v1999 = vld [vmem:[#allocation10 + $0x1c] sm:$0xf]
        %v2000 = vld [vmem:[%s47] sm:$0x1]
        %v2002 = vperm.slane %v2000, 0
        %v2012 = vunpack.c.l.b16 %v1992
        %v2013 = vunpack.c.l.b16 %v1993
        %v2014 = vunpack.c.l.b16 %v1994
        %v2015 = vunpack.c.l.b16 %v1995
        %v2016 = vunpack.c.l.b16 %v1996
        %v2017 = vunpack.c.l.b16 %v1997
        %v2018 = vunpack.c.l.b16 %v1998
        %v2019 = vunpack.c.l.b16 %v1999
        %v2020 = vpack.c.b16 %v2013, %v2012
        %v2021 = vpack.c.b16 %v2015, %v2014
        %v2022 = vpack.c.b16 %v2017, %v2016
        %v2023 = vpack.c.b16 %v2019, %v2018
        %v2029 = vsel %vm1535, %v1991, 0
        %2031 = vmatpush.bf16.msra.mxu0 0
        %2032 = vmatpush.bf16.msra.mxu0 0
        %2033 = vmatpush.bf16.msra.mxu0 0
        %2034 = vmatpush.bf16.msra.mxu0 0
        %2035 = vmatpush.bf16.msra.mxu0 %v2023
        %2036 = vmatpush.bf16.msra.mxu0 %v2022
        %2037 = vmatpush.bf16.msra.mxu0 %v2021
        %2038 = vmatpush.bf16.msra.mxu0 %v2020
        %2039 = vmatmul.bf16.gmra.mxu0 %v2029
        %v2040 = vpop.f32.mrf.mxu0
        %v2041 = vadd.f32 %v2002, %v2040
        %v2042 = vpop.f32.mrf.mxu0
        %2043 = vdwg.mxu0
        %v2044 = vld [vmem:[#allocation17] sm:$0xf]
        %v2045 = vld [vmem:[#allocation17 + $0x4] sm:$0xf]
        %v2046 = vld [vmem:[#allocation17 + $0x8] sm:$0xf]
        %v2047 = vld [vmem:[#allocation17 + $0xc] sm:$0xf]
        %v2048 = vld [vmem:[#allocation17 + $0x10] sm:$0xf]
        %v2049 = vld [vmem:[#allocation17 + $0x14] sm:$0xf]
        %v2050 = vld [vmem:[#allocation17 + $0x18] sm:$0xf]
        %v2051 = vld [vmem:[#allocation17 + $0x1c] sm:$0xf]
        %v2060 = vunpack.c.l.b16 %v2044
        %v2061 = vunpack.c.l.b16 %v2045
        %v2062 = vunpack.c.l.b16 %v2046
        %v2063 = vunpack.c.l.b16 %v2047
        %v2064 = vunpack.c.l.b16 %v2048
        %v2065 = vunpack.c.l.b16 %v2049
        %v2066 = vunpack.c.l.b16 %v2050
        %v2067 = vunpack.c.l.b16 %v2051
        %v2068 = vpack.c.b16 %v2061, %v2060
        %v2069 = vpack.c.b16 %v2063, %v2062
        %v2070 = vpack.c.b16 %v2065, %v2064
        %v2071 = vpack.c.b16 %v2067, %v2066
        %2076 = vmatpush.bf16.msra.mxu0 0
        %2077 = vmatpush.bf16.msra.mxu0 0
        %2078 = vmatpush.bf16.msra.mxu0 0
        %2079 = vmatpush.bf16.msra.mxu0 0
        %2080 = vmatpush.bf16.msra.mxu0 %v2071
        %2081 = vmatpush.bf16.msra.mxu0 %v2070
        %2082 = vmatpush.bf16.msra.mxu0 %v2069
        %2083 = vmatpush.bf16.msra.mxu0 %v2068
        %2084 = vmatmul.bf16.gmra.mxu0 %v1537
        %v2085 = vpop.f32.mrf.mxu0
        %v2086 = vadd.f32 0.0, %v2085
        %v2087 = vpop.f32.mrf.mxu0
        %2088 = vdwg.mxu0
        %v2089 = vadd.f32 %v2041, %v2086
        %v2090 = vld [vmem:[%s59] sm:$0x1]
        %v2092 = vperm.slane %v2090, 0
        %v2094 = vadd.f32 %v2089, %v2092
        %v2095 = vxor.u32 %v2094, 2147483648
        %v2096 = vmul.f32 %v2095, 1.442695
        %v2097 = vpow.pop %v2096
        %v2098 = vadd.f32 %v2097, 1.0
        %v2099 = vrcp.pop %v2098
        %v2100 = vmul.f32 %v2098, %v2099
        %v2101 = vsub.f32 1.0, %v2100
        %v2102 = vmul.f32 %v2099, %v2101
        %v2103 = vadd.f32 %v2099, %v2102
        %vm2104 = vweird.f32 %v2098
        %vm2105 = vweird.f32 %v2099
        %vm2106 = vmor %vm2104, %vm2105
        %v2107 = vsel %vm2106, %v2099, %v2103
        %v2108 = vand.u32 2147483647, %v2098
        %vm2109 = vcmp.eq.f32.partialorder %v2108, 8.507059e+37
        %v2110 = vand.u32 %v2098, 2147483648
        %v2111 = vor.u32 1.1754944e-38, %v2110
        %v2112 = vsel %vm2109, %v2111, %v2107
        %v2113 = vmul.f32 1.0, %v2112
        %v2114 = vld [vmem:[#allocation11] sm:$0xf]
        %v2115 = vld [vmem:[#allocation11 + $0x4] sm:$0xf]
        %v2116 = vld [vmem:[#allocation11 + $0x8] sm:$0xf]
        %v2117 = vld [vmem:[#allocation11 + $0xc] sm:$0xf]
        %v2118 = vld [vmem:[#allocation11 + $0x10] sm:$0xf]
        %v2119 = vld [vmem:[#allocation11 + $0x14] sm:$0xf]
        %v2120 = vld [vmem:[#allocation11 + $0x18] sm:$0xf]
        %v2121 = vld [vmem:[#allocation11 + $0x1c] sm:$0xf]
        %v2122 = vld [vmem:[#allocation14] sm:$0x1]
        %v2124 = vperm.slane %v2122, 0
        %v2134 = vunpack.c.l.b16 %v2114
        %v2135 = vunpack.c.l.b16 %v2115
        %v2136 = vunpack.c.l.b16 %v2116
        %v2137 = vunpack.c.l.b16 %v2117
        %v2138 = vunpack.c.l.b16 %v2118
        %v2139 = vunpack.c.l.b16 %v2119
        %v2140 = vunpack.c.l.b16 %v2120
        %v2141 = vunpack.c.l.b16 %v2121
        %v2142 = vpack.c.b16 %v2135, %v2134
        %v2143 = vpack.c.b16 %v2137, %v2136
        %v2144 = vpack.c.b16 %v2139, %v2138
        %v2145 = vpack.c.b16 %v2141, %v2140
        %2150 = vmatpush.bf16.msra.mxu0 0
        %2151 = vmatpush.bf16.msra.mxu0 0
        %2152 = vmatpush.bf16.msra.mxu0 0
        %2153 = vmatpush.bf16.msra.mxu0 0
        %2154 = vmatpush.bf16.msra.mxu0 %v2145
        %2155 = vmatpush.bf16.msra.mxu0 %v2144
        %2156 = vmatpush.bf16.msra.mxu0 %v2143
        %2157 = vmatpush.bf16.msra.mxu0 %v2142
        %2158 = vmatmul.bf16.gmra.mxu0 %v2029
        %v2159 = vpop.f32.mrf.mxu0
        %v2160 = vadd.f32 %v2124, %v2159
        %v2161 = vpop.f32.mrf.mxu0
        %2162 = vdwg.mxu0
        %v2163 = vld [vmem:[#allocation19] sm:$0xf]
        %v2164 = vld [vmem:[#allocation19 + $0x4] sm:$0xf]
        %v2165 = vld [vmem:[#allocation19 + $0x8] sm:$0xf]
        %v2166 = vld [vmem:[#allocation19 + $0xc] sm:$0xf]
        %v2167 = vld [vmem:[#allocation19 + $0x10] sm:$0xf]
        %v2168 = vld [vmem:[#allocation19 + $0x14] sm:$0xf]
        %v2169 = vld [vmem:[#allocation19 + $0x18] sm:$0xf]
        %v2170 = vld [vmem:[#allocation19 + $0x1c] sm:$0xf]
        %v2179 = vunpack.c.l.b16 %v2163
        %v2180 = vunpack.c.l.b16 %v2164
        %v2181 = vunpack.c.l.b16 %v2165
        %v2182 = vunpack.c.l.b16 %v2166
        %v2183 = vunpack.c.l.b16 %v2167
        %v2184 = vunpack.c.l.b16 %v2168
        %v2185 = vunpack.c.l.b16 %v2169
        %v2186 = vunpack.c.l.b16 %v2170
        %v2187 = vpack.c.b16 %v2180, %v2179
        %v2188 = vpack.c.b16 %v2182, %v2181
        %v2189 = vpack.c.b16 %v2184, %v2183
        %v2190 = vpack.c.b16 %v2186, %v2185
        %2195 = vmatpush.bf16.msra.mxu0 0
        %2196 = vmatpush.bf16.msra.mxu0 0
        %2197 = vmatpush.bf16.msra.mxu0 0
        %2198 = vmatpush.bf16.msra.mxu0 0
        %2199 = vmatpush.bf16.msra.mxu0 %v2190
        %2200 = vmatpush.bf16.msra.mxu0 %v2189
        %2201 = vmatpush.bf16.msra.mxu0 %v2188
        %2202 = vmatpush.bf16.msra.mxu0 %v2187
        %2203 = vmatmul.bf16.gmra.mxu0 %v1537
        %v2204 = vpop.f32.mrf.mxu0
        %v2205 = vadd.f32 0.0, %v2204
        %v2206 = vpop.f32.mrf.mxu0
        %2207 = vdwg.mxu0
        %v2208 = vadd.f32 %v2160, %v2205
        %v2209 = vld [vmem:[#allocation22] sm:$0x1]
        %v2211 = vperm.slane %v2209, 0
        %v2213 = vadd.f32 %v2208, %v2211
        %v2214 = vxor.u32 %v2213, 2147483648
        %v2215 = vmul.f32 %v2214, 1.442695
        %v2216 = vpow.pop %v2215
        %v2217 = vadd.f32 %v2216, 1.0
        %v2218 = vrcp.pop %v2217
        %v2219 = vmul.f32 %v2217, %v2218
        %v2220 = vsub.f32 1.0, %v2219
        %v2221 = vmul.f32 %v2218, %v2220
        %v2222 = vadd.f32 %v2218, %v2221
        %vm2223 = vweird.f32 %v2217
        %vm2224 = vweird.f32 %v2218
        %vm2225 = vmor %vm2223, %vm2224
        %v2226 = vsel %vm2225, %v2218, %v2222
        %v2227 = vand.u32 2147483647, %v2217
        %vm2228 = vcmp.eq.f32.partialorder %v2227, 8.507059e+37
        %v2229 = vand.u32 %v2217, 2147483648
        %v2230 = vor.u32 1.1754944e-38, %v2229
        %v2231 = vsel %vm2228, %v2230, %v2226
        %v2232 = vmul.f32 1.0, %v2231
        %v2233 = vld [vmem:[#allocation13] sm:$0xf]
        %v2234 = vld [vmem:[#allocation13 + $0x4] sm:$0xf]
        %v2235 = vld [vmem:[#allocation13 + $0x8] sm:$0xf]
        %v2236 = vld [vmem:[#allocation13 + $0xc] sm:$0xf]
        %v2237 = vld [vmem:[#allocation13 + $0x10] sm:$0xf]
        %v2238 = vld [vmem:[#allocation13 + $0x14] sm:$0xf]
        %v2239 = vld [vmem:[#allocation13 + $0x18] sm:$0xf]
        %v2240 = vld [vmem:[#allocation13 + $0x1c] sm:$0xf]
        %v2241 = vld [vmem:[#allocation16] sm:$0x1]
        %v2243 = vperm.slane %v2241, 0
        %v2253 = vunpack.c.l.b16 %v2233
        %v2254 = vunpack.c.l.b16 %v2234
        %v2255 = vunpack.c.l.b16 %v2235
        %v2256 = vunpack.c.l.b16 %v2236
        %v2257 = vunpack.c.l.b16 %v2237
        %v2258 = vunpack.c.l.b16 %v2238
        %v2259 = vunpack.c.l.b16 %v2239
        %v2260 = vunpack.c.l.b16 %v2240
        %v2261 = vpack.c.b16 %v2254, %v2253
        %v2262 = vpack.c.b16 %v2256, %v2255
        %v2263 = vpack.c.b16 %v2258, %v2257
        %v2264 = vpack.c.b16 %v2260, %v2259
        %2269 = vmatpush.bf16.msra.mxu0 0
        %2270 = vmatpush.bf16.msra.mxu0 0
        %2271 = vmatpush.bf16.msra.mxu0 0
        %2272 = vmatpush.bf16.msra.mxu0 0
        %2273 = vmatpush.bf16.msra.mxu0 %v2264
        %2274 = vmatpush.bf16.msra.mxu0 %v2263
        %2275 = vmatpush.bf16.msra.mxu0 %v2262
        %2276 = vmatpush.bf16.msra.mxu0 %v2261
        %2277 = vmatmul.bf16.gmra.mxu0 %v2029
        %v2278 = vpop.f32.mrf.mxu0
        %v2279 = vadd.f32 %v2243, %v2278
        %v2280 = vpop.f32.mrf.mxu0
        %2281 = vdwg.mxu0
        %v2282 = vld [vmem:[#allocation20] sm:$0xf]
        %v2283 = vld [vmem:[#allocation20 + $0x4] sm:$0xf]
        %v2284 = vld [vmem:[#allocation20 + $0x8] sm:$0xf]
        %v2285 = vld [vmem:[#allocation20 + $0xc] sm:$0xf]
        %v2286 = vld [vmem:[#allocation20 + $0x10] sm:$0xf]
        %v2287 = vld [vmem:[#allocation20 + $0x14] sm:$0xf]
        %v2288 = vld [vmem:[#allocation20 + $0x18] sm:$0xf]
        %v2289 = vld [vmem:[#allocation20 + $0x1c] sm:$0xf]
        %v2290 = vld [vmem:[#allocation23] sm:$0x1]
        %v2292 = vperm.slane %v2290, 0
        %v2302 = vunpack.c.l.b16 %v2282
        %v2303 = vunpack.c.l.b16 %v2283
        %v2304 = vunpack.c.l.b16 %v2284
        %v2305 = vunpack.c.l.b16 %v2285
        %v2306 = vunpack.c.l.b16 %v2286
        %v2307 = vunpack.c.l.b16 %v2287
        %v2308 = vunpack.c.l.b16 %v2288
        %v2309 = vunpack.c.l.b16 %v2289
        %v2310 = vpack.c.b16 %v2303, %v2302
        %v2311 = vpack.c.b16 %v2305, %v2304
        %v2312 = vpack.c.b16 %v2307, %v2306
        %v2313 = vpack.c.b16 %v2309, %v2308
        %2318 = vmatpush.bf16.msra.mxu0 0
        %2319 = vmatpush.bf16.msra.mxu0 0
        %2320 = vmatpush.bf16.msra.mxu0 0
        %2321 = vmatpush.bf16.msra.mxu0 0
        %2322 = vmatpush.bf16.msra.mxu0 %v2313
        %2323 = vmatpush.bf16.msra.mxu0 %v2312
        %2324 = vmatpush.bf16.msra.mxu0 %v2311
        %2325 = vmatpush.bf16.msra.mxu0 %v2310
        %2326 = vmatmul.bf16.gmra.mxu0 %v1537
        %v2327 = vpop.f32.mrf.mxu0
        %v2328 = vadd.f32 %v2292, %v2327
        %v2329 = vpop.f32.mrf.mxu0
        %2330 = vdwg.mxu0
        %v2331 = vmul.f32 %v2113, %v2328
        %v2332 = vadd.f32 %v2279, %v2331
        %v2333 = vtanh.pop %v2332
        %v2334 = vsub.f32 1.0, %v2232
        %v2335 = vmul.f32 %v2334, %v2333
        %v2336 = vmul.f32 %v2232, %v1491
        %v2337 = vadd.f32 %v2335, %v2336
        %2338 = vst.msk [vmem:[#allocation2] sm:$0xff] %vm1535, %v2337
        %v2339 = vpack.c.bf16 %v2337, %v2337
        %v2340 = vld [vmem:[#allocation25] sm:$0xf]
        %v2341 = vld [vmem:[#allocation25 + $0x4] sm:$0xf]
        %v2342 = vld [vmem:[#allocation25 + $0x8] sm:$0xf]
        %v2343 = vld [vmem:[#allocation25 + $0xc] sm:$0xf]
        %v2344 = vld [vmem:[#allocation25 + $0x10] sm:$0xf]
        %v2345 = vld [vmem:[#allocation25 + $0x14] sm:$0xf]
        %v2346 = vld [vmem:[#allocation25 + $0x18] sm:$0xf]
        %v2347 = vld [vmem:[#allocation25 + $0x1c] sm:$0xf]
        %v2348 = vld [vmem:[#allocation26] sm:$0x1]
        %v2350 = vperm.slane %v2348, 0
        %v2360 = vunpack.c.l.b16 %v2340
        %v2361 = vunpack.c.l.b16 %v2341
        %v2362 = vunpack.c.l.b16 %v2342
        %v2363 = vunpack.c.l.b16 %v2343
        %v2364 = vunpack.c.l.b16 %v2344
        %v2365 = vunpack.c.l.b16 %v2345
        %v2366 = vunpack.c.l.b16 %v2346
        %v2367 = vunpack.c.l.b16 %v2347
        %v2368 = vpack.c.b16 %v2361, %v2360
        %v2369 = vpack.c.b16 %v2363, %v2362
        %v2370 = vpack.c.b16 %v2365, %v2364
        %v2371 = vpack.c.b16 %v2367, %v2366
        %v2377 = vsel %vm1535, %v2339, 0
        %2379 = vmatpush.bf16.msra.mxu0 0
        %2380 = vmatpush.bf16.msra.mxu0 0
        %2381 = vmatpush.bf16.msra.mxu0 0
        %2382 = vmatpush.bf16.msra.mxu0 0
        %2383 = vmatpush.bf16.msra.mxu0 %v2371
        %2384 = vmatpush.bf16.msra.mxu0 %v2370
        %2385 = vmatpush.bf16.msra.mxu0 %v2369
        %2386 = vmatpush.bf16.msra.mxu0 %v2368
        %2387 = vmatmul.bf16.gmra.mxu0 %v2377
        %v2388 = vpop.f32.mrf.mxu0
        %v2389 = vadd.f32 %v2350, %v2388
        %v2390 = vpop.f32.mrf.mxu0
        %2391 = vdwg.mxu0
        %v2392 = vtanh.pop %v2389
        %v2393 = vpack.c.bf16 %v2392, %v2392
        %v2394 = vld [vmem:[%s69] sm:$0xf]
        %v2395 = vld [vmem:[%s69 + $0x4] sm:$0xf]
        %v2396 = vld [vmem:[%s69 + $0x8] sm:$0xf]
        %v2397 = vld [vmem:[%s69 + $0xc] sm:$0xf]
        %v2398 = vld [vmem:[%s69 + $0x10] sm:$0xf]
        %v2399 = vld [vmem:[%s69 + $0x14] sm:$0xf]
        %v2400 = vld [vmem:[%s69 + $0x18] sm:$0xf]
        %v2401 = vld [vmem:[%s69 + $0x1c] sm:$0xf]
        %v2402 = vld [vmem:[%s69 + $0x20] sm:$0xf]
        %v2403 = vld [vmem:[%s69 + $0x24] sm:$0xf]
        %v2404 = vld [vmem:[%s69 + $0x28] sm:$0xf]
        %v2405 = vld [vmem:[%s69 + $0x2c] sm:$0xf]
        %v2406 = vld [vmem:[%s69 + $0x30] sm:$0xf]
        %v2407 = vld [vmem:[%s69 + $0x34] sm:$0xf]
        %v2408 = vld [vmem:[%s69 + $0x38] sm:$0xf]
        %v2409 = vld [vmem:[%s69 + $0x3c] sm:$0xf]
        %v2410 = vld [vmem:[#allocation28] sm:$0x1]
        %v2412 = vperm.slane %v2410, 0
        %v2430 = vunpack.c.l.b16 %v2394
        %v2431 = vunpack.c.l.b16 %v2395
        %v2432 = vunpack.c.l.b16 %v2396
        %v2433 = vunpack.c.l.b16 %v2397
        %v2434 = vunpack.c.l.b16 %v2398
        %v2435 = vunpack.c.l.b16 %v2399
        %v2436 = vunpack.c.l.b16 %v2400
        %v2437 = vunpack.c.l.b16 %v2401
        %v2438 = vunpack.c.l.b16 %v2402
        %v2439 = vunpack.c.l.b16 %v2403
        %v2440 = vunpack.c.l.b16 %v2404
        %v2441 = vunpack.c.l.b16 %v2405
        %v2442 = vunpack.c.l.b16 %v2406
        %v2443 = vunpack.c.l.b16 %v2407
        %v2444 = vunpack.c.l.b16 %v2408
        %v2445 = vunpack.c.l.b16 %v2409
        %v2446 = vpack.c.b16 %v2431, %v2430
        %v2447 = vpack.c.b16 %v2433, %v2432
        %v2448 = vpack.c.b16 %v2435, %v2434
        %v2449 = vpack.c.b16 %v2437, %v2436
        %v2450 = vpack.c.b16 %v2439, %v2438
        %v2451 = vpack.c.b16 %v2441, %v2440
        %v2452 = vpack.c.b16 %v2443, %v2442
        %v2453 = vpack.c.b16 %v2445, %v2444
        %2462 = vmatpush.bf16.msra.mxu0 %v2453
        %2463 = vmatpush.bf16.msra.mxu0 %v2452
        %2464 = vmatpush.bf16.msra.mxu0 %v2451
        %2465 = vmatpush.bf16.msra.mxu0 %v2450
        %2466 = vmatpush.bf16.msra.mxu0 %v2449
        %2467 = vmatpush.bf16.msra.mxu0 %v2448
        %2468 = vmatpush.bf16.msra.mxu0 %v2447
        %2469 = vmatpush.bf16.msra.mxu0 %v2446
        %2470 = vmatmul.bf16.gmra.mxu0 %v2393
        %v2471 = vpop.f32.mrf.mxu0
        %v2472 = vadd.f32 %v2412, %v2471
        %v2473 = vpop.f32.mrf.mxu0
        %2474 = vdwg.mxu0
        %v2475 = vld [vmem:[%s73] sm:$0xf]
        %v2476 = vld [vmem:[%s73 + $0x4] sm:$0xf]
        %v2477 = vld [vmem:[%s73 + $0x8] sm:$0xf]
        %v2478 = vld [vmem:[%s73 + $0xc] sm:$0xf]
        %v2479 = vld [vmem:[%s73 + $0x10] sm:$0xf]
        %v2480 = vld [vmem:[%s73 + $0x14] sm:$0xf]
        %v2481 = vld [vmem:[%s73 + $0x18] sm:$0xf]
        %v2482 = vld [vmem:[%s73 + $0x1c] sm:$0xf]
        %v2483 = vld [vmem:[%s73 + $0x20] sm:$0xf]
        %v2484 = vld [vmem:[%s73 + $0x24] sm:$0xf]
        %v2485 = vld [vmem:[%s73 + $0x28] sm:$0xf]
        %v2486 = vld [vmem:[%s73 + $0x2c] sm:$0xf]
        %v2487 = vld [vmem:[%s73 + $0x30] sm:$0xf]
        %v2488 = vld [vmem:[%s73 + $0x34] sm:$0xf]
        %v2489 = vld [vmem:[%s73 + $0x38] sm:$0xf]
        %v2490 = vld [vmem:[%s73 + $0x3c] sm:$0xf]
        %v2491 = vld [vmem:[#allocation29] sm:$0x1]
        %v2493 = vperm.slane %v2491, 0
        %v2511 = vunpack.c.l.b16 %v2475
        %v2512 = vunpack.c.l.b16 %v2476
        %v2513 = vunpack.c.l.b16 %v2477
        %v2514 = vunpack.c.l.b16 %v2478
        %v2515 = vunpack.c.l.b16 %v2479
        %v2516 = vunpack.c.l.b16 %v2480
        %v2517 = vunpack.c.l.b16 %v2481
        %v2518 = vunpack.c.l.b16 %v2482
        %v2519 = vunpack.c.l.b16 %v2483
        %v2520 = vunpack.c.l.b16 %v2484
        %v2521 = vunpack.c.l.b16 %v2485
        %v2522 = vunpack.c.l.b16 %v2486
        %v2523 = vunpack.c.l.b16 %v2487
        %v2524 = vunpack.c.l.b16 %v2488
        %v2525 = vunpack.c.l.b16 %v2489
        %v2526 = vunpack.c.l.b16 %v2490
        %v2527 = vpack.c.b16 %v2512, %v2511
        %v2528 = vpack.c.b16 %v2514, %v2513
        %v2529 = vpack.c.b16 %v2516, %v2515
        %v2530 = vpack.c.b16 %v2518, %v2517
        %v2531 = vpack.c.b16 %v2520, %v2519
        %v2532 = vpack.c.b16 %v2522, %v2521
        %v2533 = vpack.c.b16 %v2524, %v2523
        %v2534 = vpack.c.b16 %v2526, %v2525
        %2543 = vmatpush.bf16.msra.mxu0 %v2534
        %2544 = vmatpush.bf16.msra.mxu0 %v2533
        %2545 = vmatpush.bf16.msra.mxu0 %v2532
        %2546 = vmatpush.bf16.msra.mxu0 %v2531
        %2547 = vmatpush.bf16.msra.mxu0 %v2530
        %2548 = vmatpush.bf16.msra.mxu0 %v2529
        %2549 = vmatpush.bf16.msra.mxu0 %v2528
        %2550 = vmatpush.bf16.msra.mxu0 %v2527
        %2551 = vmatmul.bf16.gmra.mxu0 %v2393
        %v2552 = vpop.f32.mrf.mxu0
        %v2553 = vadd.f32 %v2493, %v2552
        %v2554 = vpop.f32.mrf.mxu0
        %2555 = vdwg.mxu0
        %v2556 = vmax.f32 %v2553, 0.0
        %v2557 = vand.u32 2147483647, %v2553
        %v2558 = vsub.f32 0.0, %v2557
        %v2559 = vmul.f32 %v2558, 1.442695
        %v2560 = vpow.pop %v2559
        %v2561 = vadd.f32 %v2560, 1.0
        %v2562 = vlog2.pop %v2561
        %v2563 = vmul.f32 %v2562, 0.6931472
        %v2564 = vmul.f32 -0.5, %v2560
        %v2565 = vadd.f32 %v2564, 1.0
        %v2566 = vmul.f32 %v2565, %v2560
        %v2567 = vand.u32 2147483647, %v2560
        %vm2568 = vcmp.lt.f32.partialorder %v2567, 0.0004427343
        %v2569 = vsel %vm2568, %v2566, %v2563
        %v2570 = vadd.f32 %v2556, %v2569
        %v2571 = vadd.f32 %v2570, 0.1
        %v2572 = vmul.f32 %v2571, %v1498
        %v2573 = vadd.f32 %v2472, %v2572
        %2575 = vrot.lane.b32.xlu0 %v1666, 32
        %v2576 = vpop.permute.xlu0 %2575
        %2579 = vrot.lane.b32.xlu0 %v1765, 64
        %v2580 = vpop.permute.xlu0 %2579
        %2583 = vrot.lane.b32.xlu0 %v1931, 96
        %v2584 = vpop.permute.xlu0 %2583
        %2587 = vrot.lane.b32.xlu0 %v2472, 64
        %v2588 = vpop.permute.xlu0 %2587
        %2591 = vrot.lane.b32.xlu0 %v2571, 96
        %v2592 = vpop.permute.xlu0 %2591
        %v2594 = vsel %vm1564, %v1767, %v2576
        %v2595 = vsel %vm1535, %v2594, %v2580
        %vm2596 = vcmask 785408
        %v2597 = vsel %vm2596, %v2595, %v2584
        %v2598 = vsel %vm1535, %v2337, %v2588
        %v2599 = vsel %vm2596, %v2598, %v2592
        %2600 = vst [vmem:[%s1482] sm:$0xff] %v2597
        %2601 = vst [vmem:[%s1482 + $0x8] sm:$0xff] %v2599
        %2602 = vst.msk [vmem:[%s1482 + $0x10] sm:$0xff] %vm1564, %v2573
        %p2603 = scmp.lt.s32.totalorder %s98, 7
        %s2604 = scalar_select %p2603, %s98, 7
        %s2605 = smul.addr %s2604, 3
        %s2606 = smul.addr %s2605, 8
        %s2607 = scalar_lea.vmem %s77, %s2606
        // Predicated region
        $region249: #{rssm_forward.1} parent=171 // pred_check
          %p2608 = pneg %p934
        $region250: #{rssm_forward.1} parent=171 // pred_check_branch
          %2610 = sbr.rel (%p2608) target = $region252
        $region251: #{rssm_forward.1} parent=171 // pred_region
          _
        $region252: #{rssm_forward.1} parent=171 // pred_fallthru
          _
      $region172: #{rssm_forward.1} parent=5 // pred_fallthru
        _
      %p2611 = scmp.le.s32.totalorder 2, %s93
      // Predicated region
      $region253: #{rssm_forward.1} parent=5 // pred_check
        %p2612 = pneg %p2611
      $region254: #{rssm_forward.1} parent=5 // pred_check_branch
        %2614 = sbr.rel (%p2612) target = $region256
      $region255: #{rssm_forward.1} parent=5 // pred_region
        %s2615 = ssub.s32 %s93, 2
        // Predicated region
        $region257: #{rssm_forward.1} parent=255 // pred_check
          %p2616 = pneg %p940
        $region258: #{rssm_forward.1} parent=255 // pred_check_branch
          %2618 = sbr.rel (%p2616) target = $region260
        $region259: #{rssm_forward.1} parent=255 // pred_region
          %p2619 = scmp.lt.s32.totalorder %s99, 7
          %s2620 = scalar_select %p2619, %s99, 7
          %s2621 = smul.addr %s2620, 3
          %s2622 = smul.addr %s2621, 8
          %s2623 = scalar_lea.vmem %s77, %s2622
        $region260: #{rssm_forward.1} parent=255 // pred_fallthru
          _
      $region256: #{rssm_forward.1} parent=5 // pred_fallthru
        _
    $region6: #{rssm_forward.1} parent=1 // loop_footer
      %s97 = sadd.s32 1, %s93
    $region7: #{rssm_forward.1} parent=1 // loop_footer_branch
      %92 = sbr.rel target = $region3
    $region8: #{rssm_forward.1} parent=1 // loop_exit
      _
    %2624 = vsyncpa [#allocation4], 1
    %s2625 = scalar_lea.sflag [#allocation4], 1
    %2626 = vsyncpa %s2625, 1
    %2627 = vsyncpa [#allocation6], 1
    %2628 = vsyncpa [#allocation9], 1
    %2629 = vsyncpa [#allocation12], 1
    %2630 = vsyncpa [#allocation15], 1
    %2631 = vsyncpa [#allocation18], 1
    %2632 = vsyncpa [#allocation21], 1
    %2633 = vsyncpa [#allocation24], 1
    %2634 = vsyncpa [#allocation27], 1
    %2635 = vsyncpa [#allocation30], 1

</llo_original>
